<compile_context>
chip_gen: v7x
topology: tpu7x:2x2x1
jax: 0.10.0
libtpu: 0.0.40
codegen_flags: <defaults>
</compile_context>

<pallas_src>
import functools
import math

import jax
import jax.numpy as jnp
from jax.experimental import pallas as pl
from jax.experimental.pallas import tpu as pltpu

_LN_EPS = 1e-5
_NEG_INF = -1e30                 # causal mask value (scores are f32)


# ----------------------------------------------------------------------------
# generation-aware configuration
# ----------------------------------------------------------------------------

def _vmem_capacity_bytes():
    cap = 64 * 1024 * 1024       # conservative default (v7x-sized)
    try:
        got = int(pltpu.get_tpu_info().vmem_capacity_bytes)
        if got >= 32 * 1024 * 1024:
            cap = got
    except Exception:
        pass
    return cap


_VMEM_CAP = _vmem_capacity_bytes()
_BIG_VMEM = _VMEM_CAP >= 100 * 1024 * 1024     # v5e/v6e: 128 MiB, v7x: 64 MiB
# leave headroom for double-buffering + compiler scratch
_VMEM_LIMIT = int(min(_VMEM_CAP * 3 // 4, 112 * 1024 * 1024))
_TILE_CANDIDATES = (1024, 512, 256, 128) if _BIG_VMEM else (512, 256, 128)
_ROW_TILE_CAP = 512 if _BIG_VMEM else 256
_MOE_TF_CAP = 512 if _BIG_VMEM else 256
_ATTN_TILE = 256                               # 256-wide score/PV tiles


# ----------------------------------------------------------------------------
# small helpers
# ----------------------------------------------------------------------------

def _round_up(x, m):
    return (x + m - 1) // m * m


def _pick_tile(dim, cap=None):
    cands = _TILE_CANDIDATES if cap is None else tuple(
        c for c in _TILE_CANDIDATES if c <= cap)
    for c in cands:
        if dim >= c and dim % c == 0:
            return c
    return dim


def _row_tile(m, cap=None):
    cap = _ROW_TILE_CAP if cap is None else cap
    t = min(cap, _round_up(m, 8))
    return t, _round_up(m, t)


def _pad_rows(x, mp):
    m = x.shape[0]
    if m == mp:
        return x
    return jnp.pad(x, ((0, mp - m), (0, 0)))


def _erf(x):
    # Abramowitz & Stegun 7.1.26 (|err| < 1.5e-7): matches torch nn.GELU's
    # exact (erf) formulation to f32 noise using only exp/mul/add.
    a1, a2, a3, a4, a5 = (0.254829592, -0.284496736, 1.421413741,
                          -1.453152027, 1.061405429)
    p = 0.3275911
    ax = jnp.abs(x)
    t = 1.0 / (1.0 + p * ax)
    poly = ((((a5 * t + a4) * t + a3) * t + a2) * t + a1) * t
    y = 1.0 - poly * jnp.exp(-ax * ax)
    return jnp.where(x >= 0, y, -y)


def _gelu(x):
    return 0.5 * x * (1.0 + _erf(x * 0.7071067811865476))


# ----------------------------------------------------------------------------
# Pallas kernels
# ----------------------------------------------------------------------------

def _matmul_kernel(x_ref, w_ref, b_ref, o_ref, acc_ref):
    @pl.when(pl.program_id(2) == 0)
    def _():
        acc_ref[...] = jnp.zeros_like(acc_ref)

    acc_ref[...] += jnp.dot(x_ref[...], w_ref[...],
                            preferred_element_type=jnp.float32)

    @pl.when(pl.program_id(2) == pl.num_programs(2) - 1)
    def _():
        o_ref[...] = (acc_ref[...] + b_ref[...]).astype(o_ref.dtype)


def _matmul_res_kernel(x_ref, w_ref, b_ref, r_ref, o_ref, acc_ref):
    # same as _matmul_kernel but fuses the residual add into the finalize.
    @pl.when(pl.program_id(2) == 0)
    def _():
        acc_ref[...] = jnp.zeros_like(acc_ref)

    acc_ref[...] += jnp.dot(x_ref[...], w_ref[...],
                            preferred_element_type=jnp.float32)

    @pl.when(pl.program_id(2) == pl.num_programs(2) - 1)
    def _():
        o_ref[...] = (acc_ref[...] + b_ref[...]
                      + r_ref[...].astype(jnp.float32)).astype(o_ref.dtype)


def linear(x, w, b, residual=None, out_dtype=jnp.bfloat16):
    """Tiled y = x @ w + b [+ residual]; x, w bf16, f32 accumulation."""
    M, K = x.shape
    N = w.shape[1]
    tm, Mp = _row_tile(M)
    tn = _pick_tile(N)
    tk = _pick_tile(K)
    grid = (Mp // tm, N // tn, K // tk)

    in_specs = [
        pl.BlockSpec((tm, tk), lambda i, j, k: (i, k)),
        pl.BlockSpec((tk, tn), lambda i, j, k: (k, j)),
        pl.BlockSpec((1, tn), lambda i, j, k: (0, j)),
    ]
    args = [_pad_rows(x.astype(jnp.bfloat16), Mp), w, b]
    kernel = _matmul_kernel
    if residual is not None:
        in_specs.append(pl.BlockSpec((tm, tn), lambda i, j, k: (i, j)))
        args.append(_pad_rows(residual, Mp))
        kernel = _matmul_res_kernel

    out = pl.pallas_call(
        kernel,
        out_shape=jax.ShapeDtypeStruct((Mp, N), out_dtype),
        grid=grid,
        in_specs=in_specs,
        out_specs=pl.BlockSpec((tm, tn), lambda i, j, k: (i, j)),
        scratch_shapes=[pltpu.VMEM((tm, tn), jnp.float32)],
        compiler_params=pltpu.CompilerParams(
            dimension_semantics=("parallel", "parallel", "arbitrary"),
            vmem_limit_bytes=_VMEM_LIMIT),
    )(*args)
    return out[:M] if Mp != M else out


def _ln_matmul_kernel(x_ref, g_ref, bt_ref, w_ref, b_ref, o_ref, y_sc,
                      *, true_k):
    # LayerNorm computed once per row tile (j == 0) into VMEM scratch and
    # reused for every output-column tile.
    @pl.when(pl.program_id(1) == 0)
    def _():
        x = x_ref[...].astype(jnp.float32)
        inv_k = 1.0 / true_k
        mean = jnp.sum(x, axis=-1, keepdims=True) * inv_k
        xc = x - mean
        var = jnp.sum(xc * xc, axis=-1, keepdims=True) * inv_k
        y = xc * jax.lax.rsqrt(var + _LN_EPS)
        y_sc[...] = (y * g_ref[...] + bt_ref[...]).astype(jnp.bfloat16)

    acc = jnp.dot(y_sc[...], w_ref[...], preferred_element_type=jnp.float32)
    o_ref[...] = (acc + b_ref[...]).astype(o_ref.dtype)


def ln_linear(x, gamma, beta, w, b, true_k, out_dtype=jnp.bfloat16):
    """y = LayerNorm(x) @ w + b, tiled over rows and output columns."""
    M, K = x.shape
    N = w.shape[1]
    tm, Mp = _row_tile(M)
    tn = _pick_tile(N)
    out = pl.pallas_call(
        functools.partial(_ln_matmul_kernel, true_k=float(true_k)),
        out_shape=jax.ShapeDtypeStruct((Mp, N), out_dtype),
        grid=(Mp // tm, N // tn),
        in_specs=[
            pl.BlockSpec((tm, K), lambda i, j: (i, 0)),
            pl.BlockSpec((1, K), lambda i, j: (0, 0)),
            pl.BlockSpec((1, K), lambda i, j: (0, 0)),
            pl.BlockSpec((K, tn), lambda i, j: (0, j)),
            pl.BlockSpec((1, tn), lambda i, j: (0, j)),
        ],
        out_specs=pl.BlockSpec((tm, tn), lambda i, j: (i, j)),
        scratch_shapes=[pltpu.VMEM((tm, K), jnp.bfloat16)],
        compiler_params=pltpu.CompilerParams(
            dimension_semantics=("parallel", "arbitrary"),
            vmem_limit_bytes=_VMEM_LIMIT),
    )(_pad_rows(x, Mp), gamma, beta, w, b)
    return out[:M] if Mp != M else out


def _layernorm_kernel(x_ref, g_ref, b_ref, o_ref, *, true_k):
    x = x_ref[...].astype(jnp.float32)
    inv_k = 1.0 / true_k
    mean = jnp.sum(x, axis=-1, keepdims=True) * inv_k
    xc = x - mean
    var = jnp.sum(xc * xc, axis=-1, keepdims=True) * inv_k
    y = xc * jax.lax.rsqrt(var + _LN_EPS)
    o_ref[...] = (y * g_ref[...] + b_ref[...]).astype(o_ref.dtype)


def layernorm(x, gamma, beta, true_k, out_dtype=jnp.bfloat16):
    M, K = x.shape
    tm, Mp = _row_tile(M)
    out = pl.pallas_call(
        functools.partial(_layernorm_kernel, true_k=float(true_k)),
        out_shape=jax.ShapeDtypeStruct((Mp, K), out_dtype),
        grid=(Mp // tm,),
        in_specs=[
            pl.BlockSpec((tm, K), lambda i: (i, 0)),
            pl.BlockSpec((1, K), lambda i: (0, 0)),
            pl.BlockSpec((1, K), lambda i: (0, 0)),
        ],
        out_specs=pl.BlockSpec((tm, K), lambda i: (i, 0)),
        compiler_params=pltpu.CompilerParams(
            dimension_semantics=("parallel",),
            vmem_limit_bytes=_VMEM_LIMIT),
    )(_pad_rows(x, Mp), gamma, beta)
    return out[:M] if Mp != M else out


def _flash_kernel(q_ref, k_ref, v_ref, o_ref, m_sc, l_sc, acc_sc,
                  *, scale, tq, tk):
    qi = pl.program_id(2)
    ki = pl.program_id(3)

    @pl.when(ki == 0)
    def _():
        m_sc[...] = jnp.full_like(m_sc, _NEG_INF)
        l_sc[...] = jnp.zeros_like(l_sc)
        acc_sc[...] = jnp.zeros_like(acc_sc)

    @pl.when(ki <= qi)   # skip compute on fully-masked future kv tiles
    def _():
        q = q_ref[0, 0]                               # (tq, Dh) bf16
        k = k_ref[0, 0]                               # (tk, Dh)
        v = v_ref[0, 0]
        s = jnp.einsum("qd,kd->qk", q, k,
                       preferred_element_type=jnp.float32) * scale
        q_ids = qi * tq + jax.lax.broadcasted_iota(jnp.int32, (tq, tk), 0)
        k_ids = ki * tk + jax.lax.broadcasted_iota(jnp.int32, (tq, tk), 1)
        s = jnp.where(k_ids <= q_ids, s, _NEG_INF)
        m_prev = m_sc[...]
        m_new = jnp.maximum(m_prev, jnp.max(s, axis=-1, keepdims=True))
        alpha = jnp.exp(m_prev - m_new)
        p = jnp.exp(s - m_new)
        l_sc[...] = alpha * l_sc[...] + jnp.sum(p, axis=-1, keepdims=True)
        acc_sc[...] = alpha * acc_sc[...] + jnp.dot(
            p.astype(jnp.bfloat16), v, preferred_element_type=jnp.float32)
        m_sc[...] = m_new

    @pl.when(ki == pl.num_programs(3) - 1)
    def _():
        # exact reciprocal (review correctness concern about approx=True)
        o_ref[0, 0] = (acc_sc[...] / l_sc[...]).astype(o_ref.dtype)


def flash_attention(q, k, v, scale, tile):
    """q/k/v: (B, nh, Sp, Dh) bf16 with the TRUE head dim (no lane padding)."""
    B, nh, Sp, Dh = q.shape
    nq = Sp // tile
    # K/V index maps clamp to min(ki, qi): masked future kv steps re-reference
    # the already-resident block so no DMA is issued for them.
    kv_map = lambda b, h, qi, ki: (b, h, jnp.minimum(ki, qi), 0)
    return pl.pallas_call(
        functools.partial(_flash_kernel, scale=scale, tq=tile, tk=tile),
        out_shape=jax.ShapeDtypeStruct((B, nh, Sp, Dh), jnp.bfloat16),
        grid=(B, nh, nq, nq),
        in_specs=[
            pl.BlockSpec((1, 1, tile, Dh), lambda b, h, qi, ki: (b, h, qi, 0)),
            pl.BlockSpec((1, 1, tile, Dh), kv_map),
            pl.BlockSpec((1, 1, tile, Dh), kv_map),
        ],
        out_specs=pl.BlockSpec((1, 1, tile, Dh),
                               lambda b, h, qi, ki: (b, h, qi, 0)),
        scratch_shapes=[pltpu.VMEM((tile, 1), jnp.float32),
                        pltpu.VMEM((tile, 1), jnp.float32),
                        pltpu.VMEM((tile, Dh), jnp.float32)],
        compiler_params=pltpu.CompilerParams(
            dimension_semantics=("parallel", "parallel", "parallel",
                                 "arbitrary"),
            vmem_limit_bytes=_VMEM_LIMIT),
    )(q, k, v)


def _moe_ffn_kernel(te_ref, x_ref, g_ref, w1_ref, b1_ref, w2_ref, b2_ref,
                    o_ref, acc_ref):
    del te_ref  # only consumed by the index_maps (expert selection)
    f = pl.program_id(1)

    @pl.when(f == 0)
    def _():
        acc_ref[...] = jnp.zeros_like(acc_ref)

    h = jnp.dot(x_ref[...], w1_ref[...],
                preferred_element_type=jnp.float32) + b1_ref[...]
    h = _gelu(h)
    acc_ref[...] += jnp.dot(h.astype(jnp.bfloat16), w2_ref[...],
                            preferred_element_type=jnp.float32)

    @pl.when(f == pl.num_programs(1) - 1)
    def _():
        # top-1 gate fused into the finalize; bf16 writeback.
        o_ref[...] = ((acc_ref[...] + b2_ref[...])
                      * g_ref[...]).astype(o_ref.dtype)


def moe_ffn(tile_expert, x_disp, gate_disp, w1, b1, w2, b2, tm):
    """Grouped (top-1 routed) expert FFN; tile_expert[t] picks the expert
    weight blocks for row tile t via scalar prefetch."""
    Mtot, Hp = x_disp.shape
    Fp = w1.shape[2]
    tf = _pick_tile(Fp, cap=_MOE_TF_CAP)
    grid_spec = pltpu.PrefetchScalarGridSpec(
        num_scalar_prefetch=1,
        grid=(Mtot // tm, Fp // tf),
        in_specs=[
            pl.BlockSpec((tm, Hp), lambda t, f, te: (t, 0)),
            pl.BlockSpec((tm, 1), lambda t, f, te: (t, 0)),
            pl.BlockSpec((None, Hp, tf), lambda t, f, te: (te[t], 0, f)),
            pl.BlockSpec((None, 1, tf), lambda t, f, te: (te[t], 0, f)),
            pl.BlockSpec((None, tf, Hp), lambda t, f, te: (te[t], f, 0)),
            pl.BlockSpec((None, 1, Hp), lambda t, f, te: (te[t], 0, 0)),
        ],
        out_specs=pl.BlockSpec((tm, Hp), lambda t, f, te: (t, 0)),
        scratch_shapes=[pltpu.VMEM((tm, Hp), jnp.float32)],
    )
    return pl.pallas_call(
        _moe_ffn_kernel,
        out_shape=jax.ShapeDtypeStruct((Mtot, Hp), jnp.bfloat16),
        grid_spec=grid_spec,
        compiler_params=pltpu.CompilerParams(
            dimension_semantics=("parallel", "arbitrary"),
            vmem_limit_bytes=_VMEM_LIMIT),
    )(tile_expert, x_disp, gate_disp, w1, b1, w2, b2)


# ----------------------------------------------------------------------------
# Model (glue in plain JAX; all heavy compute in the kernels above)
# ----------------------------------------------------------------------------

def mor_block(p, x2d, B, S, cfg):
    H, nh, E = cfg["hidden"], cfg["heads"], cfg["experts"]
    Dh = H // nh
    M = B * S
    Hp = x2d.shape[1]

    # --- attention sub-block: LN1 fused into the QKV projection -------------
    qkv = ln_linear(x2d, p["ln1_g"], p["ln1_b"], p["wqkv"], p["bqkv"],
                    true_k=H, out_dtype=jnp.bfloat16)          # (M, 3*H)
    tile_s = min(_ATTN_TILE, _round_up(S, 8))
    Sp = _round_up(S, tile_s)
    # head-major relayout (true Dh, no per-head lane padding) via XLA
    qkv = qkv.reshape(B, S, 3, nh, Dh)
    qkv = jnp.transpose(qkv, (2, 0, 3, 1, 4))                  # (3,B,nh,S,Dh)
    if Sp != S:
        qkv = jnp.pad(qkv, ((0, 0), (0, 0), (0, 0), (0, Sp - S), (0, 0)))
    ao = flash_attention(qkv[0], qkv[1], qkv[2],
                         scale=1.0 / math.sqrt(Dh), tile=tile_s)
    if Sp != S:
        ao = ao[:, :, :S]
    ao = jnp.transpose(ao, (0, 2, 1, 3)).reshape(M, nh * Dh)   # (M, H)
    # output projection fused with the residual add (dropout = identity)
    x2d = linear(ao, p["wo"], p["bo"], residual=x2d)           # (M, Hp) bf16

    # --- MoE feed-forward sub-block, top-1 routing ---------------------------
    h2 = layernorm(x2d, p["ln2_g"], p["ln2_b"], true_k=H)      # (M, Hp) bf16
    router = linear(h2, p["wr"], p["br"], out_dtype=jnp.float32)[:, :E]
    probs = jax.nn.softmax(router, axis=-1)
    top_gate = jnp.max(probs, axis=-1, keepdims=True)          # (M, 1)
    top_idx = jnp.argmax(router, axis=-1).astype(jnp.int32)    # (M,)

    # Sort tokens by expert and pad each expert group to a tile boundary so
    # every row tile belongs to exactly one expert -> grouped matmul with a
    # scalar-prefetched per-tile expert id (1x FFN FLOPs instead of E x).
    # TODO(synk): dispatch scatter / un-dispatch gather still run as XLA
    # scatter/gather rather than being fused into the kernel.
    tm = min(128, _round_up(M, 8))
    sort_idx = jnp.argsort(top_idx)
    sorted_expert = top_idx[sort_idx]
    sizes = jnp.bincount(top_idx, length=E).astype(jnp.int32)
    group_off = jnp.cumsum(sizes) - sizes
    padded_sizes = ((sizes + tm - 1) // tm) * tm
    pad_off = jnp.cumsum(padded_sizes) - padded_sizes
    pad_end = jnp.cumsum(padded_sizes)
    dest = pad_off[sorted_expert] + (jnp.arange(M, dtype=jnp.int32)
                                     - group_off[sorted_expert])
    Mtot = _round_up(M, tm) + E * tm      # static upper bound, multiple of tm
    x_disp = jnp.zeros((Mtot, Hp), h2.dtype).at[dest].set(h2[sort_idx])
    gate_disp = jnp.zeros((Mtot, 1), jnp.float32).at[dest].set(
        top_gate[sort_idx].astype(jnp.float32))
    nt = Mtot // tm
    tile_expert = jnp.minimum(
        jnp.searchsorted(pad_end, jnp.arange(nt, dtype=jnp.int32) * tm,
                         side="right"),
        E - 1).astype(jnp.int32)

    y_disp = moe_ffn(tile_expert, x_disp, gate_disp,
                     p["w1"], p["b1"], p["w2"], p["b2"], tm)   # gated, bf16
    # un-dispatch + residual add in one scatter-add (indices are a permutation)
    return x2d.at[sort_idx].add(y_disp[dest].astype(x2d.dtype))


def mor_forward(params, input_ids, *, hidden, heads, experts, vocab):
    B, S = input_ids.shape
    cfg = {"hidden": hidden, "heads": heads, "experts": experts}
    Hp = params["token_embed"].shape[1]
    # embedding gathers stay in XLA (no natural tiled-Pallas equivalent)
    x = params["token_embed"][input_ids] + params["pos_embed"][:S][None, :, :]
    x2d = x.reshape(B * S, Hp).astype(jnp.bfloat16)
    # NOTE: PyTorch passes depth=i to each block; the (guessed) MoRBlock has
    # use_depth_embed=False so depth is unused here.
    for blk in params["blocks"]:
        x2d = mor_block(blk, x2d, B, S, cfg)
    # final LayerNorm fused into the (tiled) vocab projection, f32 logits
    logits = ln_linear(x2d, params["ln_f_g"], params["ln_f_b"],
                       params["out_w"], params["out_b"], true_k=hidden,
                       out_dtype=jnp.float32)
    return logits[:, :vocab].reshape(B, S, vocab)


def init_params(key, vocab_size, hidden, ff, num_experts, num_heads,
                num_layers, max_length):
    H = hidden
    Hp = _round_up(H, 128)
    Dh = H // num_heads
    Fp = _round_up(ff, 128)
    Ep = _round_up(num_experts, 128)
    Vp = _round_up(vocab_size, 128)
    nh, E = num_heads, num_experts

    def nrm(k, shape, scale=0.02):
        return scale * jax.random.normal(k, shape, dtype=jnp.float32)

    def pad_to(a, shape):
        return jnp.pad(a, [(0, s - d) for d, s in zip(a.shape, shape)])

    keys = jax.random.split(key, 4 + num_layers)
    params = {
        "token_embed": pad_to(nrm(keys[0], (vocab_size, H)), (vocab_size, Hp)),
        "pos_embed": pad_to(nrm(keys[1], (max_length, H)), (max_length, Hp)),
        "ln_f_g": pad_to(jnp.ones((1, H), jnp.float32), (1, Hp)),
        "ln_f_b": jnp.zeros((1, Hp), jnp.float32),
        "out_w": pad_to(nrm(keys[2], (H, vocab_size)),
                        (Hp, Vp)).astype(jnp.bfloat16),
        "out_b": jnp.zeros((1, Vp), jnp.float32),
        "blocks": [],
    }

    for layer in range(num_layers):
        bk = jax.random.split(keys[4 + layer], 8)

        # q/k/v packed with the TRUE head dim (no per-head lane padding);
        # column order is [q heads | k heads | v heads], Dh contiguous per
        # head, matching the (3, nh, Dh) reshape used in the forward pass.
        def pack(wk_, k_):                       # (H, nh, Dh) -> (Hp, nh*Dh)
            return pad_to(nrm(wk_, (H, nh, Dh)), (Hp, nh, Dh)).reshape(Hp,
                                                                       nh * Dh)

        wqkv = jnp.concatenate([pack(bk[0], 0), pack(bk[1], 1),
                                pack(bk[2], 2)], axis=1)        # (Hp, 3*H)
        wo = pad_to(nrm(bk[3], (nh, Dh, H)),
                    (nh, Dh, Hp)).reshape(nh * Dh, Hp)          # (H, Hp)

        blk = {
            "ln1_g": pad_to(jnp.ones((1, H), jnp.float32), (1, Hp)),
            "ln1_b": jnp.zeros((1, Hp), jnp.float32),
            "ln2_g": pad_to(jnp.ones((1, H), jnp.float32), (1, Hp)),
            "ln2_b": jnp.zeros((1, Hp), jnp.float32),
            "wqkv": wqkv.astype(jnp.bfloat16),
            "bqkv": jnp.zeros((1, 3 * nh * Dh), jnp.float32),
            "wo": wo.astype(jnp.bfloat16),
            "bo": jnp.zeros((1, Hp), jnp.float32),
            "wr": pad_to(nrm(bk[4], (H, E)), (Hp, Ep)).astype(jnp.bfloat16),
            "br": jnp.zeros((1, Ep), jnp.float32),
            "w1": pad_to(nrm(bk[5], (E, H, ff)),
                         (E, Hp, Fp)).astype(jnp.bfloat16),
            "b1": jnp.zeros((E, 1, Fp), jnp.float32),
            "w2": pad_to(nrm(bk[6], (E, ff, H)),
                         (E, Fp, Hp)).astype(jnp.bfloat16),
            "b2": jnp.zeros((E, 1, Hp), jnp.float32),
        }
        params["blocks"].append(blk)
    return params


if __name__ == "__main__":
    # small shapes consistent with the module's forward
    vocab_size = 64
    hidden_dim = 32
    ff_dim = 64
    num_experts = 2
    num_layers = 4
    num_heads = 4
    max_length = 256
    batch, seq = 2, 8

    root = jax.random.PRNGKey(0)
    k_param, k_ids = jax.random.split(root)
    params = init_params(k_param, vocab_size, hidden_dim, ff_dim, num_experts,
                         num_heads, num_layers, max_length)
    input_ids = jax.random.randint(k_ids, (batch, seq), 0, vocab_size,
                                   dtype=jnp.int32)

    fwd = jax.jit(functools.partial(mor_forward, hidden=hidden_dim,
                                    heads=num_heads, experts=num_experts,
                                    vocab=vocab_size))
    logits = fwd(params, input_ids)
    jax.block_until_ready(logits)
    assert logits.shape == (batch, seq, vocab_size)
    assert bool(jnp.all(jnp.isfinite(logits)))
    print("KERNEL_OK")
</pallas_src>

<mosaic_0001>
module attributes {stable_mosaic.version = 11 : i64} {
  func.func private @main(%arg0: i32) attributes {dimension_semantics = [#tpu.dimension_semantics<core_parallel>], iteration_bounds = array<i64: 2>, tpu.core_type = #tpu.core_type<sc_scalar_subcore>, window_params = []} {
    return
  }
}

module attributes {stable_mosaic.version = 11 : i64} {
  func.func private @main(%arg0: i32) attributes {dimension_semantics = [#tpu.dimension_semantics<core_parallel>], iteration_bounds = array<i64: 2>, tpu.core_type = #tpu.core_type<sc_scalar_subcore>, window_params = []} {
    return
  }
}

module attributes {stable_mosaic.version = 11 : i64} {
  func.func @_ln_matmul_kernel(%arg0: i32, %arg1: i32, %arg2: memref<16x128xbf16, #tpu.memory_space<vmem>>, %arg3: memref<1x128xf32, #tpu.memory_space<vmem>>, %arg4: memref<1x128xf32, #tpu.memory_space<vmem>>, %arg5: memref<128x96xbf16, #tpu.memory_space<vmem>>, %arg6: memref<1x96xf32, #tpu.memory_space<vmem>>, %arg7: memref<16x96xbf16, #tpu.memory_space<vmem>>, %arg8: memref<16x128xbf16, #tpu.memory_space<vmem>>) attributes {dimension_semantics = [#tpu.dimension_semantics<parallel>, #tpu.dimension_semantics<arbitrary>], iteration_bounds = array<i64: 1, 1>, scalar_prefetch = 0 : i64, scratch_operands = 1 : i64, tpu.core_type = #tpu.core_type<tc>, window_params = [{transform_indices = @transform_0, window_bounds = array<i64: 16, 128>}, {pipeline_mode = #tpu.pipeline_mode<synchronous>, transform_indices = @transform_1, window_bounds = array<i64: 1, 128>}, {pipeline_mode = #tpu.pipeline_mode<synchronous>, transform_indices = @transform_2, window_bounds = array<i64: 1, 128>}, {transform_indices = @transform_3, window_bounds = array<i64: 128, 96>}, {transform_indices = @transform_4, window_bounds = array<i64: 1, 96>}, {transform_indices = @transform_5, window_bounds = array<i64: 16, 96>}]} {
    %c0_i32 = arith.constant 0 : i32
    %0 = arith.cmpi eq, %arg1, %c0_i32 : i32
    %1 = arith.extui %0 : i1 to i32
    %c0_i32_0 = arith.constant 0 : i32
    %2 = arith.cmpi ne, %1, %c0_i32_0 : i32
    scf.if %2 {
      %c0_8 = arith.constant 0 : index
      %c0_9 = arith.constant 0 : index
      %11 = vector.load %arg2[%c0_8, %c0_9] : memref<16x128xbf16, #tpu.memory_space<vmem>>, vector<16x128xbf16>
      %12 = arith.extf %11 : vector<16x128xbf16> to vector<16x128xf32>
      %cst_10 = arith.constant dense<0.000000e+00> : vector<16xf32>
      %13 = vector.multi_reduction <add>, %12, %cst_10 [1] : vector<16x128xf32> to vector<16xf32>
      %14 = vector.shape_cast %13 : vector<16xf32> to vector<16x1xf32>
      %cst_11 = arith.constant 3.125000e-02 : f32
      %15 = vector.broadcast %cst_11 : f32 to vector<16x1xf32>
      %16 = arith.mulf %14, %15 : vector<16x1xf32>
      %17 = vector.broadcast %16 : vector<16x1xf32> to vector<16x128xf32>
      %18 = arith.subf %12, %17 : vector<16x128xf32>
      %19 = arith.mulf %18, %18 : vector<16x128xf32>
      %cst_12 = arith.constant dense<0.000000e+00> : vector<16xf32>
      %20 = vector.multi_reduction <add>, %19, %cst_12 [1] : vector<16x128xf32> to vector<16xf32>
      %21 = vector.shape_cast %20 : vector<16xf32> to vector<16x1xf32>
      %cst_13 = arith.constant 3.125000e-02 : f32
      %22 = vector.broadcast %cst_13 : f32 to vector<16x1xf32>
      %23 = arith.mulf %21, %22 : vector<16x1xf32>
      %cst_14 = arith.constant 9.99999974E-6 : f32
      %24 = vector.broadcast %cst_14 : f32 to vector<16x1xf32>
      %25 = arith.addf %23, %24 : vector<16x1xf32>
      %26 = math.rsqrt %25 : vector<16x1xf32>
      %27 = vector.broadcast %26 : vector<16x1xf32> to vector<16x128xf32>
      %28 = arith.mulf %18, %27 : vector<16x128xf32>
      %c0_15 = arith.constant 0 : index
      %c0_16 = arith.constant 0 : index
      %29 = vector.load %arg3[%c0_15, %c0_16] : memref<1x128xf32, #tpu.memory_space<vmem>>, vector<1x128xf32>
      %30 = vector.broadcast %29 : vector<1x128xf32> to vector<16x128xf32>
      %31 = arith.mulf %28, %30 : vector<16x128xf32>
      %c0_17 = arith.constant 0 : index
      %c0_18 = arith.constant 0 : index
      %32 = vector.load %arg4[%c0_17, %c0_18] : memref<1x128xf32, #tpu.memory_space<vmem>>, vector<1x128xf32>
      %33 = vector.broadcast %32 : vector<1x128xf32> to vector<16x128xf32>
      %34 = arith.addf %31, %33 : vector<16x128xf32>
      %35 = arith.truncf %34 : vector<16x128xf32> to vector<16x128xbf16>
      %c0_19 = arith.constant 0 : index
      %c0_20 = arith.constant 0 : index
      %36 = vector.load %arg8[%c0_19, %c0_20] : memref<16x128xbf16, #tpu.memory_space<vmem>>, vector<16x128xbf16>
      tpu.vector_store %arg8[%c0_19, %c0_20], %35 {strides = array<i32>} : memref<16x128xbf16, #tpu.memory_space<vmem>>, vector<16x128xbf16>,
    } else {
    }
    %c0 = arith.constant 0 : index
    %c0_1 = arith.constant 0 : index
    %3 = vector.load %arg8[%c0, %c0_1] : memref<16x128xbf16, #tpu.memory_space<vmem>>, vector<16x128xbf16>
    %c0_2 = arith.constant 0 : index
    %c0_3 = arith.constant 0 : index
    %4 = vector.load %arg5[%c0_2, %c0_3] : memref<128x96xbf16, #tpu.memory_space<vmem>>, vector<128x96xbf16>
    %cst = arith.constant dense<0.000000e+00> : vector<16x96xf32>
    %5 = tpu.matmul %3, %4, %cst {dimension_numbers = #tpu.dot_dimension_numbers<[1], [0], [0], [1], [0, 0, 1, 1], [], []>} : vector<16x128xbf16>, vector<128x96xbf16>, vector<16x96xf32> -> vector<16x96xf32>
    %c0_4 = arith.constant 0 : index
    %c0_5 = arith.constant 0 : index
    %6 = vector.load %arg6[%c0_4, %c0_5] : memref<1x96xf32, #tpu.memory_space<vmem>>, vector<1x96xf32>
    %7 = vector.broadcast %6 : vector<1x96xf32> to vector<16x96xf32>
    %8 = arith.addf %5, %7 : vector<16x96xf32>
    %9 = arith.truncf %8 : vector<16x96xf32> to vector<16x96xbf16>
    %c0_6 = arith.constant 0 : index
    %c0_7 = arith.constant 0 : index
    %10 = vector.load %arg7[%c0_6, %c0_7] : memref<16x96xbf16, #tpu.memory_space<vmem>>, vector<16x96xbf16>
    tpu.vector_store %arg7[%c0_6, %c0_7], %9 {strides = array<i32>} : memref<16x96xbf16, #tpu.memory_space<vmem>>, vector<16x96xbf16>,
    return
  }
  func.func @transform_0(%arg0: i32, %arg1: i32) -> (i32, i32) {
    %c0_i32 = arith.constant 0 : i32
    %c0_i32_0 = arith.constant 0 : i32
    return %arg0, %c0_i32 : i32, i32
  }
  func.func @transform_1(%arg0: i32, %arg1: i32) -> (i32, i32) {
    %c0_i32 = arith.constant 0 : i32
    %c0_i32_0 = arith.constant 0 : i32
    %c0_i32_1 = arith.constant 0 : i32
    return %c0_i32, %c0_i32_0 : i32, i32
  }
  func.func @transform_2(%arg0: i32, %arg1: i32) -> (i32, i32) {
    %c0_i32 = arith.constant 0 : i32
    %c0_i32_0 = arith.constant 0 : i32
    %c0_i32_1 = arith.constant 0 : i32
    return %c0_i32, %c0_i32_0 : i32, i32
  }
  func.func @transform_3(%arg0: i32, %arg1: i32) -> (i32, i32) {
    %c0_i32 = arith.constant 0 : i32
    %c0_i32_0 = arith.constant 0 : i32
    return %c0_i32, %arg1 : i32, i32
  }
  func.func @transform_4(%arg0: i32, %arg1: i32) -> (i32, i32) {
    %c0_i32 = arith.constant 0 : i32
    %c0_i32_0 = arith.constant 0 : i32
    return %c0_i32, %arg1 : i32, i32
  }
  func.func @transform_5(%arg0: i32, %arg1: i32) -> (i32, i32) {
    %c0_i32 = arith.constant 0 : i32
    return %arg0, %arg1 : i32, i32
  }
}

module attributes {stable_mosaic.version = 11 : i64} {
  func.func @_flash_kernel(%arg0: i32, %arg1: i32, %arg2: i32, %arg3: i32, %arg4: memref<1x1x8x8xbf16, #tpu.memory_space<vmem>>, %arg5: memref<1x1x8x8xbf16, #tpu.memory_space<vmem>>, %arg6: memref<1x1x8x8xbf16, #tpu.memory_space<vmem>>, %arg7: memref<1x1x8x8xbf16, #tpu.memory_space<vmem>>, %arg8: memref<8x1xf32, #tpu.memory_space<vmem>>, %arg9: memref<8x1xf32, #tpu.memory_space<vmem>>, %arg10: memref<8x8xf32, #tpu.memory_space<vmem>>) attributes {dimension_semantics = [#tpu.dimension_semantics<parallel>, #tpu.dimension_semantics<parallel>, #tpu.dimension_semantics<parallel>, #tpu.dimension_semantics<arbitrary>], iteration_bounds = array<i64: 2, 4, 1, 1>, scalar_prefetch = 0 : i64, scratch_operands = 3 : i64, tpu.core_type = #tpu.core_type<tc>, window_params = [{transform_indices = @transform_0, window_bounds = array<i64: 1, 1, 8, 8>}, {transform_indices = @transform_1, window_bounds = array<i64: 1, 1, 8, 8>}, {transform_indices = @transform_2, window_bounds = array<i64: 1, 1, 8, 8>}, {transform_indices = @transform_3, window_bounds = array<i64: 1, 1, 8, 8>}]} {
    %c0_i32 = arith.constant 0 : i32
    %0 = arith.cmpi eq, %arg3, %c0_i32 : i32
    %1 = arith.extui %0 : i1 to i32
    %c0_i32_0 = arith.constant 0 : i32
    %2 = arith.cmpi ne, %1, %c0_i32_0 : i32
    scf.if %2 {
      %cst = arith.constant -1.000000e+30 : f32
      %9 = vector.broadcast %cst : f32 to vector<8x1xf32>
      %c0 = arith.constant 0 : index
      %c0_4 = arith.constant 0 : index
      %10 = vector.load %arg8[%c0, %c0_4] : memref<8x1xf32, #tpu.memory_space<vmem>>, vector<8x1xf32>
      tpu.vector_store %arg8[%c0, %c0_4], %9 {strides = array<i32>} : memref<8x1xf32, #tpu.memory_space<vmem>>, vector<8x1xf32>,
      %cst_5 = arith.constant 0.000000e+00 : f32
      %11 = vector.broadcast %cst_5 : f32 to vector<8x1xf32>
      %c0_6 = arith.constant 0 : index
      %c0_7 = arith.constant 0 : index
      %12 = vector.load %arg9[%c0_6, %c0_7] : memref<8x1xf32, #tpu.memory_space<vmem>>, vector<8x1xf32>
      tpu.vector_store %arg9[%c0_6, %c0_7], %11 {strides = array<i32>} : memref<8x1xf32, #tpu.memory_space<vmem>>, vector<8x1xf32>,
      %cst_8 = arith.constant 0.000000e+00 : f32
      %13 = vector.broadcast %cst_8 : f32 to vector<8x8xf32>
      %c0_9 = arith.constant 0 : index
      %c0_10 = arith.constant 0 : index
      %14 = vector.load %arg10[%c0_9, %c0_10] : memref<8x8xf32, #tpu.memory_space<vmem>>, vector<8x8xf32>
      tpu.vector_store %arg10[%c0_9, %c0_10], %13 {strides = array<i32>} : memref<8x8xf32, #tpu.memory_space<vmem>>, vector<8x8xf32>,
    } else {
    }
    %3 = arith.cmpi sle, %arg3, %arg2 : i32
    %4 = arith.extui %3 : i1 to i32
    %c0_i32_1 = arith.constant 0 : i32
    %5 = arith.cmpi ne, %4, %c0_i32_1 : i32
    scf.if %5 {
      %c0 = arith.constant 0 : index
      %c0_4 = arith.constant 0 : index
      %c0_5 = arith.constant 0 : index
      %c0_6 = arith.constant 0 : index
      %9 = vector.load %arg4[%c0, %c0_4, %c0_5, %c0_6] : memref<1x1x8x8xbf16, #tpu.memory_space<vmem>>, vector<1x1x8x8xbf16>
      %10 = vector.shape_cast %9 : vector<1x1x8x8xbf16> to vector<8x8xbf16>
      %c0_7 = arith.constant 0 : index
      %c0_8 = arith.constant 0 : index
      %c0_9 = arith.constant 0 : index
      %c0_10 = arith.constant 0 : index
      %11 = vector.load %arg5[%c0_7, %c0_8, %c0_9, %c0_10] : memref<1x1x8x8xbf16, #tpu.memory_space<vmem>>, vector<1x1x8x8xbf16>
      %12 = vector.shape_cast %11 : vector<1x1x8x8xbf16> to vector<8x8xbf16>
      %c0_11 = arith.constant 0 : index
      %c0_12 = arith.constant 0 : index
      %c0_13 = arith.constant 0 : index
      %c0_14 = arith.constant 0 : index
      %13 = vector.load %arg6[%c0_11, %c0_12, %c0_13, %c0_14] : memref<1x1x8x8xbf16, #tpu.memory_space<vmem>>, vector<1x1x8x8xbf16>
      %14 = vector.shape_cast %13 : vector<1x1x8x8xbf16> to vector<8x8xbf16>
      "tpu.trace_start"() <{level = 10 : i32, message = "qd,kd->qk"}> : () -> ()
      %cst = arith.constant dense<0.000000e+00> : vector<8x8xf32>
      %15 = tpu.matmul %10, %12, %cst {dimension_numbers = #tpu.dot_dimension_numbers<[1], [1], [0], [0], [0, 0, 1, 0], [], []>} : vector<8x8xbf16>, vector<8x8xbf16>, vector<8x8xf32> -> vector<8x8xf32>
      "tpu.trace_stop"() : () -> ()
      %cst_15 = arith.constant 0.353553385 : f32
      %16 = vector.broadcast %cst_15 : f32 to vector<8x8xf32>
      %17 = arith.mulf %15, %16 : vector<8x8xf32>
      %c8_i32 = arith.constant 8 : i32
      %18 = arith.muli %arg2, %c8_i32 : i32
      %19 = tpu.iota {dimensions = array<i32: 0>} : vector<8x8xi32>
      %20 = vector.broadcast %18 : i32 to vector<8x8xi32>
      %21 = arith.addi %20, %19 : vector<8x8xi32>
      %c8_i32_16 = arith.constant 8 : i32
      %22 = arith.muli %arg3, %c8_i32_16 : i32
      %23 = tpu.iota {dimensions = array<i32: 1>} : vector<8x8xi32>
      %24 = vector.broadcast %22 : i32 to vector<8x8xi32>
      %25 = arith.addi %24, %23 : vector<8x8xi32>
      %26 = arith.cmpi sle, %25, %21 : vector<8x8xi32>
      %cst_17 = arith.constant -1.000000e+30 : f32
      %27 = vector.broadcast %cst_17 : f32 to vector<8x8xf32>
      %28 = arith.select %26, %17, %27 : vector<8x8xi1>, vector<8x8xf32>
      %c0_18 = arith.constant 0 : index
      %c0_19 = arith.constant 0 : index
      %29 = vector.load %arg8[%c0_18, %c0_19] : memref<8x1xf32, #tpu.memory_space<vmem>>, vector<8x1xf32>
      %cst_20 = arith.constant dense<0xFF800000> : vector<8xf32>
      %30 = vector.multi_reduction <maximumf>, %28, %cst_20 [1] : vector<8x8xf32> to vector<8xf32>
      %31 = vector.shape_cast %30 : vector<8xf32> to vector<8x1xf32>
      %32 = arith.maximumf %29, %31 : vector<8x1xf32>
      %33 = arith.subf %29, %32 : vector<8x1xf32>
      %34 = math.exp %33 : vector<8x1xf32>
      %35 = vector.broadcast %32 : vector<8x1xf32> to vector<8x8xf32>
      %36 = arith.subf %28, %35 : vector<8x8xf32>
      %37 = math.exp %36 : vector<8x8xf32>
      %c0_21 = arith.constant 0 : index
      %c0_22 = arith.constant 0 : index
      %38 = vector.load %arg9[%c0_21, %c0_22] : memref<8x1xf32, #tpu.memory_space<vmem>>, vector<8x1xf32>
      %39 = arith.mulf %34, %38 : vector<8x1xf32>
      %cst_23 = arith.constant dense<0.000000e+00> : vector<8xf32>
      %40 = vector.multi_reduction <add>, %37, %cst_23 [1] : vector<8x8xf32> to vector<8xf32>
      %41 = vector.shape_cast %40 : vector<8xf32> to vector<8x1xf32>
      %42 = arith.addf %39, %41 : vector<8x1xf32>
      %c0_24 = arith.constant 0 : index
      %c0_25 = arith.constant 0 : index
      %43 = vector.load %arg9[%c0_24, %c0_25] : memref<8x1xf32, #tpu.memory_space<vmem>>, vector<8x1xf32>
      tpu.vector_store %arg9[%c0_24, %c0_25], %42 {strides = array<i32>} : memref<8x1xf32, #tpu.memory_space<vmem>>, vector<8x1xf32>,
      %c0_26 = arith.constant 0 : index
      %c0_27 = arith.constant 0 : index
      %44 = vector.load %arg10[%c0_26, %c0_27] : memref<8x8xf32, #tpu.memory_space<vmem>>, vector<8x8xf32>
      %45 = vector.broadcast %34 : vector<8x1xf32> to vector<8x8xf32>
      %46 = arith.mulf %45, %44 : vector<8x8xf32>
      %47 = arith.truncf %37 : vector<8x8xf32> to vector<8x8xbf16>
      %cst_28 = arith.constant dense<0.000000e+00> : vector<8x8xf32>
      %48 = tpu.matmul %47, %14, %cst_28 {dimension_numbers = #tpu.dot_dimension_numbers<[1], [0], [0], [1], [0, 0, 1, 1], [], []>} : vector<8x8xbf16>, vector<8x8xbf16>, vector<8x8xf32> -> vector<8x8xf32>
      %49 = arith.addf %46, %48 : vector<8x8xf32>
      %c0_29 = arith.constant 0 : index
      %c0_30 = arith.constant 0 : index
      %50 = vector.load %arg10[%c0_29, %c0_30] : memref<8x8xf32, #tpu.memory_space<vmem>>, vector<8x8xf32>
      tpu.vector_store %arg10[%c0_29, %c0_30], %49 {strides = array<i32>} : memref<8x8xf32, #tpu.memory_space<vmem>>, vector<8x8xf32>,
      %c0_31 = arith.constant 0 : index
      %c0_32 = arith.constant 0 : index
      %51 = vector.load %arg8[%c0_31, %c0_32] : memref<8x1xf32, #tpu.memory_space<vmem>>, vector<8x1xf32>
      tpu.vector_store %arg8[%c0_31, %c0_32], %32 {strides = array<i32>} : memref<8x1xf32, #tpu.memory_space<vmem>>, vector<8x1xf32>,
    } else {
    }
    %c0_i32_2 = arith.constant 0 : i32
    %6 = arith.cmpi eq, %arg3, %c0_i32_2 : i32
    %7 = arith.extui %6 : i1 to i32
    %c0_i32_3 = arith.constant 0 : i32
    %8 = arith.cmpi ne, %7, %c0_i32_3 : i32
    scf.if %8 {
      %c0 = arith.constant 0 : index
      %c0_4 = arith.constant 0 : index
      %9 = vector.load %arg10[%c0, %c0_4] : memref<8x8xf32, #tpu.memory_space<vmem>>, vector<8x8xf32>
      %c0_5 = arith.constant 0 : index
      %c0_6 = arith.constant 0 : index
      %10 = vector.load %arg9[%c0_5, %c0_6] : memref<8x1xf32, #tpu.memory_space<vmem>>, vector<8x1xf32>
      %11 = vector.broadcast %10 : vector<8x1xf32> to vector<8x8xf32>
      %12 = arith.divf %9, %11 : vector<8x8xf32>
      %13 = arith.truncf %12 : vector<8x8xf32> to vector<8x8xbf16>
      %c0_7 = arith.constant 0 : index
      %c0_8 = arith.constant 0 : index
      %c0_9 = arith.constant 0 : index
      %c0_10 = arith.constant 0 : index
      %14 = vector.load %arg7[%c0_7, %c0_8, %c0_9, %c0_10] : memref<1x1x8x8xbf16, #tpu.memory_space<vmem>>, vector<1x1x8x8xbf16>
      %15 = vector.shape_cast %14 : vector<1x1x8x8xbf16> to vector<8x8xbf16>
      %16 = vector.shape_cast %13 : vector<8x8xbf16> to vector<1x1x8x8xbf16>
      tpu.vector_store %arg7[%c0_7, %c0_8, %c0_9, %c0_10], %16 {strides = array<i32>} : memref<1x1x8x8xbf16, #tpu.memory_space<vmem>>, vector<1x1x8x8xbf16>,
    } else {
    }
    return
  }
  func.func @transform_0(%arg0: i32, %arg1: i32, %arg2: i32, %arg3: i32) -> (i32, i32, i32, i32) {
    %c0_i32 = arith.constant 0 : i32
    %c0_i32_0 = arith.constant 0 : i32
    return %arg0, %arg1, %arg2, %c0_i32 : i32, i32, i32, i32
  }
  func.func @transform_1(%arg0: i32, %arg1: i32, %arg2: i32, %arg3: i32) -> (i32, i32, i32, i32) {
    %0 = arith.minsi %arg3, %arg2 : i32
    %c0_i32 = arith.constant 0 : i32
    %c0_i32_0 = arith.constant 0 : i32
    return %arg0, %arg1, %0, %c0_i32 : i32, i32, i32, i32
  }
  func.func @transform_2(%arg0: i32, %arg1: i32, %arg2: i32, %arg3: i32) -> (i32, i32, i32, i32) {
    %0 = arith.minsi %arg3, %arg2 : i32
    %c0_i32 = arith.constant 0 : i32
    %c0_i32_0 = arith.constant 0 : i32
    return %arg0, %arg1, %0, %c0_i32 : i32, i32, i32, i32
  }
  func.func @transform_3(%arg0: i32, %arg1: i32, %arg2: i32, %arg3: i32) -> (i32, i32, i32, i32) {
    %c0_i32 = arith.constant 0 : i32
    %c0_i32_0 = arith.constant 0 : i32
    return %arg0, %arg1, %arg2, %c0_i32 : i32, i32, i32, i32
  }
}

module attributes {stable_mosaic.version = 11 : i64} {
  func.func @_matmul_res_kernel(%arg0: i32, %arg1: i32, %arg2: i32, %arg3: memref<16x32xbf16, #tpu.memory_space<vmem>>, %arg4: memref<32x128xbf16, #tpu.memory_space<vmem>>, %arg5: memref<1x128xf32, #tpu.memory_space<vmem>>, %arg6: memref<16x128xbf16, #tpu.memory_space<vmem>>, %arg7: memref<16x128xbf16, #tpu.memory_space<vmem>>, %arg8: memref<16x128xf32, #tpu.memory_space<vmem>>) attributes {dimension_semantics = [#tpu.dimension_semantics<parallel>, #tpu.dimension_semantics<parallel>, #tpu.dimension_semantics<arbitrary>], iteration_bounds = array<i64: 1, 1, 1>, scalar_prefetch = 0 : i64, scratch_operands = 1 : i64, tpu.core_type = #tpu.core_type<tc>, window_params = [{transform_indices = @transform_0, window_bounds = array<i64: 16, 32>}, {transform_indices = @transform_1, window_bounds = array<i64: 32, 128>}, {transform_indices = @transform_2, window_bounds = array<i64: 1, 128>}, {transform_indices = @transform_3, window_bounds = array<i64: 16, 128>}, {transform_indices = @transform_4, window_bounds = array<i64: 16, 128>}]} {
    %c0_i32 = arith.constant 0 : i32
    %0 = arith.cmpi eq, %arg2, %c0_i32 : i32
    %1 = arith.extui %0 : i1 to i32
    %c0_i32_0 = arith.constant 0 : i32
    %2 = arith.cmpi ne, %1, %c0_i32_0 : i32
    scf.if %2 {
      %cst_10 = arith.constant 0.000000e+00 : f32
      %12 = vector.broadcast %cst_10 : f32 to vector<16x128xf32>
      %c0_11 = arith.constant 0 : index
      %c0_12 = arith.constant 0 : index
      %13 = vector.load %arg8[%c0_11, %c0_12] : memref<16x128xf32, #tpu.memory_space<vmem>>, vector<16x128xf32>
      tpu.vector_store %arg8[%c0_11, %c0_12], %12 {strides = array<i32>} : memref<16x128xf32, #tpu.memory_space<vmem>>, vector<16x128xf32>,
    } else {
    }
    %c0 = arith.constant 0 : index
    %c0_1 = arith.constant 0 : index
    %3 = vector.load %arg8[%c0, %c0_1] : memref<16x128xf32, #tpu.memory_space<vmem>>, vector<16x128xf32>
    %c0_2 = arith.constant 0 : index
    %c0_3 = arith.constant 0 : index
    %4 = vector.load %arg3[%c0_2, %c0_3] : memref<16x32xbf16, #tpu.memory_space<vmem>>, vector<16x32xbf16>
    %c0_4 = arith.constant 0 : index
    %c0_5 = arith.constant 0 : index
    %5 = vector.load %arg4[%c0_4, %c0_5] : memref<32x128xbf16, #tpu.memory_space<vmem>>, vector<32x128xbf16>
    %cst = arith.constant dense<0.000000e+00> : vector<16x128xf32>
    %6 = tpu.matmul %4, %5, %cst {dimension_numbers = #tpu.dot_dimension_numbers<[1], [0], [0], [1], [0, 0, 1, 1], [], []>} : vector<16x32xbf16>, vector<32x128xbf16>, vector<16x128xf32> -> vector<16x128xf32>
    %7 = arith.addf %3, %6 : vector<16x128xf32>
    %c0_6 = arith.constant 0 : index
    %c0_7 = arith.constant 0 : index
    %8 = vector.load %arg8[%c0_6, %c0_7] : memref<16x128xf32, #tpu.memory_space<vmem>>, vector<16x128xf32>
    tpu.vector_store %arg8[%c0_6, %c0_7], %7 {strides = array<i32>} : memref<16x128xf32, #tpu.memory_space<vmem>>, vector<16x128xf32>,
    %c0_i32_8 = arith.constant 0 : i32
    %9 = arith.cmpi eq, %arg2, %c0_i32_8 : i32
    %10 = arith.extui %9 : i1 to i32
    %c0_i32_9 = arith.constant 0 : i32
    %11 = arith.cmpi ne, %10, %c0_i32_9 : i32
    scf.if %11 {
      %c0_10 = arith.constant 0 : index
      %c0_11 = arith.constant 0 : index
      %12 = vector.load %arg8[%c0_10, %c0_11] : memref<16x128xf32, #tpu.memory_space<vmem>>, vector<16x128xf32>
      %c0_12 = arith.constant 0 : index
      %c0_13 = arith.constant 0 : index
      %13 = vector.load %arg5[%c0_12, %c0_13] : memref<1x128xf32, #tpu.memory_space<vmem>>, vector<1x128xf32>
      %14 = vector.broadcast %13 : vector<1x128xf32> to vector<16x128xf32>
      %15 = arith.addf %12, %14 : vector<16x128xf32>
      %c0_14 = arith.constant 0 : index
      %c0_15 = arith.constant 0 : index
      %16 = vector.load %arg6[%c0_14, %c0_15] : memref<16x128xbf16, #tpu.memory_space<vmem>>, vector<16x128xbf16>
      %17 = arith.extf %16 : vector<16x128xbf16> to vector<16x128xf32>
      %18 = arith.addf %15, %17 : vector<16x128xf32>
      %19 = arith.truncf %18 : vector<16x128xf32> to vector<16x128xbf16>
      %c0_16 = arith.constant 0 : index
      %c0_17 = arith.constant 0 : index
      %20 = vector.load %arg7[%c0_16, %c0_17] : memref<16x128xbf16, #tpu.memory_space<vmem>>, vector<16x128xbf16>
      tpu.vector_store %arg7[%c0_16, %c0_17], %19 {strides = array<i32>} : memref<16x128xbf16, #tpu.memory_space<vmem>>, vector<16x128xbf16>,
    } else {
    }
    return
  }
  func.func @transform_0(%arg0: i32, %arg1: i32, %arg2: i32) -> (i32, i32) {
    %c0_i32 = arith.constant 0 : i32
    return %arg0, %arg2 : i32, i32
  }
  func.func @transform_1(%arg0: i32, %arg1: i32, %arg2: i32) -> (i32, i32) {
    %c0_i32 = arith.constant 0 : i32
    return %arg2, %arg1 : i32, i32
  }
  func.func @transform_2(%arg0: i32, %arg1: i32, %arg2: i32) -> (i32, i32) {
    %c0_i32 = arith.constant 0 : i32
    %c0_i32_0 = arith.constant 0 : i32
    return %c0_i32, %arg1 : i32, i32
  }
  func.func @transform_3(%arg0: i32, %arg1: i32, %arg2: i32) -> (i32, i32) {
    %c0_i32 = arith.constant 0 : i32
    return %arg0, %arg1 : i32, i32
  }
  func.func @transform_4(%arg0: i32, %arg1: i32, %arg2: i32) -> (i32, i32) {
    %c0_i32 = arith.constant 0 : i32
    return %arg0, %arg1 : i32, i32
  }
}

module attributes {stable_mosaic.version = 11 : i64} {
  func.func @_layernorm_kernel(%arg0: i32, %arg1: memref<16x128xbf16, #tpu.memory_space<vmem>>, %arg2: memref<1x128xf32, #tpu.memory_space<vmem>>, %arg3: memref<1x128xf32, #tpu.memory_space<vmem>>, %arg4: memref<16x128xbf16, #tpu.memory_space<vmem>>) attributes {dimension_semantics = [#tpu.dimension_semantics<parallel>], iteration_bounds = array<i64: 1>, scalar_prefetch = 0 : i64, scratch_operands = 0 : i64, tpu.core_type = #tpu.core_type<tc>, window_params = [{transform_indices = @transform_0, window_bounds = array<i64: 16, 128>}, {pipeline_mode = #tpu.pipeline_mode<synchronous>, transform_indices = @transform_1, window_bounds = array<i64: 1, 128>}, {pipeline_mode = #tpu.pipeline_mode<synchronous>, transform_indices = @transform_2, window_bounds = array<i64: 1, 128>}, {transform_indices = @transform_3, window_bounds = array<i64: 16, 128>}]} {
    %c0 = arith.constant 0 : index
    %c0_0 = arith.constant 0 : index
    %0 = vector.load %arg1[%c0, %c0_0] : memref<16x128xbf16, #tpu.memory_space<vmem>>, vector<16x128xbf16>
    %1 = arith.extf %0 : vector<16x128xbf16> to vector<16x128xf32>
    %cst = arith.constant dense<0.000000e+00> : vector<16xf32>
    %2 = vector.multi_reduction <add>, %1, %cst [1] : vector<16x128xf32> to vector<16xf32>
    %3 = vector.shape_cast %2 : vector<16xf32> to vector<16x1xf32>
    %cst_1 = arith.constant 3.125000e-02 : f32
    %4 = vector.broadcast %cst_1 : f32 to vector<16x1xf32>
    %5 = arith.mulf %3, %4 : vector<16x1xf32>
    %6 = vector.broadcast %5 : vector<16x1xf32> to vector<16x128xf32>
    %7 = arith.subf %1, %6 : vector<16x128xf32>
    %8 = arith.mulf %7, %7 : vector<16x128xf32>
    %cst_2 = arith.constant dense<0.000000e+00> : vector<16xf32>
    %9 = vector.multi_reduction <add>, %8, %cst_2 [1] : vector<16x128xf32> to vector<16xf32>
    %10 = vector.shape_cast %9 : vector<16xf32> to vector<16x1xf32>
    %cst_3 = arith.constant 3.125000e-02 : f32
    %11 = vector.broadcast %cst_3 : f32 to vector<16x1xf32>
    %12 = arith.mulf %10, %11 : vector<16x1xf32>
    %cst_4 = arith.constant 9.99999974E-6 : f32
    %13 = vector.broadcast %cst_4 : f32 to vector<16x1xf32>
    %14 = arith.addf %12, %13 : vector<16x1xf32>
    %15 = math.rsqrt %14 : vector<16x1xf32>
    %16 = vector.broadcast %15 : vector<16x1xf32> to vector<16x128xf32>
    %17 = arith.mulf %7, %16 : vector<16x128xf32>
    %c0_5 = arith.constant 0 : index
    %c0_6 = arith.constant 0 : index
    %18 = vector.load %arg2[%c0_5, %c0_6] : memref<1x128xf32, #tpu.memory_space<vmem>>, vector<1x128xf32>
    %19 = vector.broadcast %18 : vector<1x128xf32> to vector<16x128xf32>
    %20 = arith.mulf %17, %19 : vector<16x128xf32>
    %c0_7 = arith.constant 0 : index
    %c0_8 = arith.constant 0 : index
    %21 = vector.load %arg3[%c0_7, %c0_8] : memref<1x128xf32, #tpu.memory_space<vmem>>, vector<1x128xf32>
    %22 = vector.broadcast %21 : vector<1x128xf32> to vector<16x128xf32>
    %23 = arith.addf %20, %22 : vector<16x128xf32>
    %24 = arith.truncf %23 : vector<16x128xf32> to vector<16x128xbf16>
    %c0_9 = arith.constant 0 : index
    %c0_10 = arith.constant 0 : index
    %25 = vector.load %arg4[%c0_9, %c0_10] : memref<16x128xbf16, #tpu.memory_space<vmem>>, vector<16x128xbf16>
    tpu.vector_store %arg4[%c0_9, %c0_10], %24 {strides = array<i32>} : memref<16x128xbf16, #tpu.memory_space<vmem>>, vector<16x128xbf16>,
    return
  }
  func.func @transform_0(%arg0: i32) -> (i32, i32) {
    %c0_i32 = arith.constant 0 : i32
    %c0_i32_0 = arith.constant 0 : i32
    return %arg0, %c0_i32 : i32, i32
  }
  func.func @transform_1(%arg0: i32) -> (i32, i32) {
    %c0_i32 = arith.constant 0 : i32
    %c0_i32_0 = arith.constant 0 : i32
    %c0_i32_1 = arith.constant 0 : i32
    return %c0_i32, %c0_i32_0 : i32, i32
  }
  func.func @transform_2(%arg0: i32) -> (i32, i32) {
    %c0_i32 = arith.constant 0 : i32
    %c0_i32_0 = arith.constant 0 : i32
    %c0_i32_1 = arith.constant 0 : i32
    return %c0_i32, %c0_i32_0 : i32, i32
  }
  func.func @transform_3(%arg0: i32) -> (i32, i32) {
    %c0_i32 = arith.constant 0 : i32
    %c0_i32_0 = arith.constant 0 : i32
    return %arg0, %c0_i32 : i32, i32
  }
}

module attributes {stable_mosaic.version = 11 : i64} {
  func.func @_matmul_kernel(%arg0: i32, %arg1: i32, %arg2: i32, %arg3: memref<16x128xbf16, #tpu.memory_space<vmem>>, %arg4: memref<128x128xbf16, #tpu.memory_space<vmem>>, %arg5: memref<1x128xf32, #tpu.memory_space<vmem>>, %arg6: memref<16x128xf32, #tpu.memory_space<vmem>>, %arg7: memref<16x128xf32, #tpu.memory_space<vmem>>) attributes {dimension_semantics = [#tpu.dimension_semantics<parallel>, #tpu.dimension_semantics<parallel>, #tpu.dimension_semantics<arbitrary>], iteration_bounds = array<i64: 1, 1, 1>, scalar_prefetch = 0 : i64, scratch_operands = 1 : i64, tpu.core_type = #tpu.core_type<tc>, window_params = [{transform_indices = @transform_0, window_bounds = array<i64: 16, 128>}, {transform_indices = @transform_1, window_bounds = array<i64: 128, 128>}, {transform_indices = @transform_2, window_bounds = array<i64: 1, 128>}, {transform_indices = @transform_3, window_bounds = array<i64: 16, 128>}]} {
    %c0_i32 = arith.constant 0 : i32
    %0 = arith.cmpi eq, %arg2, %c0_i32 : i32
    %1 = arith.extui %0 : i1 to i32
    %c0_i32_0 = arith.constant 0 : i32
    %2 = arith.cmpi ne, %1, %c0_i32_0 : i32
    scf.if %2 {
      %cst_10 = arith.constant 0.000000e+00 : f32
      %12 = vector.broadcast %cst_10 : f32 to vector<16x128xf32>
      %c0_11 = arith.constant 0 : index
      %c0_12 = arith.constant 0 : index
      %13 = vector.load %arg7[%c0_11, %c0_12] : memref<16x128xf32, #tpu.memory_space<vmem>>, vector<16x128xf32>
      tpu.vector_store %arg7[%c0_11, %c0_12], %12 {strides = array<i32>} : memref<16x128xf32, #tpu.memory_space<vmem>>, vector<16x128xf32>,
    } else {
    }
    %c0 = arith.constant 0 : index
    %c0_1 = arith.constant 0 : index
    %3 = vector.load %arg7[%c0, %c0_1] : memref<16x128xf32, #tpu.memory_space<vmem>>, vector<16x128xf32>
    %c0_2 = arith.constant 0 : index
    %c0_3 = arith.constant 0 : index
    %4 = vector.load %arg3[%c0_2, %c0_3] : memref<16x128xbf16, #tpu.memory_space<vmem>>, vector<16x128xbf16>
    %c0_4 = arith.constant 0 : index
    %c0_5 = arith.constant 0 : index
    %5 = vector.load %arg4[%c0_4, %c0_5] : memref<128x128xbf16, #tpu.memory_space<vmem>>, vector<128x128xbf16>
    %cst = arith.constant dense<0.000000e+00> : vector<16x128xf32>
    %6 = tpu.matmul %4, %5, %cst {dimension_numbers = #tpu.dot_dimension_numbers<[1], [0], [0], [1], [0, 0, 1, 1], [], []>} : vector<16x128xbf16>, vector<128x128xbf16>, vector<16x128xf32> -> vector<16x128xf32>
    %7 = arith.addf %3, %6 : vector<16x128xf32>
    %c0_6 = arith.constant 0 : index
    %c0_7 = arith.constant 0 : index
    %8 = vector.load %arg7[%c0_6, %c0_7] : memref<16x128xf32, #tpu.memory_space<vmem>>, vector<16x128xf32>
    tpu.vector_store %arg7[%c0_6, %c0_7], %7 {strides = array<i32>} : memref<16x128xf32, #tpu.memory_space<vmem>>, vector<16x128xf32>,
    %c0_i32_8 = arith.constant 0 : i32
    %9 = arith.cmpi eq, %arg2, %c0_i32_8 : i32
    %10 = arith.extui %9 : i1 to i32
    %c0_i32_9 = arith.constant 0 : i32
    %11 = arith.cmpi ne, %10, %c0_i32_9 : i32
    scf.if %11 {
      %c0_10 = arith.constant 0 : index
      %c0_11 = arith.constant 0 : index
      %12 = vector.load %arg7[%c0_10, %c0_11] : memref<16x128xf32, #tpu.memory_space<vmem>>, vector<16x128xf32>
      %c0_12 = arith.constant 0 : index
      %c0_13 = arith.constant 0 : index
      %13 = vector.load %arg5[%c0_12, %c0_13] : memref<1x128xf32, #tpu.memory_space<vmem>>, vector<1x128xf32>
      %14 = vector.broadcast %13 : vector<1x128xf32> to vector<16x128xf32>
      %15 = arith.addf %12, %14 : vector<16x128xf32>
      %c0_14 = arith.constant 0 : index
      %c0_15 = arith.constant 0 : index
      %16 = vector.load %arg6[%c0_14, %c0_15] : memref<16x128xf32, #tpu.memory_space<vmem>>, vector<16x128xf32>
      tpu.vector_store %arg6[%c0_14, %c0_15], %15 {strides = array<i32>} : memref<16x128xf32, #tpu.memory_space<vmem>>, vector<16x128xf32>,
    } else {
    }
    return
  }
  func.func @transform_0(%arg0: i32, %arg1: i32, %arg2: i32) -> (i32, i32) {
    %c0_i32 = arith.constant 0 : i32
    return %arg0, %arg2 : i32, i32
  }
  func.func @transform_1(%arg0: i32, %arg1: i32, %arg2: i32) -> (i32, i32) {
    %c0_i32 = arith.constant 0 : i32
    return %arg2, %arg1 : i32, i32
  }
  func.func @transform_2(%arg0: i32, %arg1: i32, %arg2: i32) -> (i32, i32) {
    %c0_i32 = arith.constant 0 : i32
    %c0_i32_0 = arith.constant 0 : i32
    return %c0_i32, %arg1 : i32, i32
  }
  func.func @transform_3(%arg0: i32, %arg1: i32, %arg2: i32) -> (i32, i32) {
    %c0_i32 = arith.constant 0 : i32
    return %arg0, %arg1 : i32, i32
  }
}

module attributes {stable_mosaic.version = 11 : i64} {
  func.func @_moe_ffn_kernel(%arg0: i32, %arg1: i32, %arg2: memref<3xi32, #tpu.memory_space<smem>>, %arg3: memref<16x128xbf16, #tpu.memory_space<vmem>>, %arg4: memref<16x1xf32, #tpu.memory_space<vmem>>, %arg5: memref<1x128x128xbf16, #tpu.memory_space<vmem>>, %arg6: memref<1x1x128xf32, #tpu.memory_space<vmem>>, %arg7: memref<1x128x128xbf16, #tpu.memory_space<vmem>>, %arg8: memref<1x1x128xf32, #tpu.memory_space<vmem>>, %arg9: memref<16x128xbf16, #tpu.memory_space<vmem>>, %arg10: memref<16x128xf32, #tpu.memory_space<vmem>>) attributes {dimension_semantics = [#tpu.dimension_semantics<parallel>, #tpu.dimension_semantics<arbitrary>], iteration_bounds = array<i64: 3, 1>, scalar_prefetch = 1 : i64, scratch_operands = 1 : i64, tpu.core_type = #tpu.core_type<tc>, window_params = [{transform_indices = @transform_0, window_bounds = array<i64: 16, 128>}, {transform_indices = @transform_1, window_bounds = array<i64: 16, 1>}, {transform_indices = @transform_2, window_bounds = array<i64: 1, 128, 128>}, {transform_indices = @transform_3, window_bounds = array<i64: 1, 1, 128>}, {transform_indices = @transform_4, window_bounds = array<i64: 1, 128, 128>}, {transform_indices = @transform_5, window_bounds = array<i64: 1, 1, 128>}, {transform_indices = @transform_6, window_bounds = array<i64: 16, 128>}]} {
    %c0_i32 = arith.constant 0 : i32
    %0 = arith.cmpi eq, %arg1, %c0_i32 : i32
    %1 = arith.extui %0 : i1 to i32
    %c0_i32_0 = arith.constant 0 : i32
    %2 = arith.cmpi ne, %1, %c0_i32_0 : i32
    scf.if %2 {
      %cst_33 = arith.constant 0.000000e+00 : f32
      %61 = vector.broadcast %cst_33 : f32 to vector<16x128xf32>
      %c0_34 = arith.constant 0 : index
      %c0_35 = arith.constant 0 : index
      %62 = vector.load %arg10[%c0_34, %c0_35] : memref<16x128xf32, #tpu.memory_space<vmem>>, vector<16x128xf32>
      tpu.vector_store %arg10[%c0_34, %c0_35], %61 {strides = array<i32>} : memref<16x128xf32, #tpu.memory_space<vmem>>, vector<16x128xf32>,
    } else {
    }
    %c0 = arith.constant 0 : index
    %c0_1 = arith.constant 0 : index
    %3 = vector.load %arg3[%c0, %c0_1] : memref<16x128xbf16, #tpu.memory_space<vmem>>, vector<16x128xbf16>
    %c0_2 = arith.constant 0 : index
    %c0_3 = arith.constant 0 : index
    %c0_4 = arith.constant 0 : index
    %4 = vector.load %arg5[%c0_2, %c0_3, %c0_4] : memref<1x128x128xbf16, #tpu.memory_space<vmem>>, vector<1x128x128xbf16>
    %5 = vector.shape_cast %4 : vector<1x128x128xbf16> to vector<128x128xbf16>
    %cst = arith.constant dense<0.000000e+00> : vector<16x128xf32>
    %6 = tpu.matmul %3, %5, %cst {dimension_numbers = #tpu.dot_dimension_numbers<[1], [0], [0], [1], [0, 0, 1, 1], [], []>} : vector<16x128xbf16>, vector<128x128xbf16>, vector<16x128xf32> -> vector<16x128xf32>
    %c0_5 = arith.constant 0 : index
    %c0_6 = arith.constant 0 : index
    %c0_7 = arith.constant 0 : index
    %7 = vector.load %arg6[%c0_5, %c0_6, %c0_7] : memref<1x1x128xf32, #tpu.memory_space<vmem>>, vector<1x1x128xf32>
    %8 = vector.shape_cast %7 : vector<1x1x128xf32> to vector<1x128xf32>
    %9 = vector.broadcast %8 : vector<1x128xf32> to vector<16x128xf32>
    %10 = arith.addf %6, %9 : vector<16x128xf32>
    %cst_8 = arith.constant 5.000000e-01 : f32
    %11 = vector.broadcast %cst_8 : f32 to vector<16x128xf32>
    %12 = arith.mulf %11, %10 : vector<16x128xf32>
    %cst_9 = arith.constant 0.707106769 : f32
    %13 = vector.broadcast %cst_9 : f32 to vector<16x128xf32>
    %14 = arith.mulf %10, %13 : vector<16x128xf32>
    %15 = math.absf %14 : vector<16x128xf32>
    %cst_10 = arith.constant 0.327591091 : f32
    %16 = vector.broadcast %cst_10 : f32 to vector<16x128xf32>
    %17 = arith.mulf %16, %15 : vector<16x128xf32>
    %cst_11 = arith.constant 1.000000e+00 : f32
    %18 = vector.broadcast %cst_11 : f32 to vector<16x128xf32>
    %19 = arith.addf %18, %17 : vector<16x128xf32>
    %cst_12 = arith.constant 1.000000e+00 : f32
    %20 = vector.broadcast %cst_12 : f32 to vector<16x128xf32>
    %21 = arith.divf %20, %19 : vector<16x128xf32>
    %cst_13 = arith.constant 1.06140542 : f32
    %22 = vector.broadcast %cst_13 : f32 to vector<16x128xf32>
    %23 = arith.mulf %22, %21 : vector<16x128xf32>
    %cst_14 = arith.constant -1.45315206 : f32
    %24 = vector.broadcast %cst_14 : f32 to vector<16x128xf32>
    %25 = arith.addf %23, %24 : vector<16x128xf32>
    %26 = arith.mulf %25, %21 : vector<16x128xf32>
    %cst_15 = arith.constant 1.42141378 : f32
    %27 = vector.broadcast %cst_15 : f32 to vector<16x128xf32>
    %28 = arith.addf %26, %27 : vector<16x128xf32>
    %29 = arith.mulf %28, %21 : vector<16x128xf32>
    %cst_16 = arith.constant -0.284496725 : f32
    %30 = vector.broadcast %cst_16 : f32 to vector<16x128xf32>
    %31 = arith.addf %29, %30 : vector<16x128xf32>
    %32 = arith.mulf %31, %21 : vector<16x128xf32>
    %cst_17 = arith.constant 0.254829586 : f32
    %33 = vector.broadcast %cst_17 : f32 to vector<16x128xf32>
    %34 = arith.addf %32, %33 : vector<16x128xf32>
    %35 = arith.mulf %34, %21 : vector<16x128xf32>
    %cst_18 = arith.constant 0.000000e+00 : f32
    %36 = vector.broadcast %cst_18 : f32 to vector<16x128xf32>
    %37 = arith.subf %36, %15 : vector<16x128xf32>
    %38 = arith.mulf %37, %15 : vector<16x128xf32>
    %39 = math.exp %38 : vector<16x128xf32>
    %40 = arith.mulf %35, %39 : vector<16x128xf32>
    %cst_19 = arith.constant 1.000000e+00 : f32
    %41 = vector.broadcast %cst_19 : f32 to vector<16x128xf32>
    %42 = arith.subf %41, %40 : vector<16x128xf32>
    %cst_20 = arith.constant 0.000000e+00 : f32
    %43 = vector.broadcast %cst_20 : f32 to vector<16x128xf32>
    %44 = arith.cmpf oge, %14, %43 : vector<16x128xf32>
    %cst_21 = arith.constant 0.000000e+00 : f32
    %45 = vector.broadcast %cst_21 : f32 to vector<16x128xf32>
    %46 = arith.subf %45, %42 : vector<16x128xf32>
    %47 = arith.select %44, %42, %46 : vector<16x128xi1>, vector<16x128xf32>
    %cst_22 = arith.constant 1.000000e+00 : f32
    %48 = vector.broadcast %cst_22 : f32 to vector<16x128xf32>
    %49 = arith.addf %48, %47 : vector<16x128xf32>
    %50 = arith.mulf %12, %49 : vector<16x128xf32>
    %c0_23 = arith.constant 0 : index
    %c0_24 = arith.constant 0 : index
    %51 = vector.load %arg10[%c0_23, %c0_24] : memref<16x128xf32, #tpu.memory_space<vmem>>, vector<16x128xf32>
    %52 = arith.truncf %50 : vector<16x128xf32> to vector<16x128xbf16>
    %c0_25 = arith.constant 0 : index
    %c0_26 = arith.constant 0 : index
    %c0_27 = arith.constant 0 : index
    %53 = vector.load %arg7[%c0_25, %c0_26, %c0_27] : memref<1x128x128xbf16, #tpu.memory_space<vmem>>, vector<1x128x128xbf16>
    %54 = vector.shape_cast %53 : vector<1x128x128xbf16> to vector<128x128xbf16>
    %cst_28 = arith.constant dense<0.000000e+00> : vector<16x128xf32>
    %55 = tpu.matmul %52, %54, %cst_28 {dimension_numbers = #tpu.dot_dimension_numbers<[1], [0], [0], [1], [0, 0, 1, 1], [], []>} : vector<16x128xbf16>, vector<128x128xbf16>, vector<16x128xf32> -> vector<16x128xf32>
    %56 = arith.addf %51, %55 : vector<16x128xf32>
    %c0_29 = arith.constant 0 : index
    %c0_30 = arith.constant 0 : index
    %57 = vector.load %arg10[%c0_29, %c0_30] : memref<16x128xf32, #tpu.memory_space<vmem>>, vector<16x128xf32>
    tpu.vector_store %arg10[%c0_29, %c0_30], %56 {strides = array<i32>} : memref<16x128xf32, #tpu.memory_space<vmem>>, vector<16x128xf32>,
    %c0_i32_31 = arith.constant 0 : i32
    %58 = arith.cmpi eq, %arg1, %c0_i32_31 : i32
    %59 = arith.extui %58 : i1 to i32
    %c0_i32_32 = arith.constant 0 : i32
    %60 = arith.cmpi ne, %59, %c0_i32_32 : i32
    scf.if %60 {
      %c0_33 = arith.constant 0 : index
      %c0_34 = arith.constant 0 : index
      %61 = vector.load %arg10[%c0_33, %c0_34] : memref<16x128xf32, #tpu.memory_space<vmem>>, vector<16x128xf32>
      %c0_35 = arith.constant 0 : index
      %c0_36 = arith.constant 0 : index
      %c0_37 = arith.constant 0 : index
      %62 = vector.load %arg8[%c0_35, %c0_36, %c0_37] : memref<1x1x128xf32, #tpu.memory_space<vmem>>, vector<1x1x128xf32>
      %63 = vector.shape_cast %62 : vector<1x1x128xf32> to vector<1x128xf32>
      %64 = vector.broadcast %63 : vector<1x128xf32> to vector<16x128xf32>
      %65 = arith.addf %61, %64 : vector<16x128xf32>
      %c0_38 = arith.constant 0 : index
      %c0_39 = arith.constant 0 : index
      %66 = vector.load %arg4[%c0_38, %c0_39] : memref<16x1xf32, #tpu.memory_space<vmem>>, vector<16x1xf32>
      %67 = vector.broadcast %66 : vector<16x1xf32> to vector<16x128xf32>
      %68 = arith.mulf %65, %67 : vector<16x128xf32>
      %69 = arith.truncf %68 : vector<16x128xf32> to vector<16x128xbf16>
      %c0_40 = arith.constant 0 : index
      %c0_41 = arith.constant 0 : index
      %70 = vector.load %arg9[%c0_40, %c0_41] : memref<16x128xbf16, #tpu.memory_space<vmem>>, vector<16x128xbf16>
      tpu.vector_store %arg9[%c0_40, %c0_41], %69 {strides = array<i32>} : memref<16x128xbf16, #tpu.memory_space<vmem>>, vector<16x128xbf16>,
    } else {
    }
    return
  }
  func.func @transform_0(%arg0: i32, %arg1: i32, %arg2: memref<3xi32, #tpu.memory_space<smem>>) -> (i32, i32) {
    %c0_i32 = arith.constant 0 : i32
    %c0_i32_0 = arith.constant 0 : i32
    return %arg0, %c0_i32 : i32, i32
  }
  func.func @transform_1(%arg0: i32, %arg1: i32, %arg2: memref<3xi32, #tpu.memory_space<smem>>) -> (i32, i32) {
    %c0_i32 = arith.constant 0 : i32
    %c0_i32_0 = arith.constant 0 : i32
    return %arg0, %c0_i32 : i32, i32
  }
  func.func @transform_2(%arg0: i32, %arg1: i32, %arg2: memref<3xi32, #tpu.memory_space<smem>>) -> (i32, i32, i32) {
    %0 = arith.index_cast %arg0 : i32 to index
    %1 = memref.load %arg2[%0] : memref<3xi32, #tpu.memory_space<smem>>
    %c0_i32 = arith.constant 0 : i32
    %c0_i32_0 = arith.constant 0 : i32
    return %1, %c0_i32, %arg1 : i32, i32, i32
  }
  func.func @transform_3(%arg0: i32, %arg1: i32, %arg2: memref<3xi32, #tpu.memory_space<smem>>) -> (i32, i32, i32) {
    %0 = arith.index_cast %arg0 : i32 to index
    %1 = memref.load %arg2[%0] : memref<3xi32, #tpu.memory_space<smem>>
    %c0_i32 = arith.constant 0 : i32
    %c0_i32_0 = arith.constant 0 : i32
    return %1, %c0_i32, %arg1 : i32, i32, i32
  }
  func.func @transform_4(%arg0: i32, %arg1: i32, %arg2: memref<3xi32, #tpu.memory_space<smem>>) -> (i32, i32, i32) {
    %0 = arith.index_cast %arg0 : i32 to index
    %1 = memref.load %arg2[%0] : memref<3xi32, #tpu.memory_space<smem>>
    %c0_i32 = arith.constant 0 : i32
    %c0_i32_0 = arith.constant 0 : i32
    return %1, %arg1, %c0_i32 : i32, i32, i32
  }
  func.func @transform_5(%arg0: i32, %arg1: i32, %arg2: memref<3xi32, #tpu.memory_space<smem>>) -> (i32, i32, i32) {
    %0 = arith.index_cast %arg0 : i32 to index
    %1 = memref.load %arg2[%0] : memref<3xi32, #tpu.memory_space<smem>>
    %c0_i32 = arith.constant 0 : i32
    %c0_i32_0 = arith.constant 0 : i32
    %c0_i32_1 = arith.constant 0 : i32
    return %1, %c0_i32, %c0_i32_0 : i32, i32, i32
  }
  func.func @transform_6(%arg0: i32, %arg1: i32, %arg2: memref<3xi32, #tpu.memory_space<smem>>) -> (i32, i32) {
    %c0_i32 = arith.constant 0 : i32
    %c0_i32_0 = arith.constant 0 : i32
    return %arg0, %c0_i32 : i32, i32
  }
}

module attributes {stable_mosaic.version = 11 : i64} {
  func.func @_ln_matmul_kernel(%arg0: i32, %arg1: i32, %arg2: memref<16x128xbf16, #tpu.memory_space<vmem>>, %arg3: memref<1x128xf32, #tpu.memory_space<vmem>>, %arg4: memref<1x128xf32, #tpu.memory_space<vmem>>, %arg5: memref<128x128xbf16, #tpu.memory_space<vmem>>, %arg6: memref<1x128xf32, #tpu.memory_space<vmem>>, %arg7: memref<16x128xf32, #tpu.memory_space<vmem>>, %arg8: memref<16x128xbf16, #tpu.memory_space<vmem>>) attributes {dimension_semantics = [#tpu.dimension_semantics<parallel>, #tpu.dimension_semantics<arbitrary>], iteration_bounds = array<i64: 1, 1>, scalar_prefetch = 0 : i64, scratch_operands = 1 : i64, tpu.core_type = #tpu.core_type<tc>, window_params = [{transform_indices = @transform_0, window_bounds = array<i64: 16, 128>}, {pipeline_mode = #tpu.pipeline_mode<synchronous>, transform_indices = @transform_1, window_bounds = array<i64: 1, 128>}, {pipeline_mode = #tpu.pipeline_mode<synchronous>, transform_indices = @transform_2, window_bounds = array<i64: 1, 128>}, {transform_indices = @transform_3, window_bounds = array<i64: 128, 128>}, {transform_indices = @transform_4, window_bounds = array<i64: 1, 128>}, {transform_indices = @transform_5, window_bounds = array<i64: 16, 128>}]} {
    %c0_i32 = arith.constant 0 : i32
    %0 = arith.cmpi eq, %arg1, %c0_i32 : i32
    %1 = arith.extui %0 : i1 to i32
    %c0_i32_0 = arith.constant 0 : i32
    %2 = arith.cmpi ne, %1, %c0_i32_0 : i32
    scf.if %2 {
      %c0_8 = arith.constant 0 : index
      %c0_9 = arith.constant 0 : index
      %10 = vector.load %arg2[%c0_8, %c0_9] : memref<16x128xbf16, #tpu.memory_space<vmem>>, vector<16x128xbf16>
      %11 = arith.extf %10 : vector<16x128xbf16> to vector<16x128xf32>
      %cst_10 = arith.constant dense<0.000000e+00> : vector<16xf32>
      %12 = vector.multi_reduction <add>, %11, %cst_10 [1] : vector<16x128xf32> to vector<16xf32>
      %13 = vector.shape_cast %12 : vector<16xf32> to vector<16x1xf32>
      %cst_11 = arith.constant 3.125000e-02 : f32
      %14 = vector.broadcast %cst_11 : f32 to vector<16x1xf32>
      %15 = arith.mulf %13, %14 : vector<16x1xf32>
      %16 = vector.broadcast %15 : vector<16x1xf32> to vector<16x128xf32>
      %17 = arith.subf %11, %16 : vector<16x128xf32>
      %18 = arith.mulf %17, %17 : vector<16x128xf32>
      %cst_12 = arith.constant dense<0.000000e+00> : vector<16xf32>
      %19 = vector.multi_reduction <add>, %18, %cst_12 [1] : vector<16x128xf32> to vector<16xf32>
      %20 = vector.shape_cast %19 : vector<16xf32> to vector<16x1xf32>
      %cst_13 = arith.constant 3.125000e-02 : f32
      %21 = vector.broadcast %cst_13 : f32 to vector<16x1xf32>
      %22 = arith.mulf %20, %21 : vector<16x1xf32>
      %cst_14 = arith.constant 9.99999974E-6 : f32
      %23 = vector.broadcast %cst_14 : f32 to vector<16x1xf32>
      %24 = arith.addf %22, %23 : vector<16x1xf32>
      %25 = math.rsqrt %24 : vector<16x1xf32>
      %26 = vector.broadcast %25 : vector<16x1xf32> to vector<16x128xf32>
      %27 = arith.mulf %17, %26 : vector<16x128xf32>
      %c0_15 = arith.constant 0 : index
      %c0_16 = arith.constant 0 : index
      %28 = vector.load %arg3[%c0_15, %c0_16] : memref<1x128xf32, #tpu.memory_space<vmem>>, vector<1x128xf32>
      %29 = vector.broadcast %28 : vector<1x128xf32> to vector<16x128xf32>
      %30 = arith.mulf %27, %29 : vector<16x128xf32>
      %c0_17 = arith.constant 0 : index
      %c0_18 = arith.constant 0 : index
      %31 = vector.load %arg4[%c0_17, %c0_18] : memref<1x128xf32, #tpu.memory_space<vmem>>, vector<1x128xf32>
      %32 = vector.broadcast %31 : vector<1x128xf32> to vector<16x128xf32>
      %33 = arith.addf %30, %32 : vector<16x128xf32>
      %34 = arith.truncf %33 : vector<16x128xf32> to vector<16x128xbf16>
      %c0_19 = arith.constant 0 : index
      %c0_20 = arith.constant 0 : index
      %35 = vector.load %arg8[%c0_19, %c0_20] : memref<16x128xbf16, #tpu.memory_space<vmem>>, vector<16x128xbf16>
      tpu.vector_store %arg8[%c0_19, %c0_20], %34 {strides = array<i32>} : memref<16x128xbf16, #tpu.memory_space<vmem>>, vector<16x128xbf16>,
    } else {
    }
    %c0 = arith.constant 0 : index
    %c0_1 = arith.constant 0 : index
    %3 = vector.load %arg8[%c0, %c0_1] : memref<16x128xbf16, #tpu.memory_space<vmem>>, vector<16x128xbf16>
    %c0_2 = arith.constant 0 : index
    %c0_3 = arith.constant 0 : index
    %4 = vector.load %arg5[%c0_2, %c0_3] : memref<128x128xbf16, #tpu.memory_space<vmem>>, vector<128x128xbf16>
    %cst = arith.constant dense<0.000000e+00> : vector<16x128xf32>
    %5 = tpu.matmul %3, %4, %cst {dimension_numbers = #tpu.dot_dimension_numbers<[1], [0], [0], [1], [0, 0, 1, 1], [], []>} : vector<16x128xbf16>, vector<128x128xbf16>, vector<16x128xf32> -> vector<16x128xf32>
    %c0_4 = arith.constant 0 : index
    %c0_5 = arith.constant 0 : index
    %6 = vector.load %arg6[%c0_4, %c0_5] : memref<1x128xf32, #tpu.memory_space<vmem>>, vector<1x128xf32>
    %7 = vector.broadcast %6 : vector<1x128xf32> to vector<16x128xf32>
    %8 = arith.addf %5, %7 : vector<16x128xf32>
    %c0_6 = arith.constant 0 : index
    %c0_7 = arith.constant 0 : index
    %9 = vector.load %arg7[%c0_6, %c0_7] : memref<16x128xf32, #tpu.memory_space<vmem>>, vector<16x128xf32>
    tpu.vector_store %arg7[%c0_6, %c0_7], %8 {strides = array<i32>} : memref<16x128xf32, #tpu.memory_space<vmem>>, vector<16x128xf32>,
    return
  }
  func.func @transform_0(%arg0: i32, %arg1: i32) -> (i32, i32) {
    %c0_i32 = arith.constant 0 : i32
    %c0_i32_0 = arith.constant 0 : i32
    return %arg0, %c0_i32 : i32, i32
  }
  func.func @transform_1(%arg0: i32, %arg1: i32) -> (i32, i32) {
    %c0_i32 = arith.constant 0 : i32
    %c0_i32_0 = arith.constant 0 : i32
    %c0_i32_1 = arith.constant 0 : i32
    return %c0_i32, %c0_i32_0 : i32, i32
  }
  func.func @transform_2(%arg0: i32, %arg1: i32) -> (i32, i32) {
    %c0_i32 = arith.constant 0 : i32
    %c0_i32_0 = arith.constant 0 : i32
    %c0_i32_1 = arith.constant 0 : i32
    return %c0_i32, %c0_i32_0 : i32, i32
  }
  func.func @transform_3(%arg0: i32, %arg1: i32) -> (i32, i32) {
    %c0_i32 = arith.constant 0 : i32
    %c0_i32_0 = arith.constant 0 : i32
    return %c0_i32, %arg1 : i32, i32
  }
  func.func @transform_4(%arg0: i32, %arg1: i32) -> (i32, i32) {
    %c0_i32 = arith.constant 0 : i32
    %c0_i32_0 = arith.constant 0 : i32
    return %c0_i32, %arg1 : i32, i32
  }
  func.func @transform_5(%arg0: i32, %arg1: i32) -> (i32, i32) {
    %c0_i32 = arith.constant 0 : i32
    return %arg0, %arg1 : i32, i32
  }
}

</mosaic_0001>

<llo_original>
// kernel: custom-call
$region0: #{custom-call}
  %s0 = inlined_call_operand.vmem [shape: u32[3], index: 0, kind: output, shape index: {}]

// kernel: mor_forward.25
$region0: #{mor_forward.25}
  #allocation0 [shape = 'u32[]', space=smem, size = 0x4, offset = 0x4, fixed_abs, tag = 'smem constant byte address 0x4 - core index']
  #allocation1 [shape = 'u32[144,128]{1,0:T(1,128)}', space=vmem, size = 0x12000, scoped, tag = 'internal scratch']
  #allocation2 [shape = 'bf16[16,128]{1,0:T(16,128)(2,1)}', space=vmem, size = 0x1000, scoped, tag = 'scratch operand']
  %s0 = inlined_call_operand.vmem [shape: bf16[16,128], index: 0, kind: input, shape index: {}]
  %s1 = inlined_call_operand.vmem [shape: f32[1,128], index: 1, kind: input, shape index: {}]
  %s2 = inlined_call_operand.vmem [shape: f32[1,128], index: 2, kind: input, shape index: {}]
  %s3 = inlined_call_operand.vmem [shape: bf16[128,96], index: 3, kind: input, shape index: {}]
  %s4 = inlined_call_operand.vmem [shape: f32[1,96], index: 4, kind: input, shape index: {}]
  %s5 = inlined_call_operand.vmem [shape: bf16[16,96], index: 5, kind: output, shape index: {}]
  %s6 = sld [smem:[#allocation0]]
  $region34: #{mor_forward.25} parent=0
    _
  %s8 = ssub.s32 1, %s6
  %s9 = scalar_select 0, %s8, %s6
  // Predicated region
  $region2: #{mor_forward.25} parent=0 // pred_check
    _
  $region3: #{mor_forward.25} parent=0 // pred_check_branch
    %11 = sbr.rel (0) target = $region5
  $region4: #{mor_forward.25} parent=0 // pred_region
    _
  $region5: #{mor_forward.25} parent=0 // pred_fallthru
    _
  // Predicated region
  $region6: #{mor_forward.25} parent=0 // pred_check
    _
  $region7: #{mor_forward.25} parent=0 // pred_check_branch
    %13 = sbr.rel (0) target = $region9
  $region8: #{mor_forward.25} parent=0 // pred_region
    _
  $region9: #{mor_forward.25} parent=0 // pred_fallthru
    _
  // Predicated region
  $region10: #{mor_forward.25} parent=0 // pred_check
    _
  $region11: #{mor_forward.25} parent=0 // pred_check_branch
    %15 = sbr.rel (0) target = $region13
  $region12: #{mor_forward.25} parent=0 // pred_region
    _
  $region13: #{mor_forward.25} parent=0 // pred_fallthru
    _
  // Predicated region
  $region14: #{mor_forward.25} parent=0 // pred_check
    _
  $region15: #{mor_forward.25} parent=0 // pred_check_branch
    %17 = sbr.rel (0) target = $region17
  $region16: #{mor_forward.25} parent=0 // pred_region
    _
  $region17: #{mor_forward.25} parent=0 // pred_fallthru
    _
  // Predicated region
  $region18: #{mor_forward.25} parent=0 // pred_check
    _
  $region19: #{mor_forward.25} parent=0 // pred_check_branch
    %19 = sbr.rel (0) target = $region21
  $region20: #{mor_forward.25} parent=0 // pred_region
    _
  $region21: #{mor_forward.25} parent=0 // pred_fallthru
    _
  %p21 = scmp.eq.s32.totalorder 0, 0
  // Predicated region
  $region22: #{mor_forward.25} parent=0 // pred_check
    %p22 = pneg %p21
  $region23: #{mor_forward.25} parent=0 // pred_check_branch
    %24 = sbr.rel (%p22) target = $region25
  $region24: #{mor_forward.25} parent=0 // pred_region
    %v25 = vld [vmem:[%s0] sm:$0xf]
    %v26 = vld [vmem:[%s0 + $0x4] sm:$0xf]
    %v27 = vunpack.c.l.bf16 %v25
    %v28 = vunpack.c.l.bf16 %v26
    %29 = vadd.xlane.f32.xlu0 %v27
    %v30 = vpop.xlane.xlu0 %29
    %31 = vadd.xlane.f32.xlu0 %v28
    %v32 = vpop.xlane.xlu0 %31
    %v33 = vmul.f32 %v30, 0.03125
    %v34 = vmul.f32 %v32, 0.03125
    %v35 = vsub.f32 %v27, %v33
    %v36 = vsub.f32 %v28, %v34
    %v37 = vmul.f32 %v35, %v35
    %v38 = vmul.f32 %v36, %v36
    %39 = vadd.xlane.f32.xlu0 %v37
    %v40 = vpop.xlane.xlu0 %39
    %41 = vadd.xlane.f32.xlu0 %v38
    %v42 = vpop.xlane.xlu0 %41
    %v43 = vmul.f32 %v40, 0.03125
    %v44 = vmul.f32 %v42, 0.03125
    %v45 = vadd.f32 %v43, 1e-05
    %v46 = vadd.f32 %v44, 1e-05
    %v47 = vrsqrt.pop %v45
    %v48 = vrsqrt.pop %v46
    %v49 = vmul.f32 %v35, %v47
    %v50 = vmul.f32 %v36, %v48
    %v51 = vld [vmem:[%s1] sm:$0x1]
    %v53 = vlaneseq
    %v54 = vshrl.u32 %v53, 7
    %v55 = vsub.s32 0, %v54
    %v56 = vrot.slane %v51, %v55
    %v58 = vmul.f32 %v49, %v56
    %v59 = vmul.f32 %v50, %v56
    %v60 = vld [vmem:[%s2] sm:$0x1]
    %v62 = vlaneseq
    %v63 = vshrl.u32 %v62, 7
    %v64 = vsub.s32 0, %v63
    %v65 = vrot.slane %v60, %v64
    %v67 = vadd.f32 %v58, %v65
    %v68 = vadd.f32 %v59, %v65
    %v69 = vpack.c.bf16 %v68, %v67
    %70 = vst [vmem:[#allocation2] sm:$0xff] %v69
  $region25: #{mor_forward.25} parent=0 // pred_fallthru
    _
  %v71 = vld [vmem:[#allocation2] sm:$0xff]
  %v72 = vld [vmem:[%s3] sm:$0xf]
  %v73 = vld [vmem:[%s3 + $0x4] sm:$0xf]
  %v74 = vld [vmem:[%s3 + $0x8] sm:$0xf]
  %v75 = vld [vmem:[%s3 + $0xc] sm:$0xf]
  %v76 = vld [vmem:[%s3 + $0x10] sm:$0xf]
  %v77 = vld [vmem:[%s3 + $0x14] sm:$0xf]
  %v78 = vld [vmem:[%s3 + $0x18] sm:$0xf]
  %v79 = vld [vmem:[%s3 + $0x1c] sm:$0xf]
  %v80 = vld [vmem:[%s3 + $0x20] sm:$0xf]
  %v81 = vld [vmem:[%s3 + $0x24] sm:$0xf]
  %v82 = vld [vmem:[%s3 + $0x28] sm:$0xf]
  %v83 = vld [vmem:[%s3 + $0x2c] sm:$0xf]
  %v84 = vld [vmem:[%s3 + $0x30] sm:$0xf]
  %v85 = vld [vmem:[%s3 + $0x34] sm:$0xf]
  %v86 = vld [vmem:[%s3 + $0x38] sm:$0xf]
  %v87 = vld [vmem:[%s3 + $0x3c] sm:$0xf]
  %v88 = vld [vmem:[%s4] sm:$0x1]
  %v90 = vlaneseq
  %v91 = vshrl.u32 %v90, 7
  %v92 = vsub.s32 0, %v91
  %v93 = vrot.slane %v88, %v92
  %v111 = vunpack.c.l.b16 %v72
  %v112 = vunpack.c.l.b16 %v73
  %v113 = vunpack.c.l.b16 %v74
  %v114 = vunpack.c.l.b16 %v75
  %v115 = vunpack.c.l.b16 %v76
  %v116 = vunpack.c.l.b16 %v77
  %v117 = vunpack.c.l.b16 %v78
  %v118 = vunpack.c.l.b16 %v79
  %v119 = vunpack.c.l.b16 %v80
  %v120 = vunpack.c.l.b16 %v81
  %v121 = vunpack.c.l.b16 %v82
  %v122 = vunpack.c.l.b16 %v83
  %v123 = vunpack.c.l.b16 %v84
  %v124 = vunpack.c.l.b16 %v85
  %v125 = vunpack.c.l.b16 %v86
  %v126 = vunpack.c.l.b16 %v87
  %v127 = vpack.c.b16 %v112, %v111
  %v128 = vpack.c.b16 %v114, %v113
  %v129 = vpack.c.b16 %v116, %v115
  %v130 = vpack.c.b16 %v118, %v117
  %v131 = vpack.c.b16 %v120, %v119
  %v132 = vpack.c.b16 %v122, %v121
  %v133 = vpack.c.b16 %v124, %v123
  %v134 = vpack.c.b16 %v126, %v125
  %143 = vmatprep.subr.bf16.mxu0 0
  %144 = vmatpush1.bf16.msra.mxu0 %v127
  %145 = vmatprep.subr.bf16.mxu0 0
  %146 = vmatpush1.bf16.msra.mxu0 %v128
  %147 = vmatprep.subr.bf16.mxu0 0
  %148 = vmatpush1.bf16.msra.mxu0 %v129
  %149 = vmatprep.subr.bf16.mxu0 0
  %150 = vmatpush1.bf16.msra.mxu0 %v130
  %151 = vmatprep.subr.bf16.mxu0 0
  %152 = vmatpush1.bf16.msra.mxu0 %v131
  %153 = vmatprep.subr.bf16.mxu0 0
  %154 = vmatpush1.bf16.msra.mxu0 %v132
  %155 = vmatprep.subr.bf16.mxu0 0
  %156 = vmatpush1.bf16.msra.mxu0 %v133
  %157 = vmatprep.subr.bf16.mxu0 0
  %158 = vmatpush1.bf16.msra.mxu0 %v134
  %159 = vmatprep.subr.bf16.mxu0 0
  %160 = vmatpush1.bf16.msra.mxu0 0
  %161 = vmatprep.subr.bf16.mxu0 0
  %162 = vmatpush1.bf16.msra.mxu0 0
  %163 = vmatprep.subr.bf16.mxu0 0
  %164 = vmatpush1.bf16.msra.mxu0 0
  %165 = vmatprep.subr.bf16.mxu0 0
  %166 = vmatpush1.bf16.msra.mxu0 0
  %167 = vmatprep.subr.bf16.mxu0 0
  %168 = vmatpush1.bf16.msra.mxu0 0
  %169 = vmatprep.subr.bf16.mxu0 0
  %170 = vmatpush1.bf16.msra.mxu0 0
  %171 = vmatprep.subr.bf16.mxu0 0
  %172 = vmatpush1.bf16.msra.mxu0 0
  %173 = vmatprep.subr.bf16.mxu0 0
  %174 = vmatpush1.bf16.msra.mxu0 0
  %175 = vmatprep.mubr.bf16.mxu0 0
  %176 = vmatmul.mubr.bf16.gmra.mrb[0].mxu0 %v71
  %v177 = vpop.f32.mrb[0].mxu0
  %v178 = vadd.f32 %v93, %v177
  %v179 = vpop.f32.mrb[0].mxu0
  %v180 = vpop.f32.mrb[0].mxu0
  %v181 = vadd.f32 %v93, %v180
  %v182 = vpop.f32.mrb[0].mxu0
  %183 = vdwg.mxu0
  %v184 = vpack.c.bf16 %v181, %v178
  %v186 = vunpack.c.l.b16 %v184
  %v187 = vunpack.c.h.b16 %v184
  %v188 = vpack.c.b16 %v186, %v186
  %v189 = vpack.c.b16 %v187, %v187
  %vm192 = vcmask 781312
  %193 = vst.msk [vmem:[%s5] sm:$0xf] %vm192, %v188
  %194 = vst.msk [vmem:[%s5 + $0x4] sm:$0xf] %vm192, %v189
  // Predicated region
  $region26: #{mor_forward.25} parent=0 // pred_check
    _
  $region27: #{mor_forward.25} parent=0 // pred_check_branch
    %196 = sbr.rel (0) target = $region29
  $region28: #{mor_forward.25} parent=0 // pred_region
    _
  $region29: #{mor_forward.25} parent=0 // pred_fallthru
    _
  // Predicated region
  $region30: #{mor_forward.25} parent=0 // pred_check
    _
  $region31: #{mor_forward.25} parent=0 // pred_check_branch
    %198 = sbr.rel (0) target = $region33
  $region32: #{mor_forward.25} parent=0 // pred_region
    _
  $region33: #{mor_forward.25} parent=0 // pred_fallthru
    _

// kernel: mor_forward.27
$region0: #{mor_forward.27}
  #allocation0 [shape = 'u32[]', space=smem, size = 0x4, offset = 0x4, fixed_abs, tag = 'smem constant byte address 0x4 - core index']
  #allocation1 [shape = 'u32[144,128]{1,0:T(1,128)}', space=vmem, size = 0x12000, scoped, tag = 'internal scratch']
  #allocation2 [shape = 'f32[16,128]{1,0:T(8,128)}', space=vmem, size = 0x2000, scoped, tag = 'scratch operand']
  %s0 = inlined_call_operand.vmem [shape: bf16[16,32], index: 0, kind: input, shape index: {}]
  %s1 = inlined_call_operand.vmem [shape: bf16[32,128], index: 1, kind: input, shape index: {}]
  %s2 = inlined_call_operand.vmem [shape: f32[1,128], index: 2, kind: input, shape index: {}]
  %s3 = inlined_call_operand.vmem [shape: bf16[16,128], index: 3, kind: input, shape index: {}]
  %s4 = inlined_call_operand.vmem [shape: bf16[16,128], index: 4, kind: output, shape index: {}]
  %s5 = sld [smem:[#allocation0]]
  $region34: #{mor_forward.27} parent=0
    _
  %s7 = ssub.s32 1, %s5
  %s8 = scalar_select 0, %s7, %s5
  // Predicated region
  $region2: #{mor_forward.27} parent=0 // pred_check
    _
  $region3: #{mor_forward.27} parent=0 // pred_check_branch
    %10 = sbr.rel (0) target = $region5
  $region4: #{mor_forward.27} parent=0 // pred_region
    _
  $region5: #{mor_forward.27} parent=0 // pred_fallthru
    _
  // Predicated region
  $region6: #{mor_forward.27} parent=0 // pred_check
    _
  $region7: #{mor_forward.27} parent=0 // pred_check_branch
    %12 = sbr.rel (0) target = $region9
  $region8: #{mor_forward.27} parent=0 // pred_region
    _
  $region9: #{mor_forward.27} parent=0 // pred_fallthru
    _
  // Predicated region
  $region10: #{mor_forward.27} parent=0 // pred_check
    _
  $region11: #{mor_forward.27} parent=0 // pred_check_branch
    %14 = sbr.rel (0) target = $region13
  $region12: #{mor_forward.27} parent=0 // pred_region
    _
  $region13: #{mor_forward.27} parent=0 // pred_fallthru
    _
  // Predicated region
  $region14: #{mor_forward.27} parent=0 // pred_check
    _
  $region15: #{mor_forward.27} parent=0 // pred_check_branch
    %16 = sbr.rel (0) target = $region17
  $region16: #{mor_forward.27} parent=0 // pred_region
    _
  $region17: #{mor_forward.27} parent=0 // pred_fallthru
    _
  %p18 = scmp.eq.s32.totalorder 0, 0
  // Predicated region
  $region18: #{mor_forward.27} parent=0 // pred_check
    %p19 = pneg %p18
  $region19: #{mor_forward.27} parent=0 // pred_check_branch
    %21 = sbr.rel (%p19) target = $region21
  $region20: #{mor_forward.27} parent=0 // pred_region
    %22 = vst [vmem:[#allocation2] sm:$0xff] 0.0
    %23 = vst [vmem:[#allocation2 + $0x8] sm:$0xff] 0.0
  $region21: #{mor_forward.27} parent=0 // pred_fallthru
    _
  %v24 = vld [vmem:[#allocation2] sm:$0xff]
  %v25 = vld [vmem:[#allocation2 + $0x8] sm:$0xff]
  %v26 = vld [vmem:[%s0] sm:$0xf]
  %v27 = vld [vmem:[%s0 + $0x4] sm:$0xf]
  %v28 = vld [vmem:[%s1] sm:$0xf]
  %v29 = vld [vmem:[%s1 + $0x4] sm:$0xf]
  %v30 = vld [vmem:[%s1 + $0x8] sm:$0xf]
  %v31 = vld [vmem:[%s1 + $0xc] sm:$0xf]
  %v34 = vunpack.c.l.b16 %v26
  %v35 = vunpack.c.l.b16 %v27
  %v36 = vpack.c.b16 %v35, %v34
  %v41 = vunpack.c.l.b16 %v28
  %v42 = vunpack.c.l.b16 %v29
  %v43 = vunpack.c.l.b16 %v30
  %v44 = vunpack.c.l.b16 %v31
  %v45 = vpack.c.b16 %v42, %v41
  %v46 = vpack.c.b16 %v44, %v43
  %vm49 = vcmask 261120
  %v51 = vsel %vm49, %v36, 0
  %53 = vmatprep.subr.bf16.mxu0 0
  %54 = vmatpush1.bf16.msra.mxu0 %v45
  %55 = vmatprep.subr.bf16.mxu0 0
  %56 = vmatpush1.bf16.msra.mxu0 %v46
  %57 = vmatprep.subr.bf16.mxu0 0
  %58 = vmatpush1.bf16.msra.mxu0 0
  %59 = vmatprep.subr.bf16.mxu0 0
  %60 = vmatpush1.bf16.msra.mxu0 0
  %61 = vmatprep.subr.bf16.mxu0 0
  %62 = vmatpush1.bf16.msra.mxu0 0
  %63 = vmatprep.subr.bf16.mxu0 0
  %64 = vmatpush1.bf16.msra.mxu0 0
  %65 = vmatprep.subr.bf16.mxu0 0
  %66 = vmatpush1.bf16.msra.mxu0 0
  %67 = vmatprep.subr.bf16.mxu0 0
  %68 = vmatpush1.bf16.msra.mxu0 0
  %69 = vmatprep.subr.bf16.mxu0 0
  %70 = vmatpush1.bf16.msra.mxu0 0
  %71 = vmatprep.subr.bf16.mxu0 0
  %72 = vmatpush1.bf16.msra.mxu0 0
  %73 = vmatprep.subr.bf16.mxu0 0
  %74 = vmatpush1.bf16.msra.mxu0 0
  %75 = vmatprep.subr.bf16.mxu0 0
  %76 = vmatpush1.bf16.msra.mxu0 0
  %77 = vmatprep.subr.bf16.mxu0 0
  %78 = vmatpush1.bf16.msra.mxu0 0
  %79 = vmatprep.subr.bf16.mxu0 0
  %80 = vmatpush1.bf16.msra.mxu0 0
  %81 = vmatprep.subr.bf16.mxu0 0
  %82 = vmatpush1.bf16.msra.mxu0 0
  %83 = vmatprep.subr.bf16.mxu0 0
  %84 = vmatpush1.bf16.msra.mxu0 0
  %85 = vmatprep.mubr.bf16.mxu0 0
  %86 = vmatmul.mubr.bf16.gmra.mrb[0].mxu0 %v51
  %v87 = vpop.f32.mrb[0].mxu0
  %v88 = vadd.f32 0.0, %v87
  %v89 = vpop.f32.mrb[0].mxu0
  %v90 = vpop.f32.mrb[0].mxu0
  %v91 = vadd.f32 0.0, %v90
  %v92 = vpop.f32.mrb[0].mxu0
  %93 = vdwg.mxu0
  %v94 = vadd.f32 %v24, %v88
  %v95 = vadd.f32 %v25, %v91
  %96 = vst [vmem:[#allocation2] sm:$0xff] %v94
  %97 = vst [vmem:[#allocation2 + $0x8] sm:$0xff] %v95
  // Predicated region
  $region22: #{mor_forward.27} parent=0 // pred_check
    %p98 = pneg %p18
  $region23: #{mor_forward.27} parent=0 // pred_check_branch
    %100 = sbr.rel (%p98) target = $region25
  $region24: #{mor_forward.27} parent=0 // pred_region
    %v101 = vld [vmem:[#allocation2] sm:$0xff]
    %v102 = vld [vmem:[#allocation2 + $0x8] sm:$0xff]
    %v103 = vld [vmem:[%s2] sm:$0x1]
    %v105 = vlaneseq
    %v106 = vshrl.u32 %v105, 7
    %v107 = vsub.s32 0, %v106
    %v108 = vrot.slane %v103, %v107
    %v110 = vadd.f32 %v101, %v108
    %v111 = vadd.f32 %v102, %v108
    %v112 = vld [vmem:[%s3] sm:$0xf]
    %v113 = vld [vmem:[%s3 + $0x4] sm:$0xf]
    %v114 = vunpack.c.l.bf16 %v112
    %v115 = vunpack.c.l.bf16 %v113
    %v116 = vadd.f32 %v110, %v114
    %v117 = vadd.f32 %v111, %v115
    %v118 = vpack.c.bf16 %v117, %v116
    %v120 = vunpack.c.l.b16 %v118
    %v121 = vunpack.c.h.b16 %v118
    %v122 = vpack.c.b16 %v120, %v120
    %v123 = vpack.c.b16 %v121, %v121
    %126 = vst [vmem:[%s4] sm:$0xf] %v122
    %127 = vst [vmem:[%s4 + $0x4] sm:$0xf] %v123
  $region25: #{mor_forward.27} parent=0 // pred_fallthru
    _
  // Predicated region
  $region26: #{mor_forward.27} parent=0 // pred_check
    _
  $region27: #{mor_forward.27} parent=0 // pred_check_branch
    %129 = sbr.rel (0) target = $region29
  $region28: #{mor_forward.27} parent=0 // pred_region
    _
  $region29: #{mor_forward.27} parent=0 // pred_fallthru
    _
  // Predicated region
  $region30: #{mor_forward.27} parent=0 // pred_check
    _
  $region31: #{mor_forward.27} parent=0 // pred_check_branch
    %131 = sbr.rel (0) target = $region33
  $region32: #{mor_forward.27} parent=0 // pred_region
    _
  $region33: #{mor_forward.27} parent=0 // pred_fallthru
    _

// kernel: mor_forward.26
$region0: #{mor_forward.26}
  #allocation0 [shape = 'u32[]', space=smem, size = 0x4, offset = 0x4, fixed_abs, tag = 'smem constant byte address 0x4 - core index']
  #allocation1 [shape = 'u32[144,128]{1,0:T(1,128)}', space=vmem, size = 0x12000, scoped, tag = 'internal scratch']
  #allocation2 [shape = 'f32[8,1]{1,0:T(8,128)}', space=vmem, size = 0x1000, scoped, tag = 'scratch operand']
  #allocation3 [shape = 'f32[8,1]{1,0:T(8,128)}', space=vmem, size = 0x1000, scoped, tag = 'scratch operand']
  #allocation4 [shape = 'f32[8,8]{1,0:T(8,128)}', space=vmem, size = 0x1000, scoped, tag = 'scratch operand']
  %s0 = inlined_call_operand.vmem [shape: bf16[2,4,8,8], index: 0, kind: input, shape index: {}]
  %s1 = inlined_call_operand.vmem [shape: bf16[2,4,8,8], index: 1, kind: input, shape index: {}]
  %s2 = inlined_call_operand.vmem [shape: bf16[2,4,8,8], index: 2, kind: input, shape index: {}]
  %s3 = inlined_call_operand.vmem [shape: bf16[2,4,8,8], index: 3, kind: output, shape index: {}]
  %s4 = sld [smem:[#allocation0]]
  $region57: #{mor_forward.26} parent=0
    _
  %s6 = ssub.s32 1, %s4
  %s7 = scalar_select 0, %s6, %s4
  loop: start=0, step=1, limit=10
  $region2: #{mor_forward.26} parent=0 // loop_pre_header
    _
  $region3: #{mor_forward.26} parent=0 // loop_header
    %s9 = sphi 0, %s13
    %p10 = scmp.ge.s32.totalorder %s9, 10
    %s16 = sphi 0, %s42
    %s17 = sphi 0, %s38
    %s18 = sphi 0, %s34
    %s19 = sphi 0, %s30
    %s20 = sphi 0, %s16
    %s21 = sphi 0, %s17
    %s22 = sphi 0, %s18
    %s23 = sphi 0, %s19
    %s24 = sphi 0, %s20
    %s25 = sphi 0, %s21
    %s26 = sphi 0, %s22
    %s27 = sphi 0, %s23
    %s49 = sphi 0, %s51
    %s52 = sphi 0, %s49
    %s53 = sphi 0, %s52
    %s69 = sphi 0, %s53
    %s83 = sphi 0, %s85
    %s86 = sphi 0, %s83
    %s87 = sphi 0, %s86
    %s103 = sphi 0, %s87
    %s117 = sphi 0, %s119
    %s120 = sphi 0, %s117
    %s121 = sphi 0, %s120
    %s137 = sphi 0, %s121
    %s147 = sphi 0, %s149
    %s150 = sphi 0, %s147
    %s151 = sphi 0, %s150
    %s167 = sphi 0, %s151
  $region4: #{mor_forward.26} parent=0 // loop_header_branch
    %12 = sbr.rel (%p10) target = $region8
  $region5: #{mor_forward.26} parent=0 // loop_body
    %s14 = ssub.s32 %s9, 1
    %s15 = ssub.s32 %s9, 2
    %s28 = sadd.s32 1, %s19
    %p29 = scmp.ge.s32.totalorder %s28, 1
    %s30 = scalar_select %p29, 0, %s28
    %s31 = sadd.s32 1, %s18
    %s32 = scalar_select %p29, %s31, %s18
    %p33 = scmp.ge.s32.totalorder %s32, 1
    %s34 = scalar_select %p33, 0, %s32
    %s35 = sadd.s32 1, %s17
    %s36 = scalar_select %p33, %s35, %s17
    %p37 = scmp.ge.s32.totalorder %s36, 4
    %s38 = scalar_select %p37, 0, %s36
    %s39 = sadd.s32 1, %s16
    %s40 = scalar_select %p37, %s39, %s16
    %p41 = scmp.ge.s32.totalorder %s40, 2
    %s42 = scalar_select %p41, 0, %s40
    %s43 = ssub.s32 %s16, %s42
    %s44 = ssub.s32 %s17, %s38
    %s45 = sor.u32 %s43, %s44
    %s46 = ssub.s32 %s18, %s34
    %s47 = sor.u32 %s45, %s46
    %p48 = scmp.eq.s32.totalorder %s47, 0
    %s50 = sadd.s32 %s49, 1
    %s51 = scalar_select %p48, %s49, %s50
    %p54 = pneg %p48
    %p55 = scmp.eq.s32.totalorder %s9, 7
    %p56 = por %p54, %p55
    %p57 = scmp.ne.s32.totalorder %s49, %s52
    %p58 = scmp.eq.s32.totalorder %s9, 0
    %p59 = por %p57, %p58
    %p60 = scmp.ne.s32.totalorder %s49, %s52
    %p61 = scmp.eq.s32.totalorder %s14, 7
    %p62 = por %p60, %p61
    %p63 = scmp.ne.s32.totalorder %s52, %s53
    %p64 = scmp.eq.s32.totalorder %s14, 0
    %p65 = por %p63, %p64
    %p66 = scmp.ne.s32.totalorder %s52, %s53
    %p67 = scmp.eq.s32.totalorder %s15, 7
    %p68 = por %p66, %p67
    %p70 = scmp.ne.s32.totalorder %s53, %s69
    %p71 = scmp.eq.s32.totalorder %s15, 0
    %p72 = por %p70, %p71
    %p73 = scmp.lt.s32.totalorder %s19, %s18
    %s74 = scalar_select %p73, %s19, %s18
    %p75 = scmp.lt.s32.totalorder %s30, %s34
    %s76 = scalar_select %p75, %s30, %s34
    %s77 = ssub.s32 %s16, %s42
    %s78 = ssub.s32 %s17, %s38
    %s79 = sor.u32 %s77, %s78
    %s80 = ssub.s32 %s74, %s76
    %s81 = sor.u32 %s79, %s80
    %p82 = scmp.eq.s32.totalorder %s81, 0
    %s84 = sadd.s32 %s83, 1
    %s85 = scalar_select %p82, %s83, %s84
    %p88 = pneg %p82
    %p89 = scmp.eq.s32.totalorder %s9, 7
    %p90 = por %p88, %p89
    %p91 = scmp.ne.s32.totalorder %s83, %s86
    %p92 = scmp.eq.s32.totalorder %s9, 0
    %p93 = por %p91, %p92
    %p94 = scmp.ne.s32.totalorder %s83, %s86
    %p95 = scmp.eq.s32.totalorder %s14, 7
    %p96 = por %p94, %p95
    %p97 = scmp.ne.s32.totalorder %s86, %s87
    %p98 = scmp.eq.s32.totalorder %s14, 0
    %p99 = por %p97, %p98
    %p100 = scmp.ne.s32.totalorder %s86, %s87
    %p101 = scmp.eq.s32.totalorder %s15, 7
    %p102 = por %p100, %p101
    %p104 = scmp.ne.s32.totalorder %s87, %s103
    %p105 = scmp.eq.s32.totalorder %s15, 0
    %p106 = por %p104, %p105
    %p107 = scmp.lt.s32.totalorder %s19, %s18
    %s108 = scalar_select %p107, %s19, %s18
    %p109 = scmp.lt.s32.totalorder %s30, %s34
    %s110 = scalar_select %p109, %s30, %s34
    %s111 = ssub.s32 %s16, %s42
    %s112 = ssub.s32 %s17, %s38
    %s113 = sor.u32 %s111, %s112
    %s114 = ssub.s32 %s108, %s110
    %s115 = sor.u32 %s113, %s114
    %p116 = scmp.eq.s32.totalorder %s115, 0
    %s118 = sadd.s32 %s117, 1
    %s119 = scalar_select %p116, %s117, %s118
    %p122 = pneg %p116
    %p123 = scmp.eq.s32.totalorder %s9, 7
    %p124 = por %p122, %p123
    %p125 = scmp.ne.s32.totalorder %s117, %s120
    %p126 = scmp.eq.s32.totalorder %s9, 0
    %p127 = por %p125, %p126
    %p128 = scmp.ne.s32.totalorder %s117, %s120
    %p129 = scmp.eq.s32.totalorder %s14, 7
    %p130 = por %p128, %p129
    %p131 = scmp.ne.s32.totalorder %s120, %s121
    %p132 = scmp.eq.s32.totalorder %s14, 0
    %p133 = por %p131, %p132
    %p134 = scmp.ne.s32.totalorder %s120, %s121
    %p135 = scmp.eq.s32.totalorder %s15, 7
    %p136 = por %p134, %p135
    %p138 = scmp.ne.s32.totalorder %s121, %s137
    %p139 = scmp.eq.s32.totalorder %s15, 0
    %p140 = por %p138, %p139
    %s141 = ssub.s32 %s16, %s42
    %s142 = ssub.s32 %s17, %s38
    %s143 = sor.u32 %s141, %s142
    %s144 = ssub.s32 %s18, %s34
    %s145 = sor.u32 %s143, %s144
    %p146 = scmp.eq.s32.totalorder %s145, 0
    %s148 = sadd.s32 %s147, 1
    %s149 = scalar_select %p146, %s147, %s148
    %p152 = pneg %p146
    %p153 = scmp.eq.s32.totalorder %s9, 7
    %p154 = por %p152, %p153
    %p155 = scmp.ne.s32.totalorder %s147, %s150
    %p156 = scmp.eq.s32.totalorder %s9, 0
    %p157 = por %p155, %p156
    %p158 = scmp.ne.s32.totalorder %s147, %s150
    %p159 = scmp.eq.s32.totalorder %s14, 7
    %p160 = por %p158, %p159
    %p161 = scmp.ne.s32.totalorder %s150, %s151
    %p162 = scmp.eq.s32.totalorder %s14, 0
    %p163 = por %p161, %p162
    %p164 = scmp.ne.s32.totalorder %s150, %s151
    %p165 = scmp.eq.s32.totalorder %s15, 7
    %p166 = por %p164, %p165
    %p168 = scmp.ne.s32.totalorder %s151, %s167
    %p169 = scmp.eq.s32.totalorder %s15, 0
    %p170 = por %p168, %p169
    %p171 = scmp.le.s32.totalorder 1, %s9
    %p172 = scmp.lt.s32.totalorder %s9, 9
    %p173 = pnand %p171, %p172
    %p174 = pneg %p173
    // Predicated region
    $region9: #{mor_forward.26} parent=5 // pred_check
      _
    $region10: #{mor_forward.26} parent=5 // pred_check_branch
      %176 = sbr.rel (%p173) target = $region12
    $region11: #{mor_forward.26} parent=5 // pred_region
      %s177 = ssub.s32 %s9, 1
    $region12: #{mor_forward.26} parent=5 // pred_fallthru
      _
    %p178 = scmp.lt.s32.totalorder %s9, 8
    // Predicated region
    $region13: #{mor_forward.26} parent=5 // pred_check
      %p179 = pneg %p178
    $region14: #{mor_forward.26} parent=5 // pred_check_branch
      %181 = sbr.rel (%p179) target = $region16
    $region15: #{mor_forward.26} parent=5 // pred_region
      // Predicated region
      $region17: #{mor_forward.26} parent=15 // pred_check
        %p182 = pneg %p59
      $region18: #{mor_forward.26} parent=15 // pred_check_branch
        %184 = sbr.rel (%p182) target = $region20
      $region19: #{mor_forward.26} parent=15 // pred_region
        %p185 = scmp.lt.s32.totalorder %s16, 1
        %s186 = scalar_select %p185, %s16, 1
        %p187 = scmp.lt.s32.totalorder %s17, 3
        %s188 = scalar_select %p187, %s17, 3
        %p189 = scmp.lt.s32.totalorder %s18, 0
        %s190 = scalar_select %p189, %s18, 0
        %s191 = sadd.s32 %s190, %s188
        %s192 = smul.addr %s186, 4
        %s193 = sadd.s32 %s191, %s192
        %s194 = smul.addr %s193, 4
        %s195 = scalar_lea.vmem %s0, %s194
      $region20: #{mor_forward.26} parent=15 // pred_fallthru
        _
      // Predicated region
      $region21: #{mor_forward.26} parent=15 // pred_check
        %p196 = pneg %p93
      $region22: #{mor_forward.26} parent=15 // pred_check_branch
        %198 = sbr.rel (%p196) target = $region24
      $region23: #{mor_forward.26} parent=15 // pred_region
        %p199 = scmp.lt.s32.totalorder %s19, %s18
        %s200 = scalar_select %p199, %s19, %s18
        %p201 = scmp.lt.s32.totalorder %s16, 1
        %s202 = scalar_select %p201, %s16, 1
        %p203 = scmp.lt.s32.totalorder %s17, 3
        %s204 = scalar_select %p203, %s17, 3
        %p205 = scmp.lt.s32.totalorder %s200, 0
        %s206 = scalar_select %p205, %s200, 0
        %s207 = sadd.s32 %s206, %s204
        %s208 = smul.addr %s202, 4
        %s209 = sadd.s32 %s207, %s208
        %s210 = smul.addr %s209, 4
        %s211 = scalar_lea.vmem %s1, %s210
        %p212 = scmp.lt.s32.totalorder %s19, %s18
        %s213 = scalar_select %p212, %s19, %s18
      $region24: #{mor_forward.26} parent=15 // pred_fallthru
        _
      // Predicated region
      $region25: #{mor_forward.26} parent=15 // pred_check
        %p214 = pneg %p127
      $region26: #{mor_forward.26} parent=15 // pred_check_branch
        %216 = sbr.rel (%p214) target = $region28
      $region27: #{mor_forward.26} parent=15 // pred_region
        %p217 = scmp.lt.s32.totalorder %s19, %s18
        %s218 = scalar_select %p217, %s19, %s18
        %p219 = scmp.lt.s32.totalorder %s16, 1
        %s220 = scalar_select %p219, %s16, 1
        %p221 = scmp.lt.s32.totalorder %s17, 3
        %s222 = scalar_select %p221, %s17, 3
        %p223 = scmp.lt.s32.totalorder %s218, 0
        %s224 = scalar_select %p223, %s218, 0
        %s225 = sadd.s32 %s224, %s222
        %s226 = smul.addr %s220, 4
        %s227 = sadd.s32 %s225, %s226
        %s228 = smul.addr %s227, 4
        %s229 = scalar_lea.vmem %s2, %s228
        %p230 = scmp.lt.s32.totalorder %s19, %s18
        %s231 = scalar_select %p230, %s19, %s18
      $region28: #{mor_forward.26} parent=15 // pred_fallthru
        _
    $region16: #{mor_forward.26} parent=5 // pred_fallthru
      _
    %p232 = scmp.le.s32.totalorder 1, %s9
    %p233 = scmp.lt.s32.totalorder %s9, 9
    %p234 = pnand %p232, %p233
    %p235 = pneg %p234
    // Predicated region
    $region29: #{mor_forward.26} parent=5 // pred_check
      _
    $region30: #{mor_forward.26} parent=5 // pred_check_branch
      %237 = sbr.rel (%p234) target = $region32
    $region31: #{mor_forward.26} parent=5 // pred_region
      %s238 = ssub.s32 %s9, 1
      %p239 = scmp.lt.s32.totalorder %s20, 1
      %s240 = scalar_select %p239, %s20, 1
      %p241 = scmp.lt.s32.totalorder %s21, 3
      %s242 = scalar_select %p241, %s21, 3
      %p243 = scmp.lt.s32.totalorder %s22, 0
      %s244 = scalar_select %p243, %s22, 0
      %s245 = sadd.s32 %s244, %s242
      %s246 = smul.addr %s240, 4
      %s247 = sadd.s32 %s245, %s246
      %s248 = smul.addr %s247, 4
      %s249 = scalar_lea.vmem %s0, %s248
      %p250 = pneg %p65
      %p251 = pneg %p62
      %p252 = scmp.lt.s32.totalorder %s23, %s22
      %s253 = scalar_select %p252, %s23, %s22
      %p254 = scmp.lt.s32.totalorder %s20, 1
      %s255 = scalar_select %p254, %s20, 1
      %p256 = scmp.lt.s32.totalorder %s21, 3
      %s257 = scalar_select %p256, %s21, 3
      %p258 = scmp.lt.s32.totalorder %s253, 0
      %s259 = scalar_select %p258, %s253, 0
      %s260 = sadd.s32 %s259, %s257
      %s261 = smul.addr %s255, 4
      %s262 = sadd.s32 %s260, %s261
      %s263 = smul.addr %s262, 4
      %s264 = scalar_lea.vmem %s1, %s263
      %p265 = pneg %p99
      %p266 = pneg %p96
      %p267 = scmp.lt.s32.totalorder %s23, %s22
      %s268 = scalar_select %p267, %s23, %s22
      %p269 = scmp.lt.s32.totalorder %s20, 1
      %s270 = scalar_select %p269, %s20, 1
      %p271 = scmp.lt.s32.totalorder %s21, 3
      %s272 = scalar_select %p271, %s21, 3
      %p273 = scmp.lt.s32.totalorder %s268, 0
      %s274 = scalar_select %p273, %s268, 0
      %s275 = sadd.s32 %s274, %s272
      %s276 = smul.addr %s270, 4
      %s277 = sadd.s32 %s275, %s276
      %s278 = smul.addr %s277, 4
      %s279 = scalar_lea.vmem %s2, %s278
      %p280 = pneg %p133
      %p281 = pneg %p130
      %p282 = pneg %p163
      %p283 = pneg %p160
      %p284 = scmp.lt.s32.totalorder %s20, 1
      %s285 = scalar_select %p284, %s20, 1
      %p286 = scmp.lt.s32.totalorder %s21, 3
      %s287 = scalar_select %p286, %s21, 3
      %p288 = scmp.lt.s32.totalorder %s22, 0
      %s289 = scalar_select %p288, %s22, 0
      %s290 = sadd.s32 %s289, %s287
      %s291 = smul.addr %s285, 4
      %s292 = sadd.s32 %s290, %s291
      %s293 = smul.addr %s292, 4
      %s294 = scalar_lea.vmem %s3, %s293
      %p295 = scmp.lt.s32.totalorder %s20, 1
      %s296 = scalar_select %p295, %s20, 1
      %p297 = scmp.lt.s32.totalorder %s21, 3
      %s298 = scalar_select %p297, %s21, 3
      %p299 = scmp.lt.s32.totalorder %s22, 0
      %s300 = scalar_select %p299, %s22, 0
      %s301 = sadd.s32 %s300, %s298
      %s302 = smul.addr %s296, 4
      %s303 = sadd.s32 %s301, %s302
      %s304 = smul.addr %s303, 4
      %s305 = scalar_lea.vmem %s0, %s304
      %p306 = scmp.lt.s32.totalorder %s23, %s22
      %s307 = scalar_select %p306, %s23, %s22
      %p308 = scmp.lt.s32.totalorder %s20, 1
      %s309 = scalar_select %p308, %s20, 1
      %p310 = scmp.lt.s32.totalorder %s21, 3
      %s311 = scalar_select %p310, %s21, 3
      %p312 = scmp.lt.s32.totalorder %s307, 0
      %s313 = scalar_select %p312, %s307, 0
      %s314 = sadd.s32 %s313, %s311
      %s315 = smul.addr %s309, 4
      %s316 = sadd.s32 %s314, %s315
      %s317 = smul.addr %s316, 4
      %s318 = scalar_lea.vmem %s1, %s317
      %p319 = scmp.lt.s32.totalorder %s23, %s22
      %s320 = scalar_select %p319, %s23, %s22
      %p321 = scmp.lt.s32.totalorder %s23, %s22
      %s322 = scalar_select %p321, %s23, %s22
      %p323 = scmp.lt.s32.totalorder %s20, 1
      %s324 = scalar_select %p323, %s20, 1
      %p325 = scmp.lt.s32.totalorder %s21, 3
      %s326 = scalar_select %p325, %s21, 3
      %p327 = scmp.lt.s32.totalorder %s322, 0
      %s328 = scalar_select %p327, %s322, 0
      %s329 = sadd.s32 %s328, %s326
      %s330 = smul.addr %s324, 4
      %s331 = sadd.s32 %s329, %s330
      %s332 = smul.addr %s331, 4
      %s333 = scalar_lea.vmem %s2, %s332
      %p334 = scmp.lt.s32.totalorder %s23, %s22
      %s335 = scalar_select %p334, %s23, %s22
      %p336 = scmp.lt.s32.totalorder %s20, 1
      %s337 = scalar_select %p336, %s20, 1
      %p338 = scmp.lt.s32.totalorder %s21, 3
      %s339 = scalar_select %p338, %s21, 3
      %p340 = scmp.lt.s32.totalorder %s22, 0
      %s341 = scalar_select %p340, %s22, 0
      %s342 = sadd.s32 %s341, %s339
      %s343 = smul.addr %s337, 4
      %s344 = sadd.s32 %s342, %s343
      %s345 = smul.addr %s344, 4
      %s346 = scalar_lea.vmem %s3, %s345
      %p348 = scmp.eq.s32.totalorder %s23, 0
      // Predicated region
      $region33: #{mor_forward.26} parent=31 // pred_check
        %p349 = pneg %p348
      $region34: #{mor_forward.26} parent=31 // pred_check_branch
        %351 = sbr.rel (%p349) target = $region36
      $region35: #{mor_forward.26} parent=31 // pred_region
        %vm352 = vcmask 7168
        %353 = vst.msk [vmem:[#allocation2] sm:$0xff] %vm352, -1e+30
        %354 = vst.msk [vmem:[#allocation3] sm:$0xff] %vm352, 0.0
        %vm355 = vcmask 64512
        %356 = vst.msk [vmem:[#allocation4] sm:$0xff] %vm355, 0.0
      $region36: #{mor_forward.26} parent=31 // pred_fallthru
        _
      %p357 = scmp.le.s32.totalorder %s23, %s22
      // Predicated region
      $region37: #{mor_forward.26} parent=31 // pred_check
        %p358 = pneg %p357
      $region38: #{mor_forward.26} parent=31 // pred_check_branch
        %360 = sbr.rel (%p358) target = $region40
      $region39: #{mor_forward.26} parent=31 // pred_region
        %v361 = vld [vmem:[%s305] sm:$0xf]
        %v362 = vld [vmem:[%s318] sm:$0xf]
        %v363 = vld [vmem:[%s333] sm:$0xf]
        %vm364 = vcmask 64512
        %v366 = vsel %vm364, %v361, 0
        %v369 = vsel %vm364, %v362, 0
        %371 = vmatprep.subr.bf16.mxu0 0
        %372 = vmatpush1.bf16.xpose.msra.mxu0 %v369
        %373 = vmatprep.subr.bf16.mxu0 0
        %374 = vmatpush1.bf16.xpose.msra.mxu0 0
        %375 = vmatprep.subr.bf16.mxu0 0
        %376 = vmatpush1.bf16.xpose.msra.mxu0 0
        %377 = vmatprep.subr.bf16.mxu0 0
        %378 = vmatpush1.bf16.xpose.msra.mxu0 0
        %379 = vmatprep.subr.bf16.mxu0 0
        %380 = vmatpush1.bf16.xpose.msra.mxu0 0
        %381 = vmatprep.subr.bf16.mxu0 0
        %382 = vmatpush1.bf16.xpose.msra.mxu0 0
        %383 = vmatprep.subr.bf16.mxu0 0
        %384 = vmatpush1.bf16.xpose.msra.mxu0 0
        %385 = vmatprep.subr.bf16.mxu0 0
        %386 = vmatpush1.bf16.xpose.msra.mxu0 0
        %387 = vmatprep.subr.bf16.mxu0 0
        %388 = vmatpush1.bf16.xpose.msra.mxu0 0
        %389 = vmatprep.subr.bf16.mxu0 0
        %390 = vmatpush1.bf16.xpose.msra.mxu0 0
        %391 = vmatprep.subr.bf16.mxu0 0
        %392 = vmatpush1.bf16.xpose.msra.mxu0 0
        %393 = vmatprep.subr.bf16.mxu0 0
        %394 = vmatpush1.bf16.xpose.msra.mxu0 0
        %395 = vmatprep.subr.bf16.mxu0 0
        %396 = vmatpush1.bf16.xpose.msra.mxu0 0
        %397 = vmatprep.subr.bf16.mxu0 0
        %398 = vmatpush1.bf16.xpose.msra.mxu0 0
        %399 = vmatprep.subr.bf16.mxu0 0
        %400 = vmatpush1.bf16.xpose.msra.mxu0 0
        %401 = vmatprep.subr.bf16.mxu0 0
        %402 = vmatpush1.bf16.xpose.msra.mxu0 0
        %403 = vmatprep.mubr.bf16.mxu0 0
        %404 = vmatmul.mubr.bf16.gmra.mrb[0].mxu0 %v366
        %v405 = vpop.f32.mrb[0].mxu0
        %v406 = vadd.f32 0.0, %v405
        %v407 = vpop.f32.mrb[0].mxu0
        %v408 = vpop.f32.mrb[0].mxu0
        %v409 = vpop.f32.mrb[0].mxu0
        %410 = vdwg.mxu0
        %v411 = vmul.f32 %v406, 0.35355338
        %s412 = smul.u32 %s22, 8
        %v413 = vlaneseq
        %v414 = vshrl.u32 %v413, 7
        %v415 = vstv %s412
        %v416 = vadd.s32 %v415, %v414
        %s417 = smul.u32 %s23, 8
        %v418 = vlaneseq
        %v419 = vand.u32 %v418, 127
        %v420 = vstv %s417
        %v421 = vadd.s32 %v420, %v419
        %vm422 = vcmp.le.s32.totalorder %v421, %v416
        %v423 = vsel %vm422, %v411, -1e+30
        %v424 = vld [vmem:[#allocation2] sm:$0xff]
        %v425 = vsel %vm364, %v423, -inf
        %426 = vmax.xlane.f32.xlu0 %v425
        %v427 = vpop.xlane.xlu0 %426
        %v428 = vmax.f32 %v424, %v427
        %v429 = vsub.f32 %v424, %v428
        %v430 = vmul.f32 %v429, 1.442695
        %v431 = vpow.pop %v430
        %433 = vset.pattern.permute.xlu0 0
        %434 = vperm.xlu0 %433, %v428
        %v435 = vpop.permute.xlu0 %434
        %v437 = vsub.f32 %v423, %v435
        %v438 = vmul.f32 %v437, 1.442695
        %v439 = vpow.pop %v438
        %v440 = vld [vmem:[#allocation3] sm:$0xff]
        %v441 = vmul.f32 %v431, %v440
        %v442 = vsel %vm364, %v439, 0.0
        %443 = vadd.xlane.f32.xlu0 %v442
        %v444 = vpop.xlane.xlu0 %443
        %v445 = vadd.f32 %v441, %v444
        %vm446 = vcmask 7168
        %447 = vst.msk [vmem:[#allocation3] sm:$0xff] %vm446, %v445
        %v448 = vld [vmem:[#allocation4] sm:$0xff]
        %450 = vset.pattern.permute.xlu0 0
        %451 = vperm.xlu0 %450, %v431
        %v452 = vpop.permute.xlu0 %451
        %v454 = vmul.f32 %v452, %v448
        %v455 = vpack.c.bf16 %v439, %v439
        %v457 = vsel %vm364, %v455, 0
        %vm459 = vcmask 1043456
        %v461 = vsel %vm459, %v363, 0
        %463 = vmatprep.subr.bf16.mxu0 0
        %464 = vmatpush1.bf16.msra.mxu0 %v461
        %465 = vmatprep.subr.bf16.mxu0 0
        %466 = vmatpush1.bf16.msra.mxu0 0
        %467 = vmatprep.subr.bf16.mxu0 0
        %468 = vmatpush1.bf16.msra.mxu0 0
        %469 = vmatprep.subr.bf16.mxu0 0
        %470 = vmatpush1.bf16.msra.mxu0 0
        %471 = vmatprep.subr.bf16.mxu0 0
        %472 = vmatpush1.bf16.msra.mxu0 0
        %473 = vmatprep.subr.bf16.mxu0 0
        %474 = vmatpush1.bf16.msra.mxu0 0
        %475 = vmatprep.subr.bf16.mxu0 0
        %476 = vmatpush1.bf16.msra.mxu0 0
        %477 = vmatprep.subr.bf16.mxu0 0
        %478 = vmatpush1.bf16.msra.mxu0 0
        %479 = vmatprep.subr.bf16.mxu0 0
        %480 = vmatpush1.bf16.msra.mxu0 0
        %481 = vmatprep.subr.bf16.mxu0 0
        %482 = vmatpush1.bf16.msra.mxu0 0
        %483 = vmatprep.subr.bf16.mxu0 0
        %484 = vmatpush1.bf16.msra.mxu0 0
        %485 = vmatprep.subr.bf16.mxu0 0
        %486 = vmatpush1.bf16.msra.mxu0 0
        %487 = vmatprep.subr.bf16.mxu0 0
        %488 = vmatpush1.bf16.msra.mxu0 0
        %489 = vmatprep.subr.bf16.mxu0 0
        %490 = vmatpush1.bf16.msra.mxu0 0
        %491 = vmatprep.subr.bf16.mxu0 0
        %492 = vmatpush1.bf16.msra.mxu0 0
        %493 = vmatprep.subr.bf16.mxu0 0
        %494 = vmatpush1.bf16.msra.mxu0 0
        %495 = vmatprep.mubr.bf16.mxu0 0
        %496 = vmatmul.mubr.bf16.gmra.mrb[0].mxu0 %v457
        %v497 = vpop.f32.mrb[0].mxu0
        %v498 = vadd.f32 0.0, %v497
        %v499 = vpop.f32.mrb[0].mxu0
        %v500 = vpop.f32.mrb[0].mxu0
        %v501 = vpop.f32.mrb[0].mxu0
        %502 = vdwg.mxu0
        %v503 = vadd.f32 %v454, %v498
        %504 = vst.msk [vmem:[#allocation4] sm:$0xff] %vm364, %v503
        %505 = vst.msk [vmem:[#allocation2] sm:$0xff] %vm446, %v428
      $region40: #{mor_forward.26} parent=31 // pred_fallthru
        _
      // Predicated region
      $region41: #{mor_forward.26} parent=31 // pred_check
        %p506 = pneg %p348
      $region42: #{mor_forward.26} parent=31 // pred_check_branch
        %508 = sbr.rel (%p506) target = $region44
      $region43: #{mor_forward.26} parent=31 // pred_region
        %v509 = vld [vmem:[#allocation4] sm:$0xff]
        %v510 = vld [vmem:[#allocation3] sm:$0xff]
        %512 = vset.pattern.permute.xlu0 0
        %513 = vperm.xlu0 %512, %v510
        %v514 = vpop.permute.xlu0 %513
        %v516 = vrcp.pop %v514
        %v517 = vmul.f32 %v509, %v516
        %v518 = vpack.c.bf16 %v517, %v517
        %vm519 = vcmask 60416
        %520 = vst.msk [vmem:[%s346] sm:$0xf] %vm519, %v518
      $region44: #{mor_forward.26} parent=31 // pred_fallthru
        _
      %p521 = scmp.lt.s32.totalorder %s20, 1
      %s522 = scalar_select %p521, %s20, 1
      %p523 = scmp.lt.s32.totalorder %s21, 3
      %s524 = scalar_select %p523, %s21, 3
      %p525 = scmp.lt.s32.totalorder %s22, 0
      %s526 = scalar_select %p525, %s22, 0
      %s527 = sadd.s32 %s526, %s524
      %s528 = smul.addr %s522, 4
      %s529 = sadd.s32 %s527, %s528
      %s530 = smul.addr %s529, 4
      %s531 = scalar_lea.vmem %s3, %s530
      // Predicated region
      $region45: #{mor_forward.26} parent=31 // pred_check
        %p532 = pneg %p160
      $region46: #{mor_forward.26} parent=31 // pred_check_branch
        %534 = sbr.rel (%p532) target = $region48
      $region47: #{mor_forward.26} parent=31 // pred_region
        _
      $region48: #{mor_forward.26} parent=31 // pred_fallthru
        _
    $region32: #{mor_forward.26} parent=5 // pred_fallthru
      _
    %p535 = scmp.le.s32.totalorder 2, %s9
    // Predicated region
    $region49: #{mor_forward.26} parent=5 // pred_check
      %p536 = pneg %p535
    $region50: #{mor_forward.26} parent=5 // pred_check_branch
      %538 = sbr.rel (%p536) target = $region52
    $region51: #{mor_forward.26} parent=5 // pred_region
      %s539 = ssub.s32 %s9, 2
      // Predicated region
      $region53: #{mor_forward.26} parent=51 // pred_check
        %p540 = pneg %p166
      $region54: #{mor_forward.26} parent=51 // pred_check_branch
        %542 = sbr.rel (%p540) target = $region56
      $region55: #{mor_forward.26} parent=51 // pred_region
        %p543 = scmp.lt.s32.totalorder %s24, 1
        %s544 = scalar_select %p543, %s24, 1
        %p545 = scmp.lt.s32.totalorder %s25, 3
        %s546 = scalar_select %p545, %s25, 3
        %p547 = scmp.lt.s32.totalorder %s26, 0
        %s548 = scalar_select %p547, %s26, 0
        %s549 = sadd.s32 %s548, %s546
        %s550 = smul.addr %s544, 4
        %s551 = sadd.s32 %s549, %s550
        %s552 = smul.addr %s551, 4
        %s553 = scalar_lea.vmem %s3, %s552
      $region56: #{mor_forward.26} parent=51 // pred_fallthru
        _
    $region52: #{mor_forward.26} parent=5 // pred_fallthru
      _
  $region6: #{mor_forward.26} parent=0 // loop_footer
    %s13 = sadd.s32 1, %s9
  $region7: #{mor_forward.26} parent=0 // loop_footer_branch
    %8 = sbr.rel target = $region3
  $region8: #{mor_forward.26} parent=0 // loop_exit
    _

// kernel: mor_forward.28
$region0: #{mor_forward.28}
  #allocation0 [shape = 'u32[]', space=smem, size = 0x4, offset = 0x4, fixed_abs, tag = 'smem constant byte address 0x4 - core index']
  #allocation1 [shape = 'u32[144,128]{1,0:T(1,128)}', space=vmem, size = 0x12000, scoped, tag = 'internal scratch']
  %s0 = inlined_call_operand.vmem [shape: bf16[16,128], index: 0, kind: input, shape index: {}]
  %s1 = inlined_call_operand.vmem [shape: f32[1,128], index: 1, kind: input, shape index: {}]
  %s2 = inlined_call_operand.vmem [shape: f32[1,128], index: 2, kind: input, shape index: {}]
  %s3 = inlined_call_operand.vmem [shape: bf16[16,128], index: 3, kind: output, shape index: {}]
  %s4 = sld [smem:[#allocation0]]
  $region22: #{mor_forward.28} parent=0
    _
  %s6 = ssub.s32 1, %s4
  %s7 = scalar_select 0, %s6, %s4
  // Predicated region
  $region2: #{mor_forward.28} parent=0 // pred_check
    _
  $region3: #{mor_forward.28} parent=0 // pred_check_branch
    %9 = sbr.rel (0) target = $region5
  $region4: #{mor_forward.28} parent=0 // pred_region
    _
  $region5: #{mor_forward.28} parent=0 // pred_fallthru
    _
  // Predicated region
  $region6: #{mor_forward.28} parent=0 // pred_check
    _
  $region7: #{mor_forward.28} parent=0 // pred_check_branch
    %11 = sbr.rel (0) target = $region9
  $region8: #{mor_forward.28} parent=0 // pred_region
    _
  $region9: #{mor_forward.28} parent=0 // pred_fallthru
    _
  // Predicated region
  $region10: #{mor_forward.28} parent=0 // pred_check
    _
  $region11: #{mor_forward.28} parent=0 // pred_check_branch
    %13 = sbr.rel (0) target = $region13
  $region12: #{mor_forward.28} parent=0 // pred_region
    _
  $region13: #{mor_forward.28} parent=0 // pred_fallthru
    _
  %v14 = vld [vmem:[%s0] sm:$0xf]
  %v15 = vld [vmem:[%s0 + $0x4] sm:$0xf]
  %v16 = vunpack.c.l.bf16 %v14
  %v17 = vunpack.c.l.bf16 %v15
  %18 = vadd.xlane.f32.xlu0 %v16
  %v19 = vpop.xlane.xlu0 %18
  %20 = vadd.xlane.f32.xlu0 %v17
  %v21 = vpop.xlane.xlu0 %20
  %v22 = vmul.f32 %v19, 0.03125
  %v23 = vmul.f32 %v21, 0.03125
  %v24 = vsub.f32 %v16, %v22
  %v25 = vsub.f32 %v17, %v23
  %v26 = vmul.f32 %v24, %v24
  %v27 = vmul.f32 %v25, %v25
  %28 = vadd.xlane.f32.xlu0 %v26
  %v29 = vpop.xlane.xlu0 %28
  %30 = vadd.xlane.f32.xlu0 %v27
  %v31 = vpop.xlane.xlu0 %30
  %v32 = vmul.f32 %v29, 0.03125
  %v33 = vmul.f32 %v31, 0.03125
  %v34 = vadd.f32 %v32, 1e-05
  %v35 = vadd.f32 %v33, 1e-05
  %v36 = vrsqrt.pop %v34
  %v37 = vrsqrt.pop %v35
  %v38 = vmul.f32 %v24, %v36
  %v39 = vmul.f32 %v25, %v37
  %v40 = vld [vmem:[%s1] sm:$0x1]
  %v42 = vlaneseq
  %v43 = vshrl.u32 %v42, 7
  %v44 = vsub.s32 0, %v43
  %v45 = vrot.slane %v40, %v44
  %v47 = vmul.f32 %v38, %v45
  %v48 = vmul.f32 %v39, %v45
  %v49 = vld [vmem:[%s2] sm:$0x1]
  %v51 = vlaneseq
  %v52 = vshrl.u32 %v51, 7
  %v53 = vsub.s32 0, %v52
  %v54 = vrot.slane %v49, %v53
  %v56 = vadd.f32 %v47, %v54
  %v57 = vadd.f32 %v48, %v54
  %v58 = vpack.c.bf16 %v57, %v56
  %v60 = vunpack.c.l.b16 %v58
  %v61 = vunpack.c.h.b16 %v58
  %v62 = vpack.c.b16 %v60, %v60
  %v63 = vpack.c.b16 %v61, %v61
  %66 = vst [vmem:[%s3] sm:$0xf] %v62
  %67 = vst [vmem:[%s3 + $0x4] sm:$0xf] %v63
  // Predicated region
  $region14: #{mor_forward.28} parent=0 // pred_check
    _
  $region15: #{mor_forward.28} parent=0 // pred_check_branch
    %69 = sbr.rel (0) target = $region17
  $region16: #{mor_forward.28} parent=0 // pred_region
    _
  $region17: #{mor_forward.28} parent=0 // pred_fallthru
    _
  // Predicated region
  $region18: #{mor_forward.28} parent=0 // pred_check
    _
  $region19: #{mor_forward.28} parent=0 // pred_check_branch
    %71 = sbr.rel (0) target = $region21
  $region20: #{mor_forward.28} parent=0 // pred_region
    _
  $region21: #{mor_forward.28} parent=0 // pred_fallthru
    _

// kernel: mor_forward.29
$region0: #{mor_forward.29}
  #allocation0 [shape = 'u32[]', space=smem, size = 0x4, offset = 0x4, fixed_abs, tag = 'smem constant byte address 0x4 - core index']
  #allocation1 [shape = 'u32[144,128]{1,0:T(1,128)}', space=vmem, size = 0x12000, scoped, tag = 'internal scratch']
  #allocation2 [shape = 'f32[16,128]{1,0:T(8,128)}', space=vmem, size = 0x2000, scoped, tag = 'scratch operand']
  %s0 = inlined_call_operand.vmem [shape: bf16[16,128], index: 0, kind: input, shape index: {}]
  %s1 = inlined_call_operand.vmem [shape: bf16[128,128], index: 1, kind: input, shape index: {}]
  %s2 = inlined_call_operand.vmem [shape: f32[1,128], index: 2, kind: input, shape index: {}]
  %s3 = inlined_call_operand.vmem [shape: f32[16,128], index: 3, kind: output, shape index: {}]
  %s4 = sld [smem:[#allocation0]]
  $region30: #{mor_forward.29} parent=0
    _
  %s6 = ssub.s32 1, %s4
  %s7 = scalar_select 0, %s6, %s4
  // Predicated region
  $region2: #{mor_forward.29} parent=0 // pred_check
    _
  $region3: #{mor_forward.29} parent=0 // pred_check_branch
    %9 = sbr.rel (0) target = $region5
  $region4: #{mor_forward.29} parent=0 // pred_region
    _
  $region5: #{mor_forward.29} parent=0 // pred_fallthru
    _
  // Predicated region
  $region6: #{mor_forward.29} parent=0 // pred_check
    _
  $region7: #{mor_forward.29} parent=0 // pred_check_branch
    %11 = sbr.rel (0) target = $region9
  $region8: #{mor_forward.29} parent=0 // pred_region
    _
  $region9: #{mor_forward.29} parent=0 // pred_fallthru
    _
  // Predicated region
  $region10: #{mor_forward.29} parent=0 // pred_check
    _
  $region11: #{mor_forward.29} parent=0 // pred_check_branch
    %13 = sbr.rel (0) target = $region13
  $region12: #{mor_forward.29} parent=0 // pred_region
    _
  $region13: #{mor_forward.29} parent=0 // pred_fallthru
    _
  %p15 = scmp.eq.s32.totalorder 0, 0
  // Predicated region
  $region14: #{mor_forward.29} parent=0 // pred_check
    %p16 = pneg %p15
  $region15: #{mor_forward.29} parent=0 // pred_check_branch
    %18 = sbr.rel (%p16) target = $region17
  $region16: #{mor_forward.29} parent=0 // pred_region
    %19 = vst [vmem:[#allocation2] sm:$0xff] 0.0
    %20 = vst [vmem:[#allocation2 + $0x8] sm:$0xff] 0.0
  $region17: #{mor_forward.29} parent=0 // pred_fallthru
    _
  %v21 = vld [vmem:[#allocation2] sm:$0xff]
  %v22 = vld [vmem:[#allocation2 + $0x8] sm:$0xff]
  %v23 = vld [vmem:[%s0] sm:$0xf]
  %v24 = vld [vmem:[%s0 + $0x4] sm:$0xf]
  %v25 = vld [vmem:[%s1] sm:$0xf]
  %v26 = vld [vmem:[%s1 + $0x4] sm:$0xf]
  %v27 = vld [vmem:[%s1 + $0x8] sm:$0xf]
  %v28 = vld [vmem:[%s1 + $0xc] sm:$0xf]
  %v29 = vld [vmem:[%s1 + $0x10] sm:$0xf]
  %v30 = vld [vmem:[%s1 + $0x14] sm:$0xf]
  %v31 = vld [vmem:[%s1 + $0x18] sm:$0xf]
  %v32 = vld [vmem:[%s1 + $0x1c] sm:$0xf]
  %v33 = vld [vmem:[%s1 + $0x20] sm:$0xf]
  %v34 = vld [vmem:[%s1 + $0x24] sm:$0xf]
  %v35 = vld [vmem:[%s1 + $0x28] sm:$0xf]
  %v36 = vld [vmem:[%s1 + $0x2c] sm:$0xf]
  %v37 = vld [vmem:[%s1 + $0x30] sm:$0xf]
  %v38 = vld [vmem:[%s1 + $0x34] sm:$0xf]
  %v39 = vld [vmem:[%s1 + $0x38] sm:$0xf]
  %v40 = vld [vmem:[%s1 + $0x3c] sm:$0xf]
  %v43 = vunpack.c.l.b16 %v23
  %v44 = vunpack.c.l.b16 %v24
  %v45 = vpack.c.b16 %v44, %v43
  %v63 = vunpack.c.l.b16 %v25
  %v64 = vunpack.c.l.b16 %v26
  %v65 = vunpack.c.l.b16 %v27
  %v66 = vunpack.c.l.b16 %v28
  %v67 = vunpack.c.l.b16 %v29
  %v68 = vunpack.c.l.b16 %v30
  %v69 = vunpack.c.l.b16 %v31
  %v70 = vunpack.c.l.b16 %v32
  %v71 = vunpack.c.l.b16 %v33
  %v72 = vunpack.c.l.b16 %v34
  %v73 = vunpack.c.l.b16 %v35
  %v74 = vunpack.c.l.b16 %v36
  %v75 = vunpack.c.l.b16 %v37
  %v76 = vunpack.c.l.b16 %v38
  %v77 = vunpack.c.l.b16 %v39
  %v78 = vunpack.c.l.b16 %v40
  %v79 = vpack.c.b16 %v64, %v63
  %v80 = vpack.c.b16 %v66, %v65
  %v81 = vpack.c.b16 %v68, %v67
  %v82 = vpack.c.b16 %v70, %v69
  %v83 = vpack.c.b16 %v72, %v71
  %v84 = vpack.c.b16 %v74, %v73
  %v85 = vpack.c.b16 %v76, %v75
  %v86 = vpack.c.b16 %v78, %v77
  %95 = vmatprep.subr.bf16.mxu0 0
  %96 = vmatpush1.bf16.msra.mxu0 %v79
  %97 = vmatprep.subr.bf16.mxu0 0
  %98 = vmatpush1.bf16.msra.mxu0 %v80
  %99 = vmatprep.subr.bf16.mxu0 0
  %100 = vmatpush1.bf16.msra.mxu0 %v81
  %101 = vmatprep.subr.bf16.mxu0 0
  %102 = vmatpush1.bf16.msra.mxu0 %v82
  %103 = vmatprep.subr.bf16.mxu0 0
  %104 = vmatpush1.bf16.msra.mxu0 %v83
  %105 = vmatprep.subr.bf16.mxu0 0
  %106 = vmatpush1.bf16.msra.mxu0 %v84
  %107 = vmatprep.subr.bf16.mxu0 0
  %108 = vmatpush1.bf16.msra.mxu0 %v85
  %109 = vmatprep.subr.bf16.mxu0 0
  %110 = vmatpush1.bf16.msra.mxu0 %v86
  %111 = vmatprep.subr.bf16.mxu0 0
  %112 = vmatpush1.bf16.msra.mxu0 0
  %113 = vmatprep.subr.bf16.mxu0 0
  %114 = vmatpush1.bf16.msra.mxu0 0
  %115 = vmatprep.subr.bf16.mxu0 0
  %116 = vmatpush1.bf16.msra.mxu0 0
  %117 = vmatprep.subr.bf16.mxu0 0
  %118 = vmatpush1.bf16.msra.mxu0 0
  %119 = vmatprep.subr.bf16.mxu0 0
  %120 = vmatpush1.bf16.msra.mxu0 0
  %121 = vmatprep.subr.bf16.mxu0 0
  %122 = vmatpush1.bf16.msra.mxu0 0
  %123 = vmatprep.subr.bf16.mxu0 0
  %124 = vmatpush1.bf16.msra.mxu0 0
  %125 = vmatprep.subr.bf16.mxu0 0
  %126 = vmatpush1.bf16.msra.mxu0 0
  %127 = vmatprep.mubr.bf16.mxu0 0
  %128 = vmatmul.mubr.bf16.gmra.mrb[0].mxu0 %v45
  %v129 = vpop.f32.mrb[0].mxu0
  %v130 = vadd.f32 0.0, %v129
  %v131 = vpop.f32.mrb[0].mxu0
  %v132 = vpop.f32.mrb[0].mxu0
  %v133 = vadd.f32 0.0, %v132
  %v134 = vpop.f32.mrb[0].mxu0
  %135 = vdwg.mxu0
  %v136 = vadd.f32 %v21, %v130
  %v137 = vadd.f32 %v22, %v133
  %138 = vst [vmem:[#allocation2] sm:$0xff] %v136
  %139 = vst [vmem:[#allocation2 + $0x8] sm:$0xff] %v137
  // Predicated region
  $region18: #{mor_forward.29} parent=0 // pred_check
    %p140 = pneg %p15
  $region19: #{mor_forward.29} parent=0 // pred_check_branch
    %142 = sbr.rel (%p140) target = $region21
  $region20: #{mor_forward.29} parent=0 // pred_region
    %v143 = vld [vmem:[#allocation2] sm:$0xff]
    %v144 = vld [vmem:[#allocation2 + $0x8] sm:$0xff]
    %v145 = vld [vmem:[%s2] sm:$0x1]
    %v147 = vlaneseq
    %v148 = vshrl.u32 %v147, 7
    %v149 = vsub.s32 0, %v148
    %v150 = vrot.slane %v145, %v149
    %v152 = vadd.f32 %v143, %v150
    %v153 = vadd.f32 %v144, %v150
    %154 = vst [vmem:[%s3] sm:$0xff] %v152
    %155 = vst [vmem:[%s3 + $0x8] sm:$0xff] %v153
  $region21: #{mor_forward.29} parent=0 // pred_fallthru
    _
  // Predicated region
  $region22: #{mor_forward.29} parent=0 // pred_check
    _
  $region23: #{mor_forward.29} parent=0 // pred_check_branch
    %157 = sbr.rel (0) target = $region25
  $region24: #{mor_forward.29} parent=0 // pred_region
    _
  $region25: #{mor_forward.29} parent=0 // pred_fallthru
    _
  // Predicated region
  $region26: #{mor_forward.29} parent=0 // pred_check
    _
  $region27: #{mor_forward.29} parent=0 // pred_check_branch
    %159 = sbr.rel (0) target = $region29
  $region28: #{mor_forward.29} parent=0 // pred_region
    _
  $region29: #{mor_forward.29} parent=0 // pred_fallthru
    _

// kernel: mor_forward.30
$region0: #{mor_forward.30}
  #allocation0 [shape = 'u32[]', space=smem, size = 0x4, offset = 0x4, fixed_abs, tag = 'smem constant byte address 0x4 - core index']
  #allocation1 [shape = 'u32[144,128]{1,0:T(1,128)}', space=vmem, size = 0x12000, scoped, tag = 'internal scratch']
  #allocation2 [shape = 'f32[16,128]{1,0:T(8,128)}', space=vmem, size = 0x2000, scoped, tag = 'scratch operand']
  #allocation3 [shape = 's32[1]{0}', space=sflag, size = 0x4, scoped, tag = 'scoped memory for mor_forward.30']
  #allocation4 [shape = 'u8[512]{0}', space=smem, size = 0x200, scoped, tag = 'prefetched SMEM operand 0']
  %s0 = inlined_call_operand.vmem [shape: s32[3], index: 0, kind: input, shape index: {}]
  %s1 = inlined_call_operand.vmem [shape: bf16[48,128], index: 1, kind: input, shape index: {}]
  %s2 = inlined_call_operand.vmem [shape: f32[48,1], index: 2, kind: input, shape index: {}]
  %s3 = inlined_call_operand.vmem [shape: bf16[2,128,128], index: 3, kind: input, shape index: {}]
  %s4 = inlined_call_operand.vmem [shape: f32[2,1,128], index: 4, kind: input, shape index: {}]
  %s5 = inlined_call_operand.vmem [shape: bf16[2,128,128], index: 5, kind: input, shape index: {}]
  %s6 = inlined_call_operand.vmem [shape: f32[2,1,128], index: 6, kind: input, shape index: {}]
  %s7 = inlined_call_operand.vmem [shape: bf16[48,128], index: 7, kind: output, shape index: {}]
  %s8 = sld [smem:[#allocation0]]
  $region65: #{mor_forward.30} parent=0
    _
  %s10 = ssub.s32 1, %s8
  %s11 = scalar_select 0, %s10, %s8
  %s12 = sshll.u32 %s0, 4
  %s13 = int_to_ptr.vmem [resolvable:$true] %s12
  %15 = dma.vmem_to_smem %s13, 16, [#allocation4], [#allocation3]
  %16 = dma.done [#allocation3], 16
  %17 = sfence
  loop: start=0, step=1, limit=5
  $region2: #{mor_forward.30} parent=0 // loop_pre_header
    _
  $region3: #{mor_forward.30} parent=0 // loop_header
    %s19 = sphi 0, %s23
    %p20 = scmp.ge.s32.totalorder %s19, 5
    %s26 = sphi 0, %s38
    %s27 = sphi 0, %s34
    %s28 = sphi 0, %s26
    %s29 = sphi 0, %s27
    %s30 = sphi 0, %s28
    %s31 = sphi 0, %s29
    %s41 = sphi 0, %s43
    %s44 = sphi 0, %s41
    %s45 = sphi 0, %s44
    %s61 = sphi 0, %s45
    %s67 = sphi 0, %s69
    %s70 = sphi 0, %s67
    %s71 = sphi 0, %s70
    %s87 = sphi 0, %s71
    %s97 = sphi 0, %s99
    %s100 = sphi 0, %s97
    %s101 = sphi 0, %s100
    %s117 = sphi 0, %s101
    %s127 = sphi 0, %s129
    %s130 = sphi 0, %s127
    %s131 = sphi 0, %s130
    %s147 = sphi 0, %s131
    %s157 = sphi 0, %s159
    %s160 = sphi 0, %s157
    %s161 = sphi 0, %s160
    %s177 = sphi 0, %s161
    %s185 = sphi 0, %s187
    %s188 = sphi 0, %s185
    %s189 = sphi 0, %s188
    %s205 = sphi 0, %s189
    %s211 = sphi 0, %s213
    %s214 = sphi 0, %s211
    %s215 = sphi 0, %s214
    %s231 = sphi 0, %s215
  $region4: #{mor_forward.30} parent=0 // loop_header_branch
    %22 = sbr.rel (%p20) target = $region8
  $region5: #{mor_forward.30} parent=0 // loop_body
    %s24 = ssub.s32 %s19, 1
    %s25 = ssub.s32 %s19, 2
    %s32 = sadd.s32 1, %s27
    %p33 = scmp.ge.s32.totalorder %s32, 1
    %s34 = scalar_select %p33, 0, %s32
    %s35 = sadd.s32 1, %s26
    %s36 = scalar_select %p33, %s35, %s26
    %p37 = scmp.ge.s32.totalorder %s36, 3
    %s38 = scalar_select %p37, 0, %s36
    %s39 = ssub.s32 %s26, %s38
    %p40 = scmp.eq.s32.totalorder %s39, 0
    %s42 = sadd.s32 %s41, 1
    %s43 = scalar_select %p40, %s41, %s42
    %p46 = pneg %p40
    %p47 = scmp.eq.s32.totalorder %s19, 2
    %p48 = por %p46, %p47
    %p49 = scmp.ne.s32.totalorder %s41, %s44
    %p50 = scmp.eq.s32.totalorder %s19, 0
    %p51 = por %p49, %p50
    %p52 = scmp.ne.s32.totalorder %s41, %s44
    %p53 = scmp.eq.s32.totalorder %s24, 2
    %p54 = por %p52, %p53
    %p55 = scmp.ne.s32.totalorder %s44, %s45
    %p56 = scmp.eq.s32.totalorder %s24, 0
    %p57 = por %p55, %p56
    %p58 = scmp.ne.s32.totalorder %s44, %s45
    %p59 = scmp.eq.s32.totalorder %s25, 2
    %p60 = por %p58, %p59
    %p62 = scmp.ne.s32.totalorder %s45, %s61
    %p63 = scmp.eq.s32.totalorder %s25, 0
    %p64 = por %p62, %p63
    %s65 = ssub.s32 %s26, %s38
    %p66 = scmp.eq.s32.totalorder %s65, 0
    %s68 = sadd.s32 %s67, 1
    %s69 = scalar_select %p66, %s67, %s68
    %p72 = pneg %p66
    %p73 = scmp.eq.s32.totalorder %s19, 2
    %p74 = por %p72, %p73
    %p75 = scmp.ne.s32.totalorder %s67, %s70
    %p76 = scmp.eq.s32.totalorder %s19, 0
    %p77 = por %p75, %p76
    %p78 = scmp.ne.s32.totalorder %s67, %s70
    %p79 = scmp.eq.s32.totalorder %s24, 2
    %p80 = por %p78, %p79
    %p81 = scmp.ne.s32.totalorder %s70, %s71
    %p82 = scmp.eq.s32.totalorder %s24, 0
    %p83 = por %p81, %p82
    %p84 = scmp.ne.s32.totalorder %s70, %s71
    %p85 = scmp.eq.s32.totalorder %s25, 2
    %p86 = por %p84, %p85
    %p88 = scmp.ne.s32.totalorder %s71, %s87
    %p89 = scmp.eq.s32.totalorder %s25, 0
    %p90 = por %p88, %p89
    %s91 = sld [smem:[#allocation4 + %s26]]
    %s92 = sld [smem:[#allocation4 + %s38]]
    %s93 = ssub.s32 %s91, %s92
    %s94 = ssub.s32 %s27, %s34
    %s95 = sor.u32 %s93, %s94
    %p96 = scmp.eq.s32.totalorder %s95, 0
    %s98 = sadd.s32 %s97, 1
    %s99 = scalar_select %p96, %s97, %s98
    %p102 = pneg %p96
    %p103 = scmp.eq.s32.totalorder %s19, 2
    %p104 = por %p102, %p103
    %p105 = scmp.ne.s32.totalorder %s97, %s100
    %p106 = scmp.eq.s32.totalorder %s19, 0
    %p107 = por %p105, %p106
    %p108 = scmp.ne.s32.totalorder %s97, %s100
    %p109 = scmp.eq.s32.totalorder %s24, 2
    %p110 = por %p108, %p109
    %p111 = scmp.ne.s32.totalorder %s100, %s101
    %p112 = scmp.eq.s32.totalorder %s24, 0
    %p113 = por %p111, %p112
    %p114 = scmp.ne.s32.totalorder %s100, %s101
    %p115 = scmp.eq.s32.totalorder %s25, 2
    %p116 = por %p114, %p115
    %p118 = scmp.ne.s32.totalorder %s101, %s117
    %p119 = scmp.eq.s32.totalorder %s25, 0
    %p120 = por %p118, %p119
    %s121 = sld [smem:[#allocation4 + %s26]]
    %s122 = sld [smem:[#allocation4 + %s38]]
    %s123 = ssub.s32 %s121, %s122
    %s124 = ssub.s32 %s27, %s34
    %s125 = sor.u32 %s123, %s124
    %p126 = scmp.eq.s32.totalorder %s125, 0
    %s128 = sadd.s32 %s127, 1
    %s129 = scalar_select %p126, %s127, %s128
    %p132 = pneg %p126
    %p133 = scmp.eq.s32.totalorder %s19, 2
    %p134 = por %p132, %p133
    %p135 = scmp.ne.s32.totalorder %s127, %s130
    %p136 = scmp.eq.s32.totalorder %s19, 0
    %p137 = por %p135, %p136
    %p138 = scmp.ne.s32.totalorder %s127, %s130
    %p139 = scmp.eq.s32.totalorder %s24, 2
    %p140 = por %p138, %p139
    %p141 = scmp.ne.s32.totalorder %s130, %s131
    %p142 = scmp.eq.s32.totalorder %s24, 0
    %p143 = por %p141, %p142
    %p144 = scmp.ne.s32.totalorder %s130, %s131
    %p145 = scmp.eq.s32.totalorder %s25, 2
    %p146 = por %p144, %p145
    %p148 = scmp.ne.s32.totalorder %s131, %s147
    %p149 = scmp.eq.s32.totalorder %s25, 0
    %p150 = por %p148, %p149
    %s151 = sld [smem:[#allocation4 + %s26]]
    %s152 = sld [smem:[#allocation4 + %s38]]
    %s153 = ssub.s32 %s151, %s152
    %s154 = ssub.s32 %s27, %s34
    %s155 = sor.u32 %s153, %s154
    %p156 = scmp.eq.s32.totalorder %s155, 0
    %s158 = sadd.s32 %s157, 1
    %s159 = scalar_select %p156, %s157, %s158
    %p162 = pneg %p156
    %p163 = scmp.eq.s32.totalorder %s19, 2
    %p164 = por %p162, %p163
    %p165 = scmp.ne.s32.totalorder %s157, %s160
    %p166 = scmp.eq.s32.totalorder %s19, 0
    %p167 = por %p165, %p166
    %p168 = scmp.ne.s32.totalorder %s157, %s160
    %p169 = scmp.eq.s32.totalorder %s24, 2
    %p170 = por %p168, %p169
    %p171 = scmp.ne.s32.totalorder %s160, %s161
    %p172 = scmp.eq.s32.totalorder %s24, 0
    %p173 = por %p171, %p172
    %p174 = scmp.ne.s32.totalorder %s160, %s161
    %p175 = scmp.eq.s32.totalorder %s25, 2
    %p176 = por %p174, %p175
    %p178 = scmp.ne.s32.totalorder %s161, %s177
    %p179 = scmp.eq.s32.totalorder %s25, 0
    %p180 = por %p178, %p179
    %s181 = sld [smem:[#allocation4 + %s26]]
    %s182 = sld [smem:[#allocation4 + %s38]]
    %s183 = ssub.s32 %s181, %s182
    %p184 = scmp.eq.s32.totalorder %s183, 0
    %s186 = sadd.s32 %s185, 1
    %s187 = scalar_select %p184, %s185, %s186
    %p190 = pneg %p184
    %p191 = scmp.eq.s32.totalorder %s19, 2
    %p192 = por %p190, %p191
    %p193 = scmp.ne.s32.totalorder %s185, %s188
    %p194 = scmp.eq.s32.totalorder %s19, 0
    %p195 = por %p193, %p194
    %p196 = scmp.ne.s32.totalorder %s185, %s188
    %p197 = scmp.eq.s32.totalorder %s24, 2
    %p198 = por %p196, %p197
    %p199 = scmp.ne.s32.totalorder %s188, %s189
    %p200 = scmp.eq.s32.totalorder %s24, 0
    %p201 = por %p199, %p200
    %p202 = scmp.ne.s32.totalorder %s188, %s189
    %p203 = scmp.eq.s32.totalorder %s25, 2
    %p204 = por %p202, %p203
    %p206 = scmp.ne.s32.totalorder %s189, %s205
    %p207 = scmp.eq.s32.totalorder %s25, 0
    %p208 = por %p206, %p207
    %s209 = ssub.s32 %s26, %s38
    %p210 = scmp.eq.s32.totalorder %s209, 0
    %s212 = sadd.s32 %s211, 1
    %s213 = scalar_select %p210, %s211, %s212
    %p216 = pneg %p210
    %p217 = scmp.eq.s32.totalorder %s19, 2
    %p218 = por %p216, %p217
    %p219 = scmp.ne.s32.totalorder %s211, %s214
    %p220 = scmp.eq.s32.totalorder %s19, 0
    %p221 = por %p219, %p220
    %p222 = scmp.ne.s32.totalorder %s211, %s214
    %p223 = scmp.eq.s32.totalorder %s24, 2
    %p224 = por %p222, %p223
    %p225 = scmp.ne.s32.totalorder %s214, %s215
    %p226 = scmp.eq.s32.totalorder %s24, 0
    %p227 = por %p225, %p226
    %p228 = scmp.ne.s32.totalorder %s214, %s215
    %p229 = scmp.eq.s32.totalorder %s25, 2
    %p230 = por %p228, %p229
    %p232 = scmp.ne.s32.totalorder %s215, %s231
    %p233 = scmp.eq.s32.totalorder %s25, 0
    %p234 = por %p232, %p233
    %p235 = scmp.le.s32.totalorder 1, %s19
    %p236 = scmp.lt.s32.totalorder %s19, 4
    %p237 = pnand %p235, %p236
    %p238 = pneg %p237
    // Predicated region
    $region9: #{mor_forward.30} parent=5 // pred_check
      _
    $region10: #{mor_forward.30} parent=5 // pred_check_branch
      %240 = sbr.rel (%p237) target = $region12
    $region11: #{mor_forward.30} parent=5 // pred_region
      %s241 = ssub.s32 %s19, 1
    $region12: #{mor_forward.30} parent=5 // pred_fallthru
      _
    %p242 = scmp.lt.s32.totalorder %s19, 3
    // Predicated region
    $region13: #{mor_forward.30} parent=5 // pred_check
      %p243 = pneg %p242
    $region14: #{mor_forward.30} parent=5 // pred_check_branch
      %245 = sbr.rel (%p243) target = $region16
    $region15: #{mor_forward.30} parent=5 // pred_region
      // Predicated region
      $region17: #{mor_forward.30} parent=15 // pred_check
        %p246 = pneg %p51
      $region18: #{mor_forward.30} parent=15 // pred_check_branch
        %248 = sbr.rel (%p246) target = $region20
      $region19: #{mor_forward.30} parent=15 // pred_region
        %s249 = smul.u32 2, %s26
        %p250 = scmp.lt.s32.totalorder %s249, 5
        %s251 = scalar_select %p250, %s249, 5
        %s252 = smul.addr %s251, 4
        %s253 = scalar_lea.vmem %s1, %s252
        %s254 = smul.u32 2, %s26
      $region20: #{mor_forward.30} parent=15 // pred_fallthru
        _
      // Predicated region
      $region21: #{mor_forward.30} parent=15 // pred_check
        %p255 = pneg %p77
      $region22: #{mor_forward.30} parent=15 // pred_check_branch
        %257 = sbr.rel (%p255) target = $region24
      $region23: #{mor_forward.30} parent=15 // pred_region
        %s258 = smul.u32 2, %s26
        %p259 = scmp.lt.s32.totalorder %s258, 5
        %s260 = scalar_select %p259, %s258, 5
        %s261 = smul.addr %s260, 8
        %s262 = scalar_lea.vmem %s2, %s261
        %s263 = smul.u32 2, %s26
      $region24: #{mor_forward.30} parent=15 // pred_fallthru
        _
      // Predicated region
      $region25: #{mor_forward.30} parent=15 // pred_check
        %p264 = pneg %p107
      $region26: #{mor_forward.30} parent=15 // pred_check_branch
        %266 = sbr.rel (%p264) target = $region28
      $region27: #{mor_forward.30} parent=15 // pred_region
        %s267 = sld [smem:[#allocation4 + %s26]]
        %p268 = scmp.lt.s32.totalorder %s267, 1
        %s269 = scalar_select %p268, %s267, 1
        %p270 = scmp.lt.s32.totalorder %s27, 0
        %s271 = scalar_select %p270, %s27, 0
        %s272 = smul.addr %s269, 16
        %s273 = sadd.s32 %s271, %s272
        %s274 = smul.addr %s273, 4
        %s275 = scalar_lea.vmem %s3, %s274
        %s276 = sld [smem:[#allocation4 + %s26]]
      $region28: #{mor_forward.30} parent=15 // pred_fallthru
        _
      // Predicated region
      $region29: #{mor_forward.30} parent=15 // pred_check
        %p277 = pneg %p137
      $region30: #{mor_forward.30} parent=15 // pred_check_branch
        %279 = sbr.rel (%p277) target = $region32
      $region31: #{mor_forward.30} parent=15 // pred_region
        %s280 = sld [smem:[#allocation4 + %s26]]
        %p281 = scmp.lt.s32.totalorder %s280, 1
        %s282 = scalar_select %p281, %s280, 1
        %p283 = scmp.lt.s32.totalorder %s27, 0
        %s284 = scalar_select %p283, %s27, 0
        %s285 = sadd.s32 %s284, %s282
        %s286 = scalar_lea.vmem %s4, %s285
        %s287 = sld [smem:[#allocation4 + %s26]]
      $region32: #{mor_forward.30} parent=15 // pred_fallthru
        _
      // Predicated region
      $region33: #{mor_forward.30} parent=15 // pred_check
        %p288 = pneg %p167
      $region34: #{mor_forward.30} parent=15 // pred_check_branch
        %290 = sbr.rel (%p288) target = $region36
      $region35: #{mor_forward.30} parent=15 // pred_region
        %s291 = sld [smem:[#allocation4 + %s26]]
        %s292 = smul.u32 16, %s27
        %p293 = scmp.lt.s32.totalorder %s291, 1
        %s294 = scalar_select %p293, %s291, 1
        %p295 = scmp.lt.s32.totalorder %s292, 15
        %s296 = scalar_select %p295, %s292, 15
        %s297 = smul.addr %s294, 16
        %s298 = sadd.s32 %s296, %s297
        %s299 = smul.addr %s298, 4
        %s300 = scalar_lea.vmem %s5, %s299
        %s301 = sld [smem:[#allocation4 + %s26]]
        %s302 = smul.u32 16, %s27
      $region36: #{mor_forward.30} parent=15 // pred_fallthru
        _
      // Predicated region
      $region37: #{mor_forward.30} parent=15 // pred_check
        %p303 = pneg %p195
      $region38: #{mor_forward.30} parent=15 // pred_check_branch
        %305 = sbr.rel (%p303) target = $region40
      $region39: #{mor_forward.30} parent=15 // pred_region
        %s306 = sld [smem:[#allocation4 + %s26]]
        %p307 = scmp.lt.s32.totalorder %s306, 1
        %s308 = scalar_select %p307, %s306, 1
        %s309 = scalar_lea.vmem %s6, %s308
        %s310 = sld [smem:[#allocation4 + %s26]]
      $region40: #{mor_forward.30} parent=15 // pred_fallthru
        _
    $region16: #{mor_forward.30} parent=5 // pred_fallthru
      _
    %p311 = scmp.le.s32.totalorder 1, %s19
    %p312 = scmp.lt.s32.totalorder %s19, 4
    %p313 = pnand %p311, %p312
    %p314 = pneg %p313
    // Predicated region
    $region41: #{mor_forward.30} parent=5 // pred_check
      _
    $region42: #{mor_forward.30} parent=5 // pred_check_branch
      %316 = sbr.rel (%p313) target = $region44
    $region43: #{mor_forward.30} parent=5 // pred_region
      %s317 = ssub.s32 %s19, 1
      %s318 = smul.u32 2, %s28
      %p319 = scmp.lt.s32.totalorder %s318, 5
      %s320 = scalar_select %p319, %s318, 5
      %s321 = smul.addr %s320, 4
      %s322 = scalar_lea.vmem %s1, %s321
      %p323 = pneg %p57
      %p324 = pneg %p54
      %s325 = smul.u32 2, %s28
      %p326 = scmp.lt.s32.totalorder %s325, 5
      %s327 = scalar_select %p326, %s325, 5
      %s328 = smul.addr %s327, 8
      %s329 = scalar_lea.vmem %s2, %s328
      %p330 = pneg %p83
      %p331 = pneg %p80
      %s332 = sld [smem:[#allocation4 + %s28]]
      %p333 = scmp.lt.s32.totalorder %s332, 1
      %s334 = scalar_select %p333, %s332, 1
      %p335 = scmp.lt.s32.totalorder %s29, 0
      %s336 = scalar_select %p335, %s29, 0
      %s337 = smul.addr %s334, 16
      %s338 = sadd.s32 %s336, %s337
      %s339 = smul.addr %s338, 4
      %s340 = scalar_lea.vmem %s3, %s339
      %p341 = pneg %p113
      %p342 = pneg %p110
      %s343 = sld [smem:[#allocation4 + %s28]]
      %p344 = scmp.lt.s32.totalorder %s343, 1
      %s345 = scalar_select %p344, %s343, 1
      %p346 = scmp.lt.s32.totalorder %s29, 0
      %s347 = scalar_select %p346, %s29, 0
      %s348 = sadd.s32 %s347, %s345
      %s349 = scalar_lea.vmem %s4, %s348
      %p350 = pneg %p143
      %p351 = pneg %p140
      %s352 = sld [smem:[#allocation4 + %s28]]
      %s353 = smul.u32 16, %s29
      %p354 = scmp.lt.s32.totalorder %s352, 1
      %s355 = scalar_select %p354, %s352, 1
      %p356 = scmp.lt.s32.totalorder %s353, 15
      %s357 = scalar_select %p356, %s353, 15
      %s358 = smul.addr %s355, 16
      %s359 = sadd.s32 %s357, %s358
      %s360 = smul.addr %s359, 4
      %s361 = scalar_lea.vmem %s5, %s360
      %p362 = pneg %p173
      %p363 = pneg %p170
      %s364 = sld [smem:[#allocation4 + %s28]]
      %p365 = scmp.lt.s32.totalorder %s364, 1
      %s366 = scalar_select %p365, %s364, 1
      %s367 = scalar_lea.vmem %s6, %s366
      %p368 = pneg %p201
      %p369 = pneg %p198
      %p370 = pneg %p227
      %p371 = pneg %p224
      %s372 = smul.u32 2, %s28
      %p373 = scmp.lt.s32.totalorder %s372, 5
      %s374 = scalar_select %p373, %s372, 5
      %s375 = smul.addr %s374, 4
      %s376 = scalar_lea.vmem %s7, %s375
      %s377 = smul.u32 2, %s28
      %p378 = scmp.lt.s32.totalorder %s377, 5
      %s379 = scalar_select %p378, %s377, 5
      %s380 = smul.addr %s379, 4
      %s381 = scalar_lea.vmem %s1, %s380
      %s382 = smul.u32 2, %s28
      %s383 = smul.u32 2, %s28
      %p384 = scmp.lt.s32.totalorder %s383, 5
      %s385 = scalar_select %p384, %s383, 5
      %s386 = smul.addr %s385, 8
      %s387 = scalar_lea.vmem %s2, %s386
      %s388 = smul.u32 2, %s28
      %s389 = sld [smem:[#allocation4 + %s28]]
      %p390 = scmp.lt.s32.totalorder %s389, 1
      %s391 = scalar_select %p390, %s389, 1
      %p392 = scmp.lt.s32.totalorder %s29, 0
      %s393 = scalar_select %p392, %s29, 0
      %s394 = smul.addr %s391, 16
      %s395 = sadd.s32 %s393, %s394
      %s396 = smul.addr %s395, 4
      %s397 = scalar_lea.vmem %s3, %s396
      %s398 = sld [smem:[#allocation4 + %s28]]
      %s399 = sld [smem:[#allocation4 + %s28]]
      %p400 = scmp.lt.s32.totalorder %s399, 1
      %s401 = scalar_select %p400, %s399, 1
      %p402 = scmp.lt.s32.totalorder %s29, 0
      %s403 = scalar_select %p402, %s29, 0
      %s404 = sadd.s32 %s403, %s401
      %s405 = scalar_lea.vmem %s4, %s404
      %s406 = sld [smem:[#allocation4 + %s28]]
      %s407 = sld [smem:[#allocation4 + %s28]]
      %s408 = smul.u32 16, %s29
      %p409 = scmp.lt.s32.totalorder %s407, 1
      %s410 = scalar_select %p409, %s407, 1
      %p411 = scmp.lt.s32.totalorder %s408, 15
      %s412 = scalar_select %p411, %s408, 15
      %s413 = smul.addr %s410, 16
      %s414 = sadd.s32 %s412, %s413
      %s415 = smul.addr %s414, 4
      %s416 = scalar_lea.vmem %s5, %s415
      %s417 = sld [smem:[#allocation4 + %s28]]
      %s418 = smul.u32 16, %s29
      %s419 = sld [smem:[#allocation4 + %s28]]
      %p420 = scmp.lt.s32.totalorder %s419, 1
      %s421 = scalar_select %p420, %s419, 1
      %s422 = scalar_lea.vmem %s6, %s421
      %s423 = sld [smem:[#allocation4 + %s28]]
      %s424 = smul.u32 2, %s28
      %p425 = scmp.lt.s32.totalorder %s424, 5
      %s426 = scalar_select %p425, %s424, 5
      %s427 = smul.addr %s426, 4
      %s428 = scalar_lea.vmem %s7, %s427
      %s429 = smul.u32 2, %s28
      %p431 = scmp.eq.s32.totalorder %s29, 0
      // Predicated region
      $region45: #{mor_forward.30} parent=43 // pred_check
        %p432 = pneg %p431
      $region46: #{mor_forward.30} parent=43 // pred_check_branch
        %434 = sbr.rel (%p432) target = $region48
      $region47: #{mor_forward.30} parent=43 // pred_region
        %435 = vst [vmem:[#allocation2] sm:$0xff] 0.0
        %436 = vst [vmem:[#allocation2 + $0x8] sm:$0xff] 0.0
      $region48: #{mor_forward.30} parent=43 // pred_fallthru
        _
      %v437 = vld [vmem:[%s381] sm:$0xf]
      %v438 = vld [vmem:[%s381 + $0x4] sm:$0xf]
      %v439 = vld [vmem:[%s397] sm:$0xf]
      %v440 = vld [vmem:[%s397 + $0x4] sm:$0xf]
      %v441 = vld [vmem:[%s397 + $0x8] sm:$0xf]
      %v442 = vld [vmem:[%s397 + $0xc] sm:$0xf]
      %v443 = vld [vmem:[%s397 + $0x10] sm:$0xf]
      %v444 = vld [vmem:[%s397 + $0x14] sm:$0xf]
      %v445 = vld [vmem:[%s397 + $0x18] sm:$0xf]
      %v446 = vld [vmem:[%s397 + $0x1c] sm:$0xf]
      %v447 = vld [vmem:[%s397 + $0x20] sm:$0xf]
      %v448 = vld [vmem:[%s397 + $0x24] sm:$0xf]
      %v449 = vld [vmem:[%s397 + $0x28] sm:$0xf]
      %v450 = vld [vmem:[%s397 + $0x2c] sm:$0xf]
      %v451 = vld [vmem:[%s397 + $0x30] sm:$0xf]
      %v452 = vld [vmem:[%s397 + $0x34] sm:$0xf]
      %v453 = vld [vmem:[%s397 + $0x38] sm:$0xf]
      %v454 = vld [vmem:[%s397 + $0x3c] sm:$0xf]
      %v455 = vld [vmem:[%s405] sm:$0x1]
      %v457 = vlaneseq
      %v458 = vshrl.u32 %v457, 7
      %v459 = vsub.s32 0, %v458
      %v460 = vrot.slane %v455, %v459
      %v464 = vunpack.c.l.b16 %v437
      %v465 = vunpack.c.l.b16 %v438
      %v466 = vpack.c.b16 %v465, %v464
      %v484 = vunpack.c.l.b16 %v439
      %v485 = vunpack.c.l.b16 %v440
      %v486 = vunpack.c.l.b16 %v441
      %v487 = vunpack.c.l.b16 %v442
      %v488 = vunpack.c.l.b16 %v443
      %v489 = vunpack.c.l.b16 %v444
      %v490 = vunpack.c.l.b16 %v445
      %v491 = vunpack.c.l.b16 %v446
      %v492 = vunpack.c.l.b16 %v447
      %v493 = vunpack.c.l.b16 %v448
      %v494 = vunpack.c.l.b16 %v449
      %v495 = vunpack.c.l.b16 %v450
      %v496 = vunpack.c.l.b16 %v451
      %v497 = vunpack.c.l.b16 %v452
      %v498 = vunpack.c.l.b16 %v453
      %v499 = vunpack.c.l.b16 %v454
      %v500 = vpack.c.b16 %v485, %v484
      %v501 = vpack.c.b16 %v487, %v486
      %v502 = vpack.c.b16 %v489, %v488
      %v503 = vpack.c.b16 %v491, %v490
      %v504 = vpack.c.b16 %v493, %v492
      %v505 = vpack.c.b16 %v495, %v494
      %v506 = vpack.c.b16 %v497, %v496
      %v507 = vpack.c.b16 %v499, %v498
      %516 = vmatprep.subr.bf16.mxu0 0
      %517 = vmatpush1.bf16.msra.mxu0 %v500
      %518 = vmatprep.subr.bf16.mxu0 0
      %519 = vmatpush1.bf16.msra.mxu0 %v501
      %520 = vmatprep.subr.bf16.mxu0 0
      %521 = vmatpush1.bf16.msra.mxu0 %v502
      %522 = vmatprep.subr.bf16.mxu0 0
      %523 = vmatpush1.bf16.msra.mxu0 %v503
      %524 = vmatprep.subr.bf16.mxu0 0
      %525 = vmatpush1.bf16.msra.mxu0 %v504
      %526 = vmatprep.subr.bf16.mxu0 0
      %527 = vmatpush1.bf16.msra.mxu0 %v505
      %528 = vmatprep.subr.bf16.mxu0 0
      %529 = vmatpush1.bf16.msra.mxu0 %v506
      %530 = vmatprep.subr.bf16.mxu0 0
      %531 = vmatpush1.bf16.msra.mxu0 %v507
      %532 = vmatprep.subr.bf16.mxu0 0
      %533 = vmatpush1.bf16.msra.mxu0 0
      %534 = vmatprep.subr.bf16.mxu0 0
      %535 = vmatpush1.bf16.msra.mxu0 0
      %536 = vmatprep.subr.bf16.mxu0 0
      %537 = vmatpush1.bf16.msra.mxu0 0
      %538 = vmatprep.subr.bf16.mxu0 0
      %539 = vmatpush1.bf16.msra.mxu0 0
      %540 = vmatprep.subr.bf16.mxu0 0
      %541 = vmatpush1.bf16.msra.mxu0 0
      %542 = vmatprep.subr.bf16.mxu0 0
      %543 = vmatpush1.bf16.msra.mxu0 0
      %544 = vmatprep.subr.bf16.mxu0 0
      %545 = vmatpush1.bf16.msra.mxu0 0
      %546 = vmatprep.subr.bf16.mxu0 0
      %547 = vmatpush1.bf16.msra.mxu0 0
      %548 = vmatprep.mubr.bf16.mxu0 0
      %549 = vmatmul.mubr.bf16.gmra.mrb[0].mxu0 %v466
      %v550 = vpop.f32.mrb[0].mxu0
      %v551 = vadd.f32 %v460, %v550
      %v552 = vpop.f32.mrb[0].mxu0
      %v553 = vpop.f32.mrb[0].mxu0
      %v554 = vadd.f32 %v460, %v553
      %v555 = vpop.f32.mrb[0].mxu0
      %556 = vdwg.mxu0
      %v557 = vmul.f32 %v551, 0.5
      %v558 = vmul.f32 %v554, 0.5
      %v559 = vmul.f32 %v551, 0.70710677
      %v560 = vmul.f32 %v554, 0.70710677
      %v561 = vand.u32 2147483647, %v559
      %v562 = vand.u32 2147483647, %v560
      %v563 = vmul.f32 %v561, 0.3275911
      %v564 = vmul.f32 %v562, 0.3275911
      %v565 = vadd.f32 %v563, 1.0
      %v566 = vadd.f32 %v564, 1.0
      %v567 = vrcp.pop %v565
      %v568 = vmul.f32 1.0, %v567
      %v569 = vrcp.pop %v566
      %v570 = vmul.f32 1.0, %v569
      %v571 = vmul.f32 %v568, 1.0614054
      %v572 = vmul.f32 %v570, 1.0614054
      %v573 = vadd.f32 %v571, -1.4531521
      %v574 = vadd.f32 %v572, -1.4531521
      %v575 = vmul.f32 %v573, %v568
      %v576 = vmul.f32 %v574, %v570
      %v577 = vadd.f32 %v575, 1.4214138
      %v578 = vadd.f32 %v576, 1.4214138
      %v579 = vmul.f32 %v577, %v568
      %v580 = vmul.f32 %v578, %v570
      %v581 = vadd.f32 %v579, -0.28449672
      %v582 = vadd.f32 %v580, -0.28449672
      %v583 = vmul.f32 %v581, %v568
      %v584 = vmul.f32 %v582, %v570
      %v585 = vadd.f32 %v583, 0.2548296
      %v586 = vadd.f32 %v584, 0.2548296
      %v587 = vmul.f32 %v585, %v568
      %v588 = vmul.f32 %v586, %v570
      %v589 = vsub.f32 0.0, %v561
      %v590 = vsub.f32 0.0, %v562
      %v591 = vmul.f32 %v589, %v561
      %v592 = vmul.f32 %v590, %v562
      %v593 = vmul.f32 %v591, 1.442695
      %v594 = vpow.pop %v593
      %v595 = vmul.f32 %v592, 1.442695
      %v596 = vpow.pop %v595
      %v597 = vmul.f32 %v587, %v594
      %v598 = vmul.f32 %v588, %v596
      %v599 = vsub.f32 1.0, %v597
      %v600 = vsub.f32 1.0, %v598
      %vm601 = vcmp.ge.f32.partialorder %v559, 0.0
      %vm602 = vcmp.ge.f32.partialorder %v560, 0.0
      %v603 = vsub.f32 0.0, %v599
      %v604 = vsub.f32 0.0, %v600
      %v605 = vsel %vm601, %v599, %v603
      %v606 = vsel %vm602, %v600, %v604
      %v607 = vadd.f32 %v605, 1.0
      %v608 = vadd.f32 %v606, 1.0
      %v609 = vmul.f32 %v557, %v607
      %v610 = vmul.f32 %v558, %v608
      %v611 = vld [vmem:[#allocation2] sm:$0xff]
      %v612 = vld [vmem:[#allocation2 + $0x8] sm:$0xff]
      %v613 = vpack.c.bf16 %v610, %v609
      %v614 = vld [vmem:[%s416] sm:$0xf]
      %v615 = vld [vmem:[%s416 + $0x4] sm:$0xf]
      %v616 = vld [vmem:[%s416 + $0x8] sm:$0xf]
      %v617 = vld [vmem:[%s416 + $0xc] sm:$0xf]
      %v618 = vld [vmem:[%s416 + $0x10] sm:$0xf]
      %v619 = vld [vmem:[%s416 + $0x14] sm:$0xf]
      %v620 = vld [vmem:[%s416 + $0x18] sm:$0xf]
      %v621 = vld [vmem:[%s416 + $0x1c] sm:$0xf]
      %v622 = vld [vmem:[%s416 + $0x20] sm:$0xf]
      %v623 = vld [vmem:[%s416 + $0x24] sm:$0xf]
      %v624 = vld [vmem:[%s416 + $0x28] sm:$0xf]
      %v625 = vld [vmem:[%s416 + $0x2c] sm:$0xf]
      %v626 = vld [vmem:[%s416 + $0x30] sm:$0xf]
      %v627 = vld [vmem:[%s416 + $0x34] sm:$0xf]
      %v628 = vld [vmem:[%s416 + $0x38] sm:$0xf]
      %v629 = vld [vmem:[%s416 + $0x3c] sm:$0xf]
      %v646 = vunpack.c.l.b16 %v614
      %v647 = vunpack.c.l.b16 %v615
      %v648 = vunpack.c.l.b16 %v616
      %v649 = vunpack.c.l.b16 %v617
      %v650 = vunpack.c.l.b16 %v618
      %v651 = vunpack.c.l.b16 %v619
      %v652 = vunpack.c.l.b16 %v620
      %v653 = vunpack.c.l.b16 %v621
      %v654 = vunpack.c.l.b16 %v622
      %v655 = vunpack.c.l.b16 %v623
      %v656 = vunpack.c.l.b16 %v624
      %v657 = vunpack.c.l.b16 %v625
      %v658 = vunpack.c.l.b16 %v626
      %v659 = vunpack.c.l.b16 %v627
      %v660 = vunpack.c.l.b16 %v628
      %v661 = vunpack.c.l.b16 %v629
      %v662 = vpack.c.b16 %v647, %v646
      %v663 = vpack.c.b16 %v649, %v648
      %v664 = vpack.c.b16 %v651, %v650
      %v665 = vpack.c.b16 %v653, %v652
      %v666 = vpack.c.b16 %v655, %v654
      %v667 = vpack.c.b16 %v657, %v656
      %v668 = vpack.c.b16 %v659, %v658
      %v669 = vpack.c.b16 %v661, %v660
      %678 = vmatprep.subr.bf16.mxu0 0
      %679 = vmatpush1.bf16.msra.mxu0 %v662
      %680 = vmatprep.subr.bf16.mxu0 0
      %681 = vmatpush1.bf16.msra.mxu0 %v663
      %682 = vmatprep.subr.bf16.mxu0 0
      %683 = vmatpush1.bf16.msra.mxu0 %v664
      %684 = vmatprep.subr.bf16.mxu0 0
      %685 = vmatpush1.bf16.msra.mxu0 %v665
      %686 = vmatprep.subr.bf16.mxu0 0
      %687 = vmatpush1.bf16.msra.mxu0 %v666
      %688 = vmatprep.subr.bf16.mxu0 0
      %689 = vmatpush1.bf16.msra.mxu0 %v667
      %690 = vmatprep.subr.bf16.mxu0 0
      %691 = vmatpush1.bf16.msra.mxu0 %v668
      %692 = vmatprep.subr.bf16.mxu0 0
      %693 = vmatpush1.bf16.msra.mxu0 %v669
      %694 = vmatprep.subr.bf16.mxu0 0
      %695 = vmatpush1.bf16.msra.mxu0 0
      %696 = vmatprep.subr.bf16.mxu0 0
      %697 = vmatpush1.bf16.msra.mxu0 0
      %698 = vmatprep.subr.bf16.mxu0 0
      %699 = vmatpush1.bf16.msra.mxu0 0
      %700 = vmatprep.subr.bf16.mxu0 0
      %701 = vmatpush1.bf16.msra.mxu0 0
      %702 = vmatprep.subr.bf16.mxu0 0
      %703 = vmatpush1.bf16.msra.mxu0 0
      %704 = vmatprep.subr.bf16.mxu0 0
      %705 = vmatpush1.bf16.msra.mxu0 0
      %706 = vmatprep.subr.bf16.mxu0 0
      %707 = vmatpush1.bf16.msra.mxu0 0
      %708 = vmatprep.subr.bf16.mxu0 0
      %709 = vmatpush1.bf16.msra.mxu0 0
      %710 = vmatprep.mubr.bf16.mxu0 0
      %711 = vmatmul.mubr.bf16.gmra.mrb[0].mxu0 %v613
      %v712 = vpop.f32.mrb[0].mxu0
      %v713 = vadd.f32 0.0, %v712
      %v714 = vpop.f32.mrb[0].mxu0
      %v715 = vpop.f32.mrb[0].mxu0
      %v716 = vadd.f32 0.0, %v715
      %v717 = vpop.f32.mrb[0].mxu0
      %718 = vdwg.mxu0
      %v719 = vadd.f32 %v611, %v713
      %v720 = vadd.f32 %v612, %v716
      %721 = vst [vmem:[#allocation2] sm:$0xff] %v719
      %722 = vst [vmem:[#allocation2 + $0x8] sm:$0xff] %v720
      // Predicated region
      $region49: #{mor_forward.30} parent=43 // pred_check
        %p723 = pneg %p431
      $region50: #{mor_forward.30} parent=43 // pred_check_branch
        %725 = sbr.rel (%p723) target = $region52
      $region51: #{mor_forward.30} parent=43 // pred_region
        %v726 = vld [vmem:[#allocation2] sm:$0xff]
        %v727 = vld [vmem:[#allocation2 + $0x8] sm:$0xff]
        %v728 = vld [vmem:[%s422] sm:$0x1]
        %v730 = vlaneseq
        %v731 = vshrl.u32 %v730, 7
        %v732 = vsub.s32 0, %v731
        %v733 = vrot.slane %v728, %v732
        %v735 = vadd.f32 %v726, %v733
        %v736 = vadd.f32 %v727, %v733
        %v737 = vld [vmem:[%s387] sm:$0xff]
        %v738 = vld [vmem:[%s387 + $0x8] sm:$0xff]
        %740 = vset.pattern.permute.xlu0 0
        %741 = vperm.xlu0 %740, %v737
        %v742 = vpop.permute.xlu0 %741
        %745 = vset.pattern.permute.xlu0 0
        %746 = vperm.xlu0 %745, %v738
        %v747 = vpop.permute.xlu0 %746
        %v749 = vmul.f32 %v735, %v742
        %v750 = vmul.f32 %v736, %v747
        %v751 = vpack.c.bf16 %v750, %v749
        %v753 = vunpack.c.l.b16 %v751
        %v754 = vunpack.c.h.b16 %v751
        %v755 = vpack.c.b16 %v753, %v753
        %v756 = vpack.c.b16 %v754, %v754
        %759 = vst [vmem:[%s428] sm:$0xf] %v755
        %760 = vst [vmem:[%s428 + $0x4] sm:$0xf] %v756
      $region52: #{mor_forward.30} parent=43 // pred_fallthru
        _
      %s761 = smul.u32 2, %s28
      %p762 = scmp.lt.s32.totalorder %s761, 5
      %s763 = scalar_select %p762, %s761, 5
      %s764 = smul.addr %s763, 4
      %s765 = scalar_lea.vmem %s7, %s764
      // Predicated region
      $region53: #{mor_forward.30} parent=43 // pred_check
        %p766 = pneg %p224
      $region54: #{mor_forward.30} parent=43 // pred_check_branch
        %768 = sbr.rel (%p766) target = $region56
      $region55: #{mor_forward.30} parent=43 // pred_region
        %s769 = smul.u32 2, %s28
      $region56: #{mor_forward.30} parent=43 // pred_fallthru
        _
    $region44: #{mor_forward.30} parent=5 // pred_fallthru
      _
    %p770 = scmp.le.s32.totalorder 2, %s19
    // Predicated region
    $region57: #{mor_forward.30} parent=5 // pred_check
      %p771 = pneg %p770
    $region58: #{mor_forward.30} parent=5 // pred_check_branch
      %773 = sbr.rel (%p771) target = $region60
    $region59: #{mor_forward.30} parent=5 // pred_region
      %s774 = ssub.s32 %s19, 2
      // Predicated region
      $region61: #{mor_forward.30} parent=59 // pred_check
        %p775 = pneg %p230
      $region62: #{mor_forward.30} parent=59 // pred_check_branch
        %777 = sbr.rel (%p775) target = $region64
      $region63: #{mor_forward.30} parent=59 // pred_region
        %s778 = smul.u32 2, %s30
        %p779 = scmp.lt.s32.totalorder %s778, 5
        %s780 = scalar_select %p779, %s778, 5
        %s781 = smul.addr %s780, 4
        %s782 = scalar_lea.vmem %s7, %s781
      $region64: #{mor_forward.30} parent=59 // pred_fallthru
        _
    $region60: #{mor_forward.30} parent=5 // pred_fallthru
      _
  $region6: #{mor_forward.30} parent=0 // loop_footer
    %s23 = sadd.s32 1, %s19
  $region7: #{mor_forward.30} parent=0 // loop_footer_branch
    %18 = sbr.rel target = $region3
  $region8: #{mor_forward.30} parent=0 // loop_exit
    _

// kernel: mor_forward.49
$region0: #{mor_forward.49}
  #allocation0 [shape = 'u32[]', space=smem, size = 0x4, offset = 0x4, fixed_abs, tag = 'smem constant byte address 0x4 - core index']
  #allocation1 [shape = 'u32[144,128]{1,0:T(1,128)}', space=vmem, size = 0x12000, scoped, tag = 'internal scratch']
  #allocation2 [shape = 'bf16[16,128]{1,0:T(16,128)(2,1)}', space=vmem, size = 0x1000, scoped, tag = 'scratch operand']
  %s0 = inlined_call_operand.vmem [shape: bf16[16,128], index: 0, kind: input, shape index: {}]
  %s1 = inlined_call_operand.vmem [shape: f32[1,128], index: 1, kind: input, shape index: {}]
  %s2 = inlined_call_operand.vmem [shape: f32[1,128], index: 2, kind: input, shape index: {}]
  %s3 = inlined_call_operand.vmem [shape: bf16[128,128], index: 3, kind: input, shape index: {}]
  %s4 = inlined_call_operand.vmem [shape: f32[1,128], index: 4, kind: input, shape index: {}]
  %s5 = inlined_call_operand.vmem [shape: f32[16,128], index: 5, kind: output, shape index: {}]
  %s6 = sld [smem:[#allocation0]]
  $region34: #{mor_forward.49} parent=0
    _
  %s8 = ssub.s32 1, %s6
  %s9 = scalar_select 0, %s8, %s6
  // Predicated region
  $region2: #{mor_forward.49} parent=0 // pred_check
    _
  $region3: #{mor_forward.49} parent=0 // pred_check_branch
    %11 = sbr.rel (0) target = $region5
  $region4: #{mor_forward.49} parent=0 // pred_region
    _
  $region5: #{mor_forward.49} parent=0 // pred_fallthru
    _
  // Predicated region
  $region6: #{mor_forward.49} parent=0 // pred_check
    _
  $region7: #{mor_forward.49} parent=0 // pred_check_branch
    %13 = sbr.rel (0) target = $region9
  $region8: #{mor_forward.49} parent=0 // pred_region
    _
  $region9: #{mor_forward.49} parent=0 // pred_fallthru
    _
  // Predicated region
  $region10: #{mor_forward.49} parent=0 // pred_check
    _
  $region11: #{mor_forward.49} parent=0 // pred_check_branch
    %15 = sbr.rel (0) target = $region13
  $region12: #{mor_forward.49} parent=0 // pred_region
    _
  $region13: #{mor_forward.49} parent=0 // pred_fallthru
    _
  // Predicated region
  $region14: #{mor_forward.49} parent=0 // pred_check
    _
  $region15: #{mor_forward.49} parent=0 // pred_check_branch
    %17 = sbr.rel (0) target = $region17
  $region16: #{mor_forward.49} parent=0 // pred_region
    _
  $region17: #{mor_forward.49} parent=0 // pred_fallthru
    _
  // Predicated region
  $region18: #{mor_forward.49} parent=0 // pred_check
    _
  $region19: #{mor_forward.49} parent=0 // pred_check_branch
    %19 = sbr.rel (0) target = $region21
  $region20: #{mor_forward.49} parent=0 // pred_region
    _
  $region21: #{mor_forward.49} parent=0 // pred_fallthru
    _
  %p21 = scmp.eq.s32.totalorder 0, 0
  // Predicated region
  $region22: #{mor_forward.49} parent=0 // pred_check
    %p22 = pneg %p21
  $region23: #{mor_forward.49} parent=0 // pred_check_branch
    %24 = sbr.rel (%p22) target = $region25
  $region24: #{mor_forward.49} parent=0 // pred_region
    %v25 = vld [vmem:[%s0] sm:$0xf]
    %v26 = vld [vmem:[%s0 + $0x4] sm:$0xf]
    %v27 = vunpack.c.l.bf16 %v25
    %v28 = vunpack.c.l.bf16 %v26
    %29 = vadd.xlane.f32.xlu0 %v27
    %v30 = vpop.xlane.xlu0 %29
    %31 = vadd.xlane.f32.xlu0 %v28
    %v32 = vpop.xlane.xlu0 %31
    %v33 = vmul.f32 %v30, 0.03125
    %v34 = vmul.f32 %v32, 0.03125
    %v35 = vsub.f32 %v27, %v33
    %v36 = vsub.f32 %v28, %v34
    %v37 = vmul.f32 %v35, %v35
    %v38 = vmul.f32 %v36, %v36
    %39 = vadd.xlane.f32.xlu0 %v37
    %v40 = vpop.xlane.xlu0 %39
    %41 = vadd.xlane.f32.xlu0 %v38
    %v42 = vpop.xlane.xlu0 %41
    %v43 = vmul.f32 %v40, 0.03125
    %v44 = vmul.f32 %v42, 0.03125
    %v45 = vadd.f32 %v43, 1e-05
    %v46 = vadd.f32 %v44, 1e-05
    %v47 = vrsqrt.pop %v45
    %v48 = vrsqrt.pop %v46
    %v49 = vmul.f32 %v35, %v47
    %v50 = vmul.f32 %v36, %v48
    %v51 = vld [vmem:[%s1] sm:$0x1]
    %v53 = vlaneseq
    %v54 = vshrl.u32 %v53, 7
    %v55 = vsub.s32 0, %v54
    %v56 = vrot.slane %v51, %v55
    %v58 = vmul.f32 %v49, %v56
    %v59 = vmul.f32 %v50, %v56
    %v60 = vld [vmem:[%s2] sm:$0x1]
    %v62 = vlaneseq
    %v63 = vshrl.u32 %v62, 7
    %v64 = vsub.s32 0, %v63
    %v65 = vrot.slane %v60, %v64
    %v67 = vadd.f32 %v58, %v65
    %v68 = vadd.f32 %v59, %v65
    %v69 = vpack.c.bf16 %v68, %v67
    %70 = vst [vmem:[#allocation2] sm:$0xff] %v69
  $region25: #{mor_forward.49} parent=0 // pred_fallthru
    _
  %v71 = vld [vmem:[#allocation2] sm:$0xff]
  %v72 = vld [vmem:[%s3] sm:$0xf]
  %v73 = vld [vmem:[%s3 + $0x4] sm:$0xf]
  %v74 = vld [vmem:[%s3 + $0x8] sm:$0xf]
  %v75 = vld [vmem:[%s3 + $0xc] sm:$0xf]
  %v76 = vld [vmem:[%s3 + $0x10] sm:$0xf]
  %v77 = vld [vmem:[%s3 + $0x14] sm:$0xf]
  %v78 = vld [vmem:[%s3 + $0x18] sm:$0xf]
  %v79 = vld [vmem:[%s3 + $0x1c] sm:$0xf]
  %v80 = vld [vmem:[%s3 + $0x20] sm:$0xf]
  %v81 = vld [vmem:[%s3 + $0x24] sm:$0xf]
  %v82 = vld [vmem:[%s3 + $0x28] sm:$0xf]
  %v83 = vld [vmem:[%s3 + $0x2c] sm:$0xf]
  %v84 = vld [vmem:[%s3 + $0x30] sm:$0xf]
  %v85 = vld [vmem:[%s3 + $0x34] sm:$0xf]
  %v86 = vld [vmem:[%s3 + $0x38] sm:$0xf]
  %v87 = vld [vmem:[%s3 + $0x3c] sm:$0xf]
  %v88 = vld [vmem:[%s4] sm:$0x1]
  %v90 = vlaneseq
  %v91 = vshrl.u32 %v90, 7
  %v92 = vsub.s32 0, %v91
  %v93 = vrot.slane %v88, %v92
  %v111 = vunpack.c.l.b16 %v72
  %v112 = vunpack.c.l.b16 %v73
  %v113 = vunpack.c.l.b16 %v74
  %v114 = vunpack.c.l.b16 %v75
  %v115 = vunpack.c.l.b16 %v76
  %v116 = vunpack.c.l.b16 %v77
  %v117 = vunpack.c.l.b16 %v78
  %v118 = vunpack.c.l.b16 %v79
  %v119 = vunpack.c.l.b16 %v80
  %v120 = vunpack.c.l.b16 %v81
  %v121 = vunpack.c.l.b16 %v82
  %v122 = vunpack.c.l.b16 %v83
  %v123 = vunpack.c.l.b16 %v84
  %v124 = vunpack.c.l.b16 %v85
  %v125 = vunpack.c.l.b16 %v86
  %v126 = vunpack.c.l.b16 %v87
  %v127 = vpack.c.b16 %v112, %v111
  %v128 = vpack.c.b16 %v114, %v113
  %v129 = vpack.c.b16 %v116, %v115
  %v130 = vpack.c.b16 %v118, %v117
  %v131 = vpack.c.b16 %v120, %v119
  %v132 = vpack.c.b16 %v122, %v121
  %v133 = vpack.c.b16 %v124, %v123
  %v134 = vpack.c.b16 %v126, %v125
  %143 = vmatprep.subr.bf16.mxu0 0
  %144 = vmatpush1.bf16.msra.mxu0 %v127
  %145 = vmatprep.subr.bf16.mxu0 0
  %146 = vmatpush1.bf16.msra.mxu0 %v128
  %147 = vmatprep.subr.bf16.mxu0 0
  %148 = vmatpush1.bf16.msra.mxu0 %v129
  %149 = vmatprep.subr.bf16.mxu0 0
  %150 = vmatpush1.bf16.msra.mxu0 %v130
  %151 = vmatprep.subr.bf16.mxu0 0
  %152 = vmatpush1.bf16.msra.mxu0 %v131
  %153 = vmatprep.subr.bf16.mxu0 0
  %154 = vmatpush1.bf16.msra.mxu0 %v132
  %155 = vmatprep.subr.bf16.mxu0 0
  %156 = vmatpush1.bf16.msra.mxu0 %v133
  %157 = vmatprep.subr.bf16.mxu0 0
  %158 = vmatpush1.bf16.msra.mxu0 %v134
  %159 = vmatprep.subr.bf16.mxu0 0
  %160 = vmatpush1.bf16.msra.mxu0 0
  %161 = vmatprep.subr.bf16.mxu0 0
  %162 = vmatpush1.bf16.msra.mxu0 0
  %163 = vmatprep.subr.bf16.mxu0 0
  %164 = vmatpush1.bf16.msra.mxu0 0
  %165 = vmatprep.subr.bf16.mxu0 0
  %166 = vmatpush1.bf16.msra.mxu0 0
  %167 = vmatprep.subr.bf16.mxu0 0
  %168 = vmatpush1.bf16.msra.mxu0 0
  %169 = vmatprep.subr.bf16.mxu0 0
  %170 = vmatpush1.bf16.msra.mxu0 0
  %171 = vmatprep.subr.bf16.mxu0 0
  %172 = vmatpush1.bf16.msra.mxu0 0
  %173 = vmatprep.subr.bf16.mxu0 0
  %174 = vmatpush1.bf16.msra.mxu0 0
  %175 = vmatprep.mubr.bf16.mxu0 0
  %176 = vmatmul.mubr.bf16.gmra.mrb[0].mxu0 %v71
  %v177 = vpop.f32.mrb[0].mxu0
  %v178 = vadd.f32 %v93, %v177
  %v179 = vpop.f32.mrb[0].mxu0
  %v180 = vpop.f32.mrb[0].mxu0
  %v181 = vadd.f32 %v93, %v180
  %v182 = vpop.f32.mrb[0].mxu0
  %183 = vdwg.mxu0
  %184 = vst [vmem:[%s5] sm:$0xff] %v178
  %185 = vst [vmem:[%s5 + $0x8] sm:$0xff] %v181
  // Predicated region
  $region26: #{mor_forward.49} parent=0 // pred_check
    _
  $region27: #{mor_forward.49} parent=0 // pred_check_branch
    %187 = sbr.rel (0) target = $region29
  $region28: #{mor_forward.49} parent=0 // pred_region
    _
  $region29: #{mor_forward.49} parent=0 // pred_fallthru
    _
  // Predicated region
  $region30: #{mor_forward.49} parent=0 // pred_check
    _
  $region31: #{mor_forward.49} parent=0 // pred_check_branch
    %189 = sbr.rel (0) target = $region33
  $region32: #{mor_forward.49} parent=0 // pred_region
    _
  $region33: #{mor_forward.49} parent=0 // pred_fallthru
    _

</llo_original>
